<compile_context>
chip_gen: v5e
topology: v5e:2x2
jax: 0.10.0
libtpu: 0.0.40
codegen_flags: <defaults>
</compile_context>

<pallas_src>
import functools

import jax
import jax.numpy as jnp
import numpy as np
from jax import lax
from jax.experimental import pallas as pl
from jax.experimental.pallas import tpu as pltpu


MXU_DTYPE = jnp.bfloat16            # MXU operand dtype; accumulation stays f32.
VMEM_LIMIT_BYTES = 64 * 1024 * 1024  # explicit scoped-VMEM limit (fits every gen).


def _round_up(x, m):
    return ((x + m - 1) // m) * m


def _pick_time_block(s, cap):
    """Largest divisor of s <= cap (=> s_pad == s, no per-step mask).  Falls back
    to `cap` with masking only for awkward (e.g. prime) long sequences."""
    cap = max(8, min(cap, 64))
    best = max(d for d in range(1, min(s, cap) + 1) if s % d == 0)
    if best >= min(s, 16):
        return best, False           # (ts, needs_mask)
    return cap, True


def _pick_batch_block(b):
    """Padded batch and batch tile rows: multiple of 8, divides bp, <= 128.
    Split in two when possible so the 'parallel' batch axis can shard across
    v7x's two TensorCores (harmless on single-TC v5e/v6e)."""
    bp = _round_up(b, 8)
    if bp <= 128:
        tb_rows = bp
        if bp >= 16 and (bp // 2) % 8 == 0:
            tb_rows = bp // 2
        return bp, tb_rows
    for cand in range(128, 7, -8):    # divisor of bp -> bounds padding waste
        if bp % cand == 0:
            return bp, cand
    return _round_up(bp, 128), 128    # unreachable (bp is a multiple of 8)


# ----------------------------------------------------------------------------- #
# One GRU time step (f32 elementwise math, bf16 MXU operands, f32 accumulation).
# xz = x_t @ [Wxz|Wxr|Wxg] + b, precomputed per step (off the serial chain).
# ----------------------------------------------------------------------------- #
def _gru_step(xz, h, whzr, whg, hp, mxu_dtype):
    zr = xz[:, :2 * hp] + jnp.dot(h.astype(mxu_dtype), whzr,
                                  preferred_element_type=jnp.float32)
    z = jax.nn.sigmoid(zr[:, :hp])
    r = jax.nn.sigmoid(zr[:, hp:])
    g = jnp.tanh(xz[:, 2 * hp:] + jnp.dot((r * h).astype(mxu_dtype), whg,
                                          preferred_element_type=jnp.float32))
    return z * h + (1.0 - z) * g


# ----------------------------------------------------------------------------- #
# Recurrent kernel (hidden layers): grid = (batch_blocks, time_blocks).
# Hidden state carried in VMEM scratch across the sequential time-block axis;
# the input projection is computed in-kernel (no HBM round trip of xproj).
# ----------------------------------------------------------------------------- #
def _gru_layer_kernel(x_ref, h0_ref, wx_ref, b_ref, whzr_ref, whg_ref,
                      out_ref, hT_ref, h_scratch,
                      *, ts, hp, seq_len, needs_mask, unroll):
    tb = pl.program_id(1)
    nb = pl.num_programs(1)

    @pl.when(tb == 0)
    def _():
        h_scratch[...] = h0_ref[...]

    wx = wx_ref[...]        # (in_p, 3Hp) bf16
    bias = b_ref[...]       # (1, 3Hp)    f32
    whzr = whzr_ref[...]    # (Hp, 2Hp)   bf16
    whg = whg_ref[...]      # (Hp, Hp)    bf16
    mxu_dtype = wx.dtype

    def step(t, h):
        # Fused input projection: independent of h -> overlaps with the serial
        # recurrence of neighbouring (unrolled) iterations.
        xz = jnp.dot(x_ref[t], wx, preferred_element_type=jnp.float32) + bias
        h_new = _gru_step(xz, h, whzr, whg, hp, mxu_dtype)
        if needs_mask:      # static: only emitted when s_pad != s
            h_new = jnp.where((tb * ts + t) < seq_len, h_new, h)
        out_ref[t] = h_new.astype(out_ref.dtype)
        return h_new

    h_final = lax.fori_loop(0, ts, step, h_scratch[...], unroll=unroll)

    @pl.when(tb < nb - 1)
    def _():
        h_scratch[...] = h_final

    @pl.when(tb == nb - 1)
    def _():
        hT_ref[...] = h_final


def gru_layer(xseq, h0, wx_cat, b_cat, wh_zr, whg, *,
              seq_len, ts, tb_rows, needs_mask, unroll):
    s_pad, bp, in_p = xseq.shape
    hp = h0.shape[-1]
    kernel = functools.partial(_gru_layer_kernel, ts=ts, hp=hp, seq_len=seq_len,
                               needs_mask=needs_mask, unroll=unroll)
    return pl.pallas_call(
        kernel,
        out_shape=(jax.ShapeDtypeStruct((s_pad, bp, hp), MXU_DTYPE),   # next layer input
                   jax.ShapeDtypeStruct((bp, hp), jnp.float32)),
        grid=(bp // tb_rows, s_pad // ts),
        in_specs=[
            pl.BlockSpec((ts, tb_rows, in_p), lambda bb, tb: (tb, bb, 0)),
            pl.BlockSpec((tb_rows, hp), lambda bb, tb: (bb, 0)),
            pl.BlockSpec((in_p, 3 * hp), lambda bb, tb: (0, 0)),
            pl.BlockSpec((1, 3 * hp), lambda bb, tb: (0, 0)),
            pl.BlockSpec((hp, 2 * hp), lambda bb, tb: (0, 0)),
            pl.BlockSpec((hp, hp), lambda bb, tb: (0, 0)),
        ],
        out_specs=(
            pl.BlockSpec((ts, tb_rows, hp), lambda bb, tb: (tb, bb, 0)),
            pl.BlockSpec((tb_rows, hp), lambda bb, tb: (bb, 0)),
        ),
        scratch_shapes=[pltpu.VMEM((tb_rows, hp), jnp.float32)],
        compiler_params=pltpu.CompilerParams(
            dimension_semantics=("parallel", "arbitrary"),
            vmem_limit_bytes=VMEM_LIMIT_BYTES),
    )(xseq, h0, wx_cat, b_cat, wh_zr, whg)


# ----------------------------------------------------------------------------- #
# Last-layer kernel: identical recurrence + fused y = h @ W_y + b_y per timestep.
# ----------------------------------------------------------------------------- #
def _gru_last_layer_kernel(x_ref, h0_ref, wx_ref, b_ref, whzr_ref, whg_ref,
                           yw_ref, yb_ref, y_ref, hT_ref, h_scratch,
                           *, ts, hp, seq_len, needs_mask, unroll):
    tb = pl.program_id(1)
    nb = pl.num_programs(1)
    rows = h0_ref.shape[0]

    @pl.when(tb == 0)
    def _():
        h_scratch[...] = h0_ref[...]

    wx = wx_ref[...]
    bias = b_ref[...]
    whzr = whzr_ref[...]
    whg = whg_ref[...]
    yw = yw_ref[...]
    mxu_dtype = wx.dtype
    # Hoist the output-bias broadcast out of the time loop (JAX does not CSE it).
    yb = jnp.broadcast_to(yb_ref[...], (rows, yw_ref.shape[1]))

    def step(t, h):
        xz = jnp.dot(x_ref[t], wx, preferred_element_type=jnp.float32) + bias
        h_new = _gru_step(xz, h, whzr, whg, hp, mxu_dtype)
        if needs_mask:
            h_new = jnp.where((tb * ts + t) < seq_len, h_new, h)
        y_ref[t] = jnp.dot(h_new.astype(mxu_dtype), yw,
                           preferred_element_type=jnp.float32) + yb
        return h_new

    h_final = lax.fori_loop(0, ts, step, h_scratch[...], unroll=unroll)

    @pl.when(tb < nb - 1)
    def _():
        h_scratch[...] = h_final

    @pl.when(tb == nb - 1)
    def _():
        hT_ref[...] = h_final


def gru_last_layer(xseq, h0, wx_cat, b_cat, wh_zr, whg, yw, yb, *,
                   seq_len, ts, tb_rows, needs_mask, unroll):
    s_pad, bp, in_p = xseq.shape
    hp = h0.shape[-1]
    op = yw.shape[-1]
    kernel = functools.partial(_gru_last_layer_kernel, ts=ts, hp=hp,
                               seq_len=seq_len, needs_mask=needs_mask,
                               unroll=unroll)
    return pl.pallas_call(
        kernel,
        out_shape=(jax.ShapeDtypeStruct((s_pad, bp, op), jnp.float32),
                   jax.ShapeDtypeStruct((bp, hp), jnp.float32)),
        grid=(bp // tb_rows, s_pad // ts),
        in_specs=[
            pl.BlockSpec((ts, tb_rows, in_p), lambda bb, tb: (tb, bb, 0)),
            pl.BlockSpec((tb_rows, hp), lambda bb, tb: (bb, 0)),
            pl.BlockSpec((in_p, 3 * hp), lambda bb, tb: (0, 0)),
            pl.BlockSpec((1, 3 * hp), lambda bb, tb: (0, 0)),
            pl.BlockSpec((hp, 2 * hp), lambda bb, tb: (0, 0)),
            pl.BlockSpec((hp, hp), lambda bb, tb: (0, 0)),
            pl.BlockSpec((hp, op), lambda bb, tb: (0, 0)),
            pl.BlockSpec((1, op), lambda bb, tb: (0, 0)),
        ],
        out_specs=(
            pl.BlockSpec((ts, tb_rows, op), lambda bb, tb: (tb, bb, 0)),
            pl.BlockSpec((tb_rows, hp), lambda bb, tb: (bb, 0)),
        ),
        scratch_shapes=[pltpu.VMEM((tb_rows, hp), jnp.float32)],
        compiler_params=pltpu.CompilerParams(
            dimension_semantics=("parallel", "arbitrary"),
            vmem_limit_bytes=VMEM_LIMIT_BYTES),
    )(xseq, h0, wx_cat, b_cat, wh_zr, whg, yw, yb)


# ----------------------------------------------------------------------------- #
# Parameter packing: fuse per-gate weights, cast MXU operands to bf16, zero-pad
# to lane/sublane-friendly shapes (H, O, layer-0 In -> multiples of 128).
# Zero padding keeps padded hidden columns exactly zero through the recurrence.
# ----------------------------------------------------------------------------- #
def pack_params(layer_params, y_w, y_b, in_dim, h_dim, out_dim,
                mxu_dtype=MXU_DTYPE):
    hp = _round_up(h_dim, 128)
    op = _round_up(out_dim, 128)
    in_p = _round_up(in_dim, 128)

    def padw(w, rows, cols):
        return jnp.pad(w, ((0, rows - w.shape[0]), (0, cols - w.shape[1])))

    packed = []
    for li, (wxz, bxz, whz, wxr, bxr, whr, wxg, bxg, whg) in enumerate(layer_params):
        rows = in_p if li == 0 else hp          # fixed: keyed on layer index
        wx_cat = jnp.concatenate([padw(wxz, rows, hp),
                                  padw(wxr, rows, hp),
                                  padw(wxg, rows, hp)], axis=1).astype(mxu_dtype)
        b_cat = jnp.concatenate([padw(bxz, 1, hp),
                                 padw(bxr, 1, hp),
                                 padw(bxg, 1, hp)], axis=1).astype(jnp.float32)
        wh_zr = jnp.concatenate([padw(whz, hp, hp),
                                 padw(whr, hp, hp)], axis=1).astype(mxu_dtype)
        whg_p = padw(whg, hp, hp).astype(mxu_dtype)
        packed.append((wx_cat, b_cat, wh_zr, whg_p))
    yw_p = padw(y_w, hp, op).astype(mxu_dtype)
    yb_p = padw(y_b, 1, op).astype(jnp.float32)
    return tuple(packed), yw_p, yb_p


# ----------------------------------------------------------------------------- #
# Full MultilayerGRU forward (Pallas hot path, thin JAX glue for pad/transpose).
# ----------------------------------------------------------------------------- #
@functools.partial(jax.jit, static_argnames=("out_dim",))
def multilayer_gru_forward(x, hidden_state, packed_layers, yw_p, yb_p, *, out_dim):
    """x: (B, S, I) f32, hidden_state: (B, L, H) f32.
    Returns (layer_output (B, S, O) f32, hidden_state (B, L, H) f32)."""
    b, s, in_dim = x.shape
    h_dim = hidden_state.shape[-1]
    hp = packed_layers[0][2].shape[0]           # wh_zr rows = Hp
    in_p = packed_layers[0][0].shape[0]         # layer-0 padded input width
    op = yw_p.shape[-1]

    bp, tb_rows = _pick_batch_block(b)
    # Keep double-buffered streamed blocks well under VMEM on every generation.
    per_step_bytes = tb_rows * (max(in_p, hp) * 2 + max(hp * 2, op * 4))
    cap = (12 * 1024 * 1024) // max(per_step_bytes, 1)
    ts, needs_mask = _pick_time_block(s, cap)
    s_pad = _round_up(s, ts)
    unroll = min(ts, 8)

    # (B, S, I) f32 -> (S_pad, Bp, In_p) bf16 (lane-dense MXU operand layout).
    xt = jnp.transpose(x.astype(jnp.float32), (1, 0, 2))
    xt = jnp.pad(xt, ((0, s_pad - s), (0, bp - b), (0, in_p - in_dim)))
    layer_input = xt.astype(MXU_DTYPE)

    finals = []
    y_seq = None
    n_layers = len(packed_layers)
    for li, (wx_cat, b_cat, wh_zr, whg_p) in enumerate(packed_layers):
        h0 = hidden_state[:, li, :].astype(jnp.float32)
        h0 = jnp.pad(h0, ((0, bp - b), (0, hp - h_dim)))

        if li < n_layers - 1:
            seq, h_t = gru_layer(layer_input, h0, wx_cat, b_cat, wh_zr, whg_p,
                                 seq_len=s, ts=ts, tb_rows=tb_rows,
                                 needs_mask=needs_mask, unroll=unroll)
            # TODO(synk): inter-layer nn.Dropout is identity here (dropout=0 / eval mode).
            layer_input = seq
        else:
            y_seq, h_t = gru_last_layer(layer_input, h0, wx_cat, b_cat, wh_zr,
                                        whg_p, yw_p, yb_p,
                                        seq_len=s, ts=ts, tb_rows=tb_rows,
                                        needs_mask=needs_mask, unroll=unroll)
        finals.append(h_t[:b, :h_dim])

    hidden_out = jnp.stack(finals, axis=1)                      # (B, L, H)
    y = jnp.transpose(y_seq[:s, :b, :out_dim], (1, 0, 2))       # (B, S, O)
    return y, hidden_out


# ----------------------------------------------------------------------------- #
# Pure-JAX reference mirroring the PyTorch loop.  With mxu_dtype set it also
# mirrors the kernel's bf16 MXU-operand rounding (f32 accumulation), which lets
# us assert tightly against the kernel while the exact-f32 run bounds total drift.
# ----------------------------------------------------------------------------- #
def reference_forward(x, hidden_state, layer_params, y_w, y_b, mxu_dtype=None):
    if mxu_dtype is None:
        cast = lambda a: a
    else:
        cast = lambda a: a.astype(mxu_dtype).astype(jnp.float32)
    b, s, _ = x.shape
    n_layers = len(layer_params)
    layer_input = x.astype(jnp.float32)
    finals = []
    for i, (wxz, bxz, whz, wxr, bxr, whr, wxg, bxg, whg) in enumerate(layer_params):
        h = hidden_state[:, i, :]
        outs = []
        for t in range(s):
            xt = cast(layer_input[:, t, :])
            z = jax.nn.sigmoid(xt @ cast(wxz) + bxz + cast(h) @ cast(whz))
            r = jax.nn.sigmoid(xt @ cast(wxr) + bxr + cast(h) @ cast(whr))
            g = jnp.tanh(xt @ cast(wxg) + bxg + cast(r * h) @ cast(whg))
            h = z * h + (1.0 - z) * g
            outs.append(cast(h) if i < n_layers - 1 else h)
        finals.append(h)
        layer_input = jnp.stack(outs, axis=1)
    hidden_out = jnp.stack(finals, axis=1)
    y = cast(layer_input) @ cast(y_w) + y_b
    return y, hidden_out


# ----------------------------------------------------------------------------- #
# Deterministic parameter construction (mimics nn.Linear uniform(-1/sqrt(fan_in))).
# ----------------------------------------------------------------------------- #
def init_params(key, in_dim, h_dim, out_dim, n_layers):
    layer_params = []
    input_dim = in_dim
    for _ in range(n_layers):
        lp = []
        for fan_in, has_bias in ((input_dim, True), (h_dim, False),   # z
                                 (input_dim, True), (h_dim, False),   # r
                                 (input_dim, True), (h_dim, False)):  # g
            key, kw, kb = jax.random.split(key, 3)
            bound = 1.0 / np.sqrt(fan_in)
            w = jax.random.uniform(kw, (fan_in, h_dim), jnp.float32, -bound, bound)
            lp.append(w)
            if has_bias:
                bias = jax.random.uniform(kb, (1, h_dim), jnp.float32, -bound, bound)
                lp.append(bias)
        layer_params.append(tuple(lp))   # (wxz, bxz, whz, wxr, bxr, whr, wxg, bxg, whg)
        input_dim = h_dim
    key, kw, kb = jax.random.split(key, 3)
    bound = 1.0 / np.sqrt(input_dim)
    y_w = jax.random.uniform(kw, (input_dim, out_dim), jnp.float32, -bound, bound)
    y_b = jax.random.uniform(kb, (1, out_dim), jnp.float32, -bound, bound)
    return tuple(layer_params), y_w, y_b


if __name__ == "__main__":
    B, S, in_dim, h_dim, out_dim, n_layers = 2, 8, 4, 32, 4, 2

    key = jax.random.PRNGKey(0)
    key, kx = jax.random.split(key)
    x = jax.random.normal(kx, (B, S, in_dim), jnp.float32)
    hidden0 = jnp.zeros((B, n_layers, h_dim), jnp.float32)  # hidden_state=None -> zeros

    layer_params, y_w, y_b = init_params(key, in_dim, h_dim, out_dim, n_layers)
    packed_layers, yw_p, yb_p = pack_params(layer_params, y_w, y_b,
                                            in_dim, h_dim, out_dim)

    y_out, h_out = multilayer_gru_forward(x, hidden0, packed_layers, yw_p, yb_p,
                                          out_dim=out_dim)
    y_out = jax.block_until_ready(y_out)
    h_out = jax.block_until_ready(h_out)

    assert y_out.shape == (B, S, out_dim)
    assert h_out.shape == (B, n_layers, h_dim)

    # Tight check vs. a reference that mirrors the kernel's bf16 MXU operands.
    y_bf, h_bf = reference_forward(x, hidden0, layer_params, y_w, y_b,
                                   mxu_dtype=MXU_DTYPE)
    np.testing.assert_allclose(np.asarray(y_out), np.asarray(y_bf), rtol=2e-3, atol=2e-3)
    np.testing.assert_allclose(np.asarray(h_out), np.asarray(h_bf), rtol=2e-3, atol=2e-3)

    # Loose check vs. the exact f32 PyTorch-semantics reference (bounds bf16 drift).
    y_ref, h_ref = reference_forward(x, hidden0, layer_params, y_w, y_b)
    np.testing.assert_allclose(np.asarray(y_out), np.asarray(y_ref), rtol=1e-1, atol=1e-1)
    np.testing.assert_allclose(np.asarray(h_out), np.asarray(h_ref), rtol=1e-1, atol=1e-1)

    print("KERNEL_OK")
</pallas_src>

<mosaic_0001>
module attributes {stable_mosaic.version = 11 : i64} {
  func.func @_gru_last_layer_kernel(%arg0: i32, %arg1: i32, %arg2: memref<8x8x128xbf16, #tpu.memory_space<vmem>>, %arg3: memref<8x128xf32, #tpu.memory_space<vmem>>, %arg4: memref<128x384xbf16, #tpu.memory_space<vmem>>, %arg5: memref<1x384xf32, #tpu.memory_space<vmem>>, %arg6: memref<128x256xbf16, #tpu.memory_space<vmem>>, %arg7: memref<128x128xbf16, #tpu.memory_space<vmem>>, %arg8: memref<128x128xbf16, #tpu.memory_space<vmem>>, %arg9: memref<1x128xf32, #tpu.memory_space<vmem>>, %arg10: memref<8x8x128xf32, #tpu.memory_space<vmem>>, %arg11: memref<8x128xf32, #tpu.memory_space<vmem>>, %arg12: memref<8x128xf32, #tpu.memory_space<vmem>>) attributes {dimension_semantics = [#tpu.dimension_semantics<parallel>, #tpu.dimension_semantics<arbitrary>], iteration_bounds = array<i64: 1, 1>, scalar_prefetch = 0 : i64, scratch_operands = 1 : i64, tpu.core_type = #tpu.core_type<tc>, window_params = [{transform_indices = @transform_0, window_bounds = array<i64: 8, 8, 128>}, {transform_indices = @transform_1, window_bounds = array<i64: 8, 128>}, {pipeline_mode = #tpu.pipeline_mode<synchronous>, transform_indices = @transform_2, window_bounds = array<i64: 128, 384>}, {pipeline_mode = #tpu.pipeline_mode<synchronous>, transform_indices = @transform_3, window_bounds = array<i64: 1, 384>}, {pipeline_mode = #tpu.pipeline_mode<synchronous>, transform_indices = @transform_4, window_bounds = array<i64: 128, 256>}, {pipeline_mode = #tpu.pipeline_mode<synchronous>, transform_indices = @transform_5, window_bounds = array<i64: 128, 128>}, {pipeline_mode = #tpu.pipeline_mode<synchronous>, transform_indices = @transform_6, window_bounds = array<i64: 128, 128>}, {pipeline_mode = #tpu.pipeline_mode<synchronous>, transform_indices = @transform_7, window_bounds = array<i64: 1, 128>}, {transform_indices = @transform_8, window_bounds = array<i64: 8, 8, 128>}, {transform_indices = @transform_9, window_bounds = array<i64: 8, 128>}]} {
    %c0_i32 = arith.constant 0 : i32
    %0 = arith.cmpi eq, %arg1, %c0_i32 : i32
    %1 = arith.extui %0 : i1 to i32
    %c0_i32_0 = arith.constant 0 : i32
    %2 = arith.cmpi ne, %1, %c0_i32_0 : i32
    scf.if %2 {
      %c0_106 = arith.constant 0 : index
      %c0_107 = arith.constant 0 : index
      %338 = vector.load %arg3[%c0_106, %c0_107] : memref<8x128xf32, #tpu.memory_space<vmem>>, vector<8x128xf32>
      %c0_108 = arith.constant 0 : index
      %c0_109 = arith.constant 0 : index
      %339 = vector.load %arg12[%c0_108, %c0_109] : memref<8x128xf32, #tpu.memory_space<vmem>>, vector<8x128xf32>
      tpu.vector_store %arg12[%c0_108, %c0_109], %338 {strides = array<i32>} : memref<8x128xf32, #tpu.memory_space<vmem>>, vector<8x128xf32>,
    } else {
    }
    %c0 = arith.constant 0 : index
    %c0_1 = arith.constant 0 : index
    %3 = vector.load %arg4[%c0, %c0_1] : memref<128x384xbf16, #tpu.memory_space<vmem>>, vector<128x384xbf16>
    %c0_2 = arith.constant 0 : index
    %c0_3 = arith.constant 0 : index
    %4 = vector.load %arg5[%c0_2, %c0_3] : memref<1x384xf32, #tpu.memory_space<vmem>>, vector<1x384xf32>
    %c0_4 = arith.constant 0 : index
    %c0_5 = arith.constant 0 : index
    %5 = vector.load %arg6[%c0_4, %c0_5] : memref<128x256xbf16, #tpu.memory_space<vmem>>, vector<128x256xbf16>
    %c0_6 = arith.constant 0 : index
    %c0_7 = arith.constant 0 : index
    %6 = vector.load %arg7[%c0_6, %c0_7] : memref<128x128xbf16, #tpu.memory_space<vmem>>, vector<128x128xbf16>
    %c0_8 = arith.constant 0 : index
    %c0_9 = arith.constant 0 : index
    %7 = vector.load %arg8[%c0_8, %c0_9] : memref<128x128xbf16, #tpu.memory_space<vmem>>, vector<128x128xbf16>
    %c0_10 = arith.constant 0 : index
    %c0_11 = arith.constant 0 : index
    %8 = vector.load %arg9[%c0_10, %c0_11] : memref<1x128xf32, #tpu.memory_space<vmem>>, vector<1x128xf32>
    %9 = vector.shape_cast %8 : vector<1x128xf32> to vector<1x128xf32>
    %10 = vector.broadcast %9 : vector<1x128xf32> to vector<8x128xf32>
    %c0_12 = arith.constant 0 : index
    %c0_13 = arith.constant 0 : index
    %11 = vector.load %arg12[%c0_12, %c0_13] : memref<8x128xf32, #tpu.memory_space<vmem>>, vector<8x128xf32>
    %c0_i32_14 = arith.constant 0 : i32
    %12 = arith.index_cast %c0_i32_14 : i32 to index
    %c0_15 = arith.constant 0 : index
    %c0_16 = arith.constant 0 : index
    %13 = vector.load %arg2[%12, %c0_15, %c0_16] : memref<8x8x128xbf16, #tpu.memory_space<vmem>>, vector<1x8x128xbf16>
    %14 = vector.shape_cast %13 : vector<1x8x128xbf16> to vector<8x128xbf16>
    %cst = arith.constant dense<0.000000e+00> : vector<8x384xf32>
    %15 = tpu.matmul %14, %3, %cst {dimension_numbers = #tpu.dot_dimension_numbers<[1], [0], [0], [1], [0, 0, 1, 1], [], []>} : vector<8x128xbf16>, vector<128x384xbf16>, vector<8x384xf32> -> vector<8x384xf32>
    %16 = vector.broadcast %4 : vector<1x384xf32> to vector<8x384xf32>
    %17 = arith.addf %15, %16 : vector<8x384xf32>
    %18 = vector.extract_strided_slice %17 {offsets = [0, 0], sizes = [8, 256], strides = [1, 1]} : vector<8x384xf32> to vector<8x256xf32>
    %19 = arith.truncf %11 : vector<8x128xf32> to vector<8x128xbf16>
    %cst_17 = arith.constant dense<0.000000e+00> : vector<8x256xf32>
    %20 = tpu.matmul %19, %5, %cst_17 {dimension_numbers = #tpu.dot_dimension_numbers<[1], [0], [0], [1], [0, 0, 1, 1], [], []>} : vector<8x128xbf16>, vector<128x256xbf16>, vector<8x256xf32> -> vector<8x256xf32>
    %21 = arith.addf %18, %20 : vector<8x256xf32>
    %22 = vector.extract_strided_slice %21 {offsets = [0, 0], sizes = [8, 128], strides = [1, 1]} : vector<8x256xf32> to vector<8x128xf32>
    %23 = arith.negf %22 : vector<8x128xf32>
    %24 = math.exp %23 : vector<8x128xf32>
    %cst_18 = arith.constant 1.000000e+00 : f32
    %25 = vector.broadcast %cst_18 : f32 to vector<8x128xf32>
    %26 = arith.addf %25, %24 : vector<8x128xf32>
    %27 = arith.divf %25, %26 : vector<8x128xf32>
    %28 = vector.extract_strided_slice %21 {offsets = [0, 128], sizes = [8, 128], strides = [1, 1]} : vector<8x256xf32> to vector<8x128xf32>
    %29 = arith.negf %28 : vector<8x128xf32>
    %30 = math.exp %29 : vector<8x128xf32>
    %cst_19 = arith.constant 1.000000e+00 : f32
    %31 = vector.broadcast %cst_19 : f32 to vector<8x128xf32>
    %32 = arith.addf %31, %30 : vector<8x128xf32>
    %33 = arith.divf %31, %32 : vector<8x128xf32>
    %34 = vector.extract_strided_slice %17 {offsets = [0, 256], sizes = [8, 128], strides = [1, 1]} : vector<8x384xf32> to vector<8x128xf32>
    %35 = arith.mulf %33, %11 : vector<8x128xf32>
    %36 = arith.truncf %35 : vector<8x128xf32> to vector<8x128xbf16>
    %cst_20 = arith.constant dense<0.000000e+00> : vector<8x128xf32>
    %37 = tpu.matmul %36, %6, %cst_20 {dimension_numbers = #tpu.dot_dimension_numbers<[1], [0], [0], [1], [0, 0, 1, 1], [], []>} : vector<8x128xbf16>, vector<128x128xbf16>, vector<8x128xf32> -> vector<8x128xf32>
    %38 = arith.addf %34, %37 : vector<8x128xf32>
    %39 = math.tanh %38 : vector<8x128xf32>
    %40 = arith.mulf %27, %11 : vector<8x128xf32>
    %cst_21 = arith.constant 1.000000e+00 : f32
    %41 = vector.broadcast %cst_21 : f32 to vector<8x128xf32>
    %42 = arith.subf %41, %27 : vector<8x128xf32>
    %43 = arith.mulf %42, %39 : vector<8x128xf32>
    %44 = arith.addf %40, %43 : vector<8x128xf32>
    %45 = arith.truncf %44 : vector<8x128xf32> to vector<8x128xbf16>
    %cst_22 = arith.constant dense<0.000000e+00> : vector<8x128xf32>
    %46 = tpu.matmul %45, %7, %cst_22 {dimension_numbers = #tpu.dot_dimension_numbers<[1], [0], [0], [1], [0, 0, 1, 1], [], []>} : vector<8x128xbf16>, vector<128x128xbf16>, vector<8x128xf32> -> vector<8x128xf32>
    %47 = arith.addf %46, %10 : vector<8x128xf32>
    %48 = arith.index_cast %c0_i32_14 : i32 to index
    %c0_23 = arith.constant 0 : index
    %c0_24 = arith.constant 0 : index
    %49 = vector.load %arg10[%48, %c0_23, %c0_24] : memref<8x8x128xf32, #tpu.memory_space<vmem>>, vector<1x8x128xf32>
    %50 = vector.shape_cast %49 : vector<1x8x128xf32> to vector<8x128xf32>
    %51 = vector.shape_cast %47 : vector<8x128xf32> to vector<1x8x128xf32>
    tpu.vector_store %arg10[%48, %c0_23, %c0_24], %51 {strides = array<i32>} : memref<8x8x128xf32, #tpu.memory_space<vmem>>, vector<1x8x128xf32>,
    %c1_i32 = arith.constant 1 : i32
    %52 = arith.index_cast %c1_i32 : i32 to index
    %c0_25 = arith.constant 0 : index
    %c0_26 = arith.constant 0 : index
    %53 = vector.load %arg2[%52, %c0_25, %c0_26] : memref<8x8x128xbf16, #tpu.memory_space<vmem>>, vector<1x8x128xbf16>
    %54 = vector.shape_cast %53 : vector<1x8x128xbf16> to vector<8x128xbf16>
    %cst_27 = arith.constant dense<0.000000e+00> : vector<8x384xf32>
    %55 = tpu.matmul %54, %3, %cst_27 {dimension_numbers = #tpu.dot_dimension_numbers<[1], [0], [0], [1], [0, 0, 1, 1], [], []>} : vector<8x128xbf16>, vector<128x384xbf16>, vector<8x384xf32> -> vector<8x384xf32>
    %56 = vector.broadcast %4 : vector<1x384xf32> to vector<8x384xf32>
    %57 = arith.addf %55, %56 : vector<8x384xf32>
    %58 = vector.extract_strided_slice %57 {offsets = [0, 0], sizes = [8, 256], strides = [1, 1]} : vector<8x384xf32> to vector<8x256xf32>
    %59 = arith.truncf %44 : vector<8x128xf32> to vector<8x128xbf16>
    %cst_28 = arith.constant dense<0.000000e+00> : vector<8x256xf32>
    %60 = tpu.matmul %59, %5, %cst_28 {dimension_numbers = #tpu.dot_dimension_numbers<[1], [0], [0], [1], [0, 0, 1, 1], [], []>} : vector<8x128xbf16>, vector<128x256xbf16>, vector<8x256xf32> -> vector<8x256xf32>
    %61 = arith.addf %58, %60 : vector<8x256xf32>
    %62 = vector.extract_strided_slice %61 {offsets = [0, 0], sizes = [8, 128], strides = [1, 1]} : vector<8x256xf32> to vector<8x128xf32>
    %63 = arith.negf %62 : vector<8x128xf32>
    %64 = math.exp %63 : vector<8x128xf32>
    %cst_29 = arith.constant 1.000000e+00 : f32
    %65 = vector.broadcast %cst_29 : f32 to vector<8x128xf32>
    %66 = arith.addf %65, %64 : vector<8x128xf32>
    %67 = arith.divf %65, %66 : vector<8x128xf32>
    %68 = vector.extract_strided_slice %61 {offsets = [0, 128], sizes = [8, 128], strides = [1, 1]} : vector<8x256xf32> to vector<8x128xf32>
    %69 = arith.negf %68 : vector<8x128xf32>
    %70 = math.exp %69 : vector<8x128xf32>
    %cst_30 = arith.constant 1.000000e+00 : f32
    %71 = vector.broadcast %cst_30 : f32 to vector<8x128xf32>
    %72 = arith.addf %71, %70 : vector<8x128xf32>
    %73 = arith.divf %71, %72 : vector<8x128xf32>
    %74 = vector.extract_strided_slice %57 {offsets = [0, 256], sizes = [8, 128], strides = [1, 1]} : vector<8x384xf32> to vector<8x128xf32>
    %75 = arith.mulf %73, %44 : vector<8x128xf32>
    %76 = arith.truncf %75 : vector<8x128xf32> to vector<8x128xbf16>
    %cst_31 = arith.constant dense<0.000000e+00> : vector<8x128xf32>
    %77 = tpu.matmul %76, %6, %cst_31 {dimension_numbers = #tpu.dot_dimension_numbers<[1], [0], [0], [1], [0, 0, 1, 1], [], []>} : vector<8x128xbf16>, vector<128x128xbf16>, vector<8x128xf32> -> vector<8x128xf32>
    %78 = arith.addf %74, %77 : vector<8x128xf32>
    %79 = math.tanh %78 : vector<8x128xf32>
    %80 = arith.mulf %67, %44 : vector<8x128xf32>
    %cst_32 = arith.constant 1.000000e+00 : f32
    %81 = vector.broadcast %cst_32 : f32 to vector<8x128xf32>
    %82 = arith.subf %81, %67 : vector<8x128xf32>
    %83 = arith.mulf %82, %79 : vector<8x128xf32>
    %84 = arith.addf %80, %83 : vector<8x128xf32>
    %85 = arith.truncf %84 : vector<8x128xf32> to vector<8x128xbf16>
    %cst_33 = arith.constant dense<0.000000e+00> : vector<8x128xf32>
    %86 = tpu.matmul %85, %7, %cst_33 {dimension_numbers = #tpu.dot_dimension_numbers<[1], [0], [0], [1], [0, 0, 1, 1], [], []>} : vector<8x128xbf16>, vector<128x128xbf16>, vector<8x128xf32> -> vector<8x128xf32>
    %87 = arith.addf %86, %10 : vector<8x128xf32>
    %88 = arith.index_cast %c1_i32 : i32 to index
    %c0_34 = arith.constant 0 : index
    %c0_35 = arith.constant 0 : index
    %89 = vector.load %arg10[%88, %c0_34, %c0_35] : memref<8x8x128xf32, #tpu.memory_space<vmem>>, vector<1x8x128xf32>
    %90 = vector.shape_cast %89 : vector<1x8x128xf32> to vector<8x128xf32>
    %91 = vector.shape_cast %87 : vector<8x128xf32> to vector<1x8x128xf32>
    tpu.vector_store %arg10[%88, %c0_34, %c0_35], %91 {strides = array<i32>} : memref<8x8x128xf32, #tpu.memory_space<vmem>>, vector<1x8x128xf32>,
    %c2_i32 = arith.constant 2 : i32
    %92 = arith.index_cast %c2_i32 : i32 to index
    %c0_36 = arith.constant 0 : index
    %c0_37 = arith.constant 0 : index
    %93 = vector.load %arg2[%92, %c0_36, %c0_37] : memref<8x8x128xbf16, #tpu.memory_space<vmem>>, vector<1x8x128xbf16>
    %94 = vector.shape_cast %93 : vector<1x8x128xbf16> to vector<8x128xbf16>
    %cst_38 = arith.constant dense<0.000000e+00> : vector<8x384xf32>
    %95 = tpu.matmul %94, %3, %cst_38 {dimension_numbers = #tpu.dot_dimension_numbers<[1], [0], [0], [1], [0, 0, 1, 1], [], []>} : vector<8x128xbf16>, vector<128x384xbf16>, vector<8x384xf32> -> vector<8x384xf32>
    %96 = vector.broadcast %4 : vector<1x384xf32> to vector<8x384xf32>
    %97 = arith.addf %95, %96 : vector<8x384xf32>
    %98 = vector.extract_strided_slice %97 {offsets = [0, 0], sizes = [8, 256], strides = [1, 1]} : vector<8x384xf32> to vector<8x256xf32>
    %99 = arith.truncf %84 : vector<8x128xf32> to vector<8x128xbf16>
    %cst_39 = arith.constant dense<0.000000e+00> : vector<8x256xf32>
    %100 = tpu.matmul %99, %5, %cst_39 {dimension_numbers = #tpu.dot_dimension_numbers<[1], [0], [0], [1], [0, 0, 1, 1], [], []>} : vector<8x128xbf16>, vector<128x256xbf16>, vector<8x256xf32> -> vector<8x256xf32>
    %101 = arith.addf %98, %100 : vector<8x256xf32>
    %102 = vector.extract_strided_slice %101 {offsets = [0, 0], sizes = [8, 128], strides = [1, 1]} : vector<8x256xf32> to vector<8x128xf32>
    %103 = arith.negf %102 : vector<8x128xf32>
    %104 = math.exp %103 : vector<8x128xf32>
    %cst_40 = arith.constant 1.000000e+00 : f32
    %105 = vector.broadcast %cst_40 : f32 to vector<8x128xf32>
    %106 = arith.addf %105, %104 : vector<8x128xf32>
    %107 = arith.divf %105, %106 : vector<8x128xf32>
    %108 = vector.extract_strided_slice %101 {offsets = [0, 128], sizes = [8, 128], strides = [1, 1]} : vector<8x256xf32> to vector<8x128xf32>
    %109 = arith.negf %108 : vector<8x128xf32>
    %110 = math.exp %109 : vector<8x128xf32>
    %cst_41 = arith.constant 1.000000e+00 : f32
    %111 = vector.broadcast %cst_41 : f32 to vector<8x128xf32>
    %112 = arith.addf %111, %110 : vector<8x128xf32>
    %113 = arith.divf %111, %112 : vector<8x128xf32>
    %114 = vector.extract_strided_slice %97 {offsets = [0, 256], sizes = [8, 128], strides = [1, 1]} : vector<8x384xf32> to vector<8x128xf32>
    %115 = arith.mulf %113, %84 : vector<8x128xf32>
    %116 = arith.truncf %115 : vector<8x128xf32> to vector<8x128xbf16>
    %cst_42 = arith.constant dense<0.000000e+00> : vector<8x128xf32>
    %117 = tpu.matmul %116, %6, %cst_42 {dimension_numbers = #tpu.dot_dimension_numbers<[1], [0], [0], [1], [0, 0, 1, 1], [], []>} : vector<8x128xbf16>, vector<128x128xbf16>, vector<8x128xf32> -> vector<8x128xf32>
    %118 = arith.addf %114, %117 : vector<8x128xf32>
    %119 = math.tanh %118 : vector<8x128xf32>
    %120 = arith.mulf %107, %84 : vector<8x128xf32>
    %cst_43 = arith.constant 1.000000e+00 : f32
    %121 = vector.broadcast %cst_43 : f32 to vector<8x128xf32>
    %122 = arith.subf %121, %107 : vector<8x128xf32>
    %123 = arith.mulf %122, %119 : vector<8x128xf32>
    %124 = arith.addf %120, %123 : vector<8x128xf32>
    %125 = arith.truncf %124 : vector<8x128xf32> to vector<8x128xbf16>
    %cst_44 = arith.constant dense<0.000000e+00> : vector<8x128xf32>
    %126 = tpu.matmul %125, %7, %cst_44 {dimension_numbers = #tpu.dot_dimension_numbers<[1], [0], [0], [1], [0, 0, 1, 1], [], []>} : vector<8x128xbf16>, vector<128x128xbf16>, vector<8x128xf32> -> vector<8x128xf32>
    %127 = arith.addf %126, %10 : vector<8x128xf32>
    %128 = arith.index_cast %c2_i32 : i32 to index
    %c0_45 = arith.constant 0 : index
    %c0_46 = arith.constant 0 : index
    %129 = vector.load %arg10[%128, %c0_45, %c0_46] : memref<8x8x128xf32, #tpu.memory_space<vmem>>, vector<1x8x128xf32>
    %130 = vector.shape_cast %129 : vector<1x8x128xf32> to vector<8x128xf32>
    %131 = vector.shape_cast %127 : vector<8x128xf32> to vector<1x8x128xf32>
    tpu.vector_store %arg10[%128, %c0_45, %c0_46], %131 {strides = array<i32>} : memref<8x8x128xf32, #tpu.memory_space<vmem>>, vector<1x8x128xf32>,
    %c3_i32 = arith.constant 3 : i32
    %132 = arith.index_cast %c3_i32 : i32 to index
    %c0_47 = arith.constant 0 : index
    %c0_48 = arith.constant 0 : index
    %133 = vector.load %arg2[%132, %c0_47, %c0_48] : memref<8x8x128xbf16, #tpu.memory_space<vmem>>, vector<1x8x128xbf16>
    %134 = vector.shape_cast %133 : vector<1x8x128xbf16> to vector<8x128xbf16>
    %cst_49 = arith.constant dense<0.000000e+00> : vector<8x384xf32>
    %135 = tpu.matmul %134, %3, %cst_49 {dimension_numbers = #tpu.dot_dimension_numbers<[1], [0], [0], [1], [0, 0, 1, 1], [], []>} : vector<8x128xbf16>, vector<128x384xbf16>, vector<8x384xf32> -> vector<8x384xf32>
    %136 = vector.broadcast %4 : vector<1x384xf32> to vector<8x384xf32>
    %137 = arith.addf %135, %136 : vector<8x384xf32>
    %138 = vector.extract_strided_slice %137 {offsets = [0, 0], sizes = [8, 256], strides = [1, 1]} : vector<8x384xf32> to vector<8x256xf32>
    %139 = arith.truncf %124 : vector<8x128xf32> to vector<8x128xbf16>
    %cst_50 = arith.constant dense<0.000000e+00> : vector<8x256xf32>
    %140 = tpu.matmul %139, %5, %cst_50 {dimension_numbers = #tpu.dot_dimension_numbers<[1], [0], [0], [1], [0, 0, 1, 1], [], []>} : vector<8x128xbf16>, vector<128x256xbf16>, vector<8x256xf32> -> vector<8x256xf32>
    %141 = arith.addf %138, %140 : vector<8x256xf32>
    %142 = vector.extract_strided_slice %141 {offsets = [0, 0], sizes = [8, 128], strides = [1, 1]} : vector<8x256xf32> to vector<8x128xf32>
    %143 = arith.negf %142 : vector<8x128xf32>
    %144 = math.exp %143 : vector<8x128xf32>
    %cst_51 = arith.constant 1.000000e+00 : f32
    %145 = vector.broadcast %cst_51 : f32 to vector<8x128xf32>
    %146 = arith.addf %145, %144 : vector<8x128xf32>
    %147 = arith.divf %145, %146 : vector<8x128xf32>
    %148 = vector.extract_strided_slice %141 {offsets = [0, 128], sizes = [8, 128], strides = [1, 1]} : vector<8x256xf32> to vector<8x128xf32>
    %149 = arith.negf %148 : vector<8x128xf32>
    %150 = math.exp %149 : vector<8x128xf32>
    %cst_52 = arith.constant 1.000000e+00 : f32
    %151 = vector.broadcast %cst_52 : f32 to vector<8x128xf32>
    %152 = arith.addf %151, %150 : vector<8x128xf32>
    %153 = arith.divf %151, %152 : vector<8x128xf32>
    %154 = vector.extract_strided_slice %137 {offsets = [0, 256], sizes = [8, 128], strides = [1, 1]} : vector<8x384xf32> to vector<8x128xf32>
    %155 = arith.mulf %153, %124 : vector<8x128xf32>
    %156 = arith.truncf %155 : vector<8x128xf32> to vector<8x128xbf16>
    %cst_53 = arith.constant dense<0.000000e+00> : vector<8x128xf32>
    %157 = tpu.matmul %156, %6, %cst_53 {dimension_numbers = #tpu.dot_dimension_numbers<[1], [0], [0], [1], [0, 0, 1, 1], [], []>} : vector<8x128xbf16>, vector<128x128xbf16>, vector<8x128xf32> -> vector<8x128xf32>
    %158 = arith.addf %154, %157 : vector<8x128xf32>
    %159 = math.tanh %158 : vector<8x128xf32>
    %160 = arith.mulf %147, %124 : vector<8x128xf32>
    %cst_54 = arith.constant 1.000000e+00 : f32
    %161 = vector.broadcast %cst_54 : f32 to vector<8x128xf32>
    %162 = arith.subf %161, %147 : vector<8x128xf32>
    %163 = arith.mulf %162, %159 : vector<8x128xf32>
    %164 = arith.addf %160, %163 : vector<8x128xf32>
    %165 = arith.truncf %164 : vector<8x128xf32> to vector<8x128xbf16>
    %cst_55 = arith.constant dense<0.000000e+00> : vector<8x128xf32>
    %166 = tpu.matmul %165, %7, %cst_55 {dimension_numbers = #tpu.dot_dimension_numbers<[1], [0], [0], [1], [0, 0, 1, 1], [], []>} : vector<8x128xbf16>, vector<128x128xbf16>, vector<8x128xf32> -> vector<8x128xf32>
    %167 = arith.addf %166, %10 : vector<8x128xf32>
    %168 = arith.index_cast %c3_i32 : i32 to index
    %c0_56 = arith.constant 0 : index
    %c0_57 = arith.constant 0 : index
    %169 = vector.load %arg10[%168, %c0_56, %c0_57] : memref<8x8x128xf32, #tpu.memory_space<vmem>>, vector<1x8x128xf32>
    %170 = vector.shape_cast %169 : vector<1x8x128xf32> to vector<8x128xf32>
    %171 = vector.shape_cast %167 : vector<8x128xf32> to vector<1x8x128xf32>
    tpu.vector_store %arg10[%168, %c0_56, %c0_57], %171 {strides = array<i32>} : memref<8x8x128xf32, #tpu.memory_space<vmem>>, vector<1x8x128xf32>,
    %c4_i32 = arith.constant 4 : i32
    %172 = arith.index_cast %c4_i32 : i32 to index
    %c0_58 = arith.constant 0 : index
    %c0_59 = arith.constant 0 : index
    %173 = vector.load %arg2[%172, %c0_58, %c0_59] : memref<8x8x128xbf16, #tpu.memory_space<vmem>>, vector<1x8x128xbf16>
    %174 = vector.shape_cast %173 : vector<1x8x128xbf16> to vector<8x128xbf16>
    %cst_60 = arith.constant dense<0.000000e+00> : vector<8x384xf32>
    %175 = tpu.matmul %174, %3, %cst_60 {dimension_numbers = #tpu.dot_dimension_numbers<[1], [0], [0], [1], [0, 0, 1, 1], [], []>} : vector<8x128xbf16>, vector<128x384xbf16>, vector<8x384xf32> -> vector<8x384xf32>
    %176 = vector.broadcast %4 : vector<1x384xf32> to vector<8x384xf32>
    %177 = arith.addf %175, %176 : vector<8x384xf32>
    %178 = vector.extract_strided_slice %177 {offsets = [0, 0], sizes = [8, 256], strides = [1, 1]} : vector<8x384xf32> to vector<8x256xf32>
    %179 = arith.truncf %164 : vector<8x128xf32> to vector<8x128xbf16>
    %cst_61 = arith.constant dense<0.000000e+00> : vector<8x256xf32>
    %180 = tpu.matmul %179, %5, %cst_61 {dimension_numbers = #tpu.dot_dimension_numbers<[1], [0], [0], [1], [0, 0, 1, 1], [], []>} : vector<8x128xbf16>, vector<128x256xbf16>, vector<8x256xf32> -> vector<8x256xf32>
    %181 = arith.addf %178, %180 : vector<8x256xf32>
    %182 = vector.extract_strided_slice %181 {offsets = [0, 0], sizes = [8, 128], strides = [1, 1]} : vector<8x256xf32> to vector<8x128xf32>
    %183 = arith.negf %182 : vector<8x128xf32>
    %184 = math.exp %183 : vector<8x128xf32>
    %cst_62 = arith.constant 1.000000e+00 : f32
    %185 = vector.broadcast %cst_62 : f32 to vector<8x128xf32>
    %186 = arith.addf %185, %184 : vector<8x128xf32>
    %187 = arith.divf %185, %186 : vector<8x128xf32>
    %188 = vector.extract_strided_slice %181 {offsets = [0, 128], sizes = [8, 128], strides = [1, 1]} : vector<8x256xf32> to vector<8x128xf32>
    %189 = arith.negf %188 : vector<8x128xf32>
    %190 = math.exp %189 : vector<8x128xf32>
    %cst_63 = arith.constant 1.000000e+00 : f32
    %191 = vector.broadcast %cst_63 : f32 to vector<8x128xf32>
    %192 = arith.addf %191, %190 : vector<8x128xf32>
    %193 = arith.divf %191, %192 : vector<8x128xf32>
    %194 = vector.extract_strided_slice %177 {offsets = [0, 256], sizes = [8, 128], strides = [1, 1]} : vector<8x384xf32> to vector<8x128xf32>
    %195 = arith.mulf %193, %164 : vector<8x128xf32>
    %196 = arith.truncf %195 : vector<8x128xf32> to vector<8x128xbf16>
    %cst_64 = arith.constant dense<0.000000e+00> : vector<8x128xf32>
    %197 = tpu.matmul %196, %6, %cst_64 {dimension_numbers = #tpu.dot_dimension_numbers<[1], [0], [0], [1], [0, 0, 1, 1], [], []>} : vector<8x128xbf16>, vector<128x128xbf16>, vector<8x128xf32> -> vector<8x128xf32>
    %198 = arith.addf %194, %197 : vector<8x128xf32>
    %199 = math.tanh %198 : vector<8x128xf32>
    %200 = arith.mulf %187, %164 : vector<8x128xf32>
    %cst_65 = arith.constant 1.000000e+00 : f32
    %201 = vector.broadcast %cst_65 : f32 to vector<8x128xf32>
    %202 = arith.subf %201, %187 : vector<8x128xf32>
    %203 = arith.mulf %202, %199 : vector<8x128xf32>
    %204 = arith.addf %200, %203 : vector<8x128xf32>
    %205 = arith.truncf %204 : vector<8x128xf32> to vector<8x128xbf16>
    %cst_66 = arith.constant dense<0.000000e+00> : vector<8x128xf32>
    %206 = tpu.matmul %205, %7, %cst_66 {dimension_numbers = #tpu.dot_dimension_numbers<[1], [0], [0], [1], [0, 0, 1, 1], [], []>} : vector<8x128xbf16>, vector<128x128xbf16>, vector<8x128xf32> -> vector<8x128xf32>
    %207 = arith.addf %206, %10 : vector<8x128xf32>
    %208 = arith.index_cast %c4_i32 : i32 to index
    %c0_67 = arith.constant 0 : index
    %c0_68 = arith.constant 0 : index
    %209 = vector.load %arg10[%208, %c0_67, %c0_68] : memref<8x8x128xf32, #tpu.memory_space<vmem>>, vector<1x8x128xf32>
    %210 = vector.shape_cast %209 : vector<1x8x128xf32> to vector<8x128xf32>
    %211 = vector.shape_cast %207 : vector<8x128xf32> to vector<1x8x128xf32>
    tpu.vector_store %arg10[%208, %c0_67, %c0_68], %211 {strides = array<i32>} : memref<8x8x128xf32, #tpu.memory_space<vmem>>, vector<1x8x128xf32>,
    %c5_i32 = arith.constant 5 : i32
    %212 = arith.index_cast %c5_i32 : i32 to index
    %c0_69 = arith.constant 0 : index
    %c0_70 = arith.constant 0 : index
    %213 = vector.load %arg2[%212, %c0_69, %c0_70] : memref<8x8x128xbf16, #tpu.memory_space<vmem>>, vector<1x8x128xbf16>
    %214 = vector.shape_cast %213 : vector<1x8x128xbf16> to vector<8x128xbf16>
    %cst_71 = arith.constant dense<0.000000e+00> : vector<8x384xf32>
    %215 = tpu.matmul %214, %3, %cst_71 {dimension_numbers = #tpu.dot_dimension_numbers<[1], [0], [0], [1], [0, 0, 1, 1], [], []>} : vector<8x128xbf16>, vector<128x384xbf16>, vector<8x384xf32> -> vector<8x384xf32>
    %216 = vector.broadcast %4 : vector<1x384xf32> to vector<8x384xf32>
    %217 = arith.addf %215, %216 : vector<8x384xf32>
    %218 = vector.extract_strided_slice %217 {offsets = [0, 0], sizes = [8, 256], strides = [1, 1]} : vector<8x384xf32> to vector<8x256xf32>
    %219 = arith.truncf %204 : vector<8x128xf32> to vector<8x128xbf16>
    %cst_72 = arith.constant dense<0.000000e+00> : vector<8x256xf32>
    %220 = tpu.matmul %219, %5, %cst_72 {dimension_numbers = #tpu.dot_dimension_numbers<[1], [0], [0], [1], [0, 0, 1, 1], [], []>} : vector<8x128xbf16>, vector<128x256xbf16>, vector<8x256xf32> -> vector<8x256xf32>
    %221 = arith.addf %218, %220 : vector<8x256xf32>
    %222 = vector.extract_strided_slice %221 {offsets = [0, 0], sizes = [8, 128], strides = [1, 1]} : vector<8x256xf32> to vector<8x128xf32>
    %223 = arith.negf %222 : vector<8x128xf32>
    %224 = math.exp %223 : vector<8x128xf32>
    %cst_73 = arith.constant 1.000000e+00 : f32
    %225 = vector.broadcast %cst_73 : f32 to vector<8x128xf32>
    %226 = arith.addf %225, %224 : vector<8x128xf32>
    %227 = arith.divf %225, %226 : vector<8x128xf32>
    %228 = vector.extract_strided_slice %221 {offsets = [0, 128], sizes = [8, 128], strides = [1, 1]} : vector<8x256xf32> to vector<8x128xf32>
    %229 = arith.negf %228 : vector<8x128xf32>
    %230 = math.exp %229 : vector<8x128xf32>
    %cst_74 = arith.constant 1.000000e+00 : f32
    %231 = vector.broadcast %cst_74 : f32 to vector<8x128xf32>
    %232 = arith.addf %231, %230 : vector<8x128xf32>
    %233 = arith.divf %231, %232 : vector<8x128xf32>
    %234 = vector.extract_strided_slice %217 {offsets = [0, 256], sizes = [8, 128], strides = [1, 1]} : vector<8x384xf32> to vector<8x128xf32>
    %235 = arith.mulf %233, %204 : vector<8x128xf32>
    %236 = arith.truncf %235 : vector<8x128xf32> to vector<8x128xbf16>
    %cst_75 = arith.constant dense<0.000000e+00> : vector<8x128xf32>
    %237 = tpu.matmul %236, %6, %cst_75 {dimension_numbers = #tpu.dot_dimension_numbers<[1], [0], [0], [1], [0, 0, 1, 1], [], []>} : vector<8x128xbf16>, vector<128x128xbf16>, vector<8x128xf32> -> vector<8x128xf32>
    %238 = arith.addf %234, %237 : vector<8x128xf32>
    %239 = math.tanh %238 : vector<8x128xf32>
    %240 = arith.mulf %227, %204 : vector<8x128xf32>
    %cst_76 = arith.constant 1.000000e+00 : f32
    %241 = vector.broadcast %cst_76 : f32 to vector<8x128xf32>
    %242 = arith.subf %241, %227 : vector<8x128xf32>
    %243 = arith.mulf %242, %239 : vector<8x128xf32>
    %244 = arith.addf %240, %243 : vector<8x128xf32>
    %245 = arith.truncf %244 : vector<8x128xf32> to vector<8x128xbf16>
    %cst_77 = arith.constant dense<0.000000e+00> : vector<8x128xf32>
    %246 = tpu.matmul %245, %7, %cst_77 {dimension_numbers = #tpu.dot_dimension_numbers<[1], [0], [0], [1], [0, 0, 1, 1], [], []>} : vector<8x128xbf16>, vector<128x128xbf16>, vector<8x128xf32> -> vector<8x128xf32>
    %247 = arith.addf %246, %10 : vector<8x128xf32>
    %248 = arith.index_cast %c5_i32 : i32 to index
    %c0_78 = arith.constant 0 : index
    %c0_79 = arith.constant 0 : index
    %249 = vector.load %arg10[%248, %c0_78, %c0_79] : memref<8x8x128xf32, #tpu.memory_space<vmem>>, vector<1x8x128xf32>
    %250 = vector.shape_cast %249 : vector<1x8x128xf32> to vector<8x128xf32>
    %251 = vector.shape_cast %247 : vector<8x128xf32> to vector<1x8x128xf32>
    tpu.vector_store %arg10[%248, %c0_78, %c0_79], %251 {strides = array<i32>} : memref<8x8x128xf32, #tpu.memory_space<vmem>>, vector<1x8x128xf32>,
    %c6_i32 = arith.constant 6 : i32
    %252 = arith.index_cast %c6_i32 : i32 to index
    %c0_80 = arith.constant 0 : index
    %c0_81 = arith.constant 0 : index
    %253 = vector.load %arg2[%252, %c0_80, %c0_81] : memref<8x8x128xbf16, #tpu.memory_space<vmem>>, vector<1x8x128xbf16>
    %254 = vector.shape_cast %253 : vector<1x8x128xbf16> to vector<8x128xbf16>
    %cst_82 = arith.constant dense<0.000000e+00> : vector<8x384xf32>
    %255 = tpu.matmul %254, %3, %cst_82 {dimension_numbers = #tpu.dot_dimension_numbers<[1], [0], [0], [1], [0, 0, 1, 1], [], []>} : vector<8x128xbf16>, vector<128x384xbf16>, vector<8x384xf32> -> vector<8x384xf32>
    %256 = vector.broadcast %4 : vector<1x384xf32> to vector<8x384xf32>
    %257 = arith.addf %255, %256 : vector<8x384xf32>
    %258 = vector.extract_strided_slice %257 {offsets = [0, 0], sizes = [8, 256], strides = [1, 1]} : vector<8x384xf32> to vector<8x256xf32>
    %259 = arith.truncf %244 : vector<8x128xf32> to vector<8x128xbf16>
    %cst_83 = arith.constant dense<0.000000e+00> : vector<8x256xf32>
    %260 = tpu.matmul %259, %5, %cst_83 {dimension_numbers = #tpu.dot_dimension_numbers<[1], [0], [0], [1], [0, 0, 1, 1], [], []>} : vector<8x128xbf16>, vector<128x256xbf16>, vector<8x256xf32> -> vector<8x256xf32>
    %261 = arith.addf %258, %260 : vector<8x256xf32>
    %262 = vector.extract_strided_slice %261 {offsets = [0, 0], sizes = [8, 128], strides = [1, 1]} : vector<8x256xf32> to vector<8x128xf32>
    %263 = arith.negf %262 : vector<8x128xf32>
    %264 = math.exp %263 : vector<8x128xf32>
    %cst_84 = arith.constant 1.000000e+00 : f32
    %265 = vector.broadcast %cst_84 : f32 to vector<8x128xf32>
    %266 = arith.addf %265, %264 : vector<8x128xf32>
    %267 = arith.divf %265, %266 : vector<8x128xf32>
    %268 = vector.extract_strided_slice %261 {offsets = [0, 128], sizes = [8, 128], strides = [1, 1]} : vector<8x256xf32> to vector<8x128xf32>
    %269 = arith.negf %268 : vector<8x128xf32>
    %270 = math.exp %269 : vector<8x128xf32>
    %cst_85 = arith.constant 1.000000e+00 : f32
    %271 = vector.broadcast %cst_85 : f32 to vector<8x128xf32>
    %272 = arith.addf %271, %270 : vector<8x128xf32>
    %273 = arith.divf %271, %272 : vector<8x128xf32>
    %274 = vector.extract_strided_slice %257 {offsets = [0, 256], sizes = [8, 128], strides = [1, 1]} : vector<8x384xf32> to vector<8x128xf32>
    %275 = arith.mulf %273, %244 : vector<8x128xf32>
    %276 = arith.truncf %275 : vector<8x128xf32> to vector<8x128xbf16>
    %cst_86 = arith.constant dense<0.000000e+00> : vector<8x128xf32>
    %277 = tpu.matmul %276, %6, %cst_86 {dimension_numbers = #tpu.dot_dimension_numbers<[1], [0], [0], [1], [0, 0, 1, 1], [], []>} : vector<8x128xbf16>, vector<128x128xbf16>, vector<8x128xf32> -> vector<8x128xf32>
    %278 = arith.addf %274, %277 : vector<8x128xf32>
    %279 = math.tanh %278 : vector<8x128xf32>
    %280 = arith.mulf %267, %244 : vector<8x128xf32>
    %cst_87 = arith.constant 1.000000e+00 : f32
    %281 = vector.broadcast %cst_87 : f32 to vector<8x128xf32>
    %282 = arith.subf %281, %267 : vector<8x128xf32>
    %283 = arith.mulf %282, %279 : vector<8x128xf32>
    %284 = arith.addf %280, %283 : vector<8x128xf32>
    %285 = arith.truncf %284 : vector<8x128xf32> to vector<8x128xbf16>
    %cst_88 = arith.constant dense<0.000000e+00> : vector<8x128xf32>
    %286 = tpu.matmul %285, %7, %cst_88 {dimension_numbers = #tpu.dot_dimension_numbers<[1], [0], [0], [1], [0, 0, 1, 1], [], []>} : vector<8x128xbf16>, vector<128x128xbf16>, vector<8x128xf32> -> vector<8x128xf32>
    %287 = arith.addf %286, %10 : vector<8x128xf32>
    %288 = arith.index_cast %c6_i32 : i32 to index
    %c0_89 = arith.constant 0 : index
    %c0_90 = arith.constant 0 : index
    %289 = vector.load %arg10[%288, %c0_89, %c0_90] : memref<8x8x128xf32, #tpu.memory_space<vmem>>, vector<1x8x128xf32>
    %290 = vector.shape_cast %289 : vector<1x8x128xf32> to vector<8x128xf32>
    %291 = vector.shape_cast %287 : vector<8x128xf32> to vector<1x8x128xf32>
    tpu.vector_store %arg10[%288, %c0_89, %c0_90], %291 {strides = array<i32>} : memref<8x8x128xf32, #tpu.memory_space<vmem>>, vector<1x8x128xf32>,
    %c7_i32 = arith.constant 7 : i32
    %292 = arith.index_cast %c7_i32 : i32 to index
    %c0_91 = arith.constant 0 : index
    %c0_92 = arith.constant 0 : index
    %293 = vector.load %arg2[%292, %c0_91, %c0_92] : memref<8x8x128xbf16, #tpu.memory_space<vmem>>, vector<1x8x128xbf16>
    %294 = vector.shape_cast %293 : vector<1x8x128xbf16> to vector<8x128xbf16>
    %cst_93 = arith.constant dense<0.000000e+00> : vector<8x384xf32>
    %295 = tpu.matmul %294, %3, %cst_93 {dimension_numbers = #tpu.dot_dimension_numbers<[1], [0], [0], [1], [0, 0, 1, 1], [], []>} : vector<8x128xbf16>, vector<128x384xbf16>, vector<8x384xf32> -> vector<8x384xf32>
    %296 = vector.broadcast %4 : vector<1x384xf32> to vector<8x384xf32>
    %297 = arith.addf %295, %296 : vector<8x384xf32>
    %298 = vector.extract_strided_slice %297 {offsets = [0, 0], sizes = [8, 256], strides = [1, 1]} : vector<8x384xf32> to vector<8x256xf32>
    %299 = arith.truncf %284 : vector<8x128xf32> to vector<8x128xbf16>
    %cst_94 = arith.constant dense<0.000000e+00> : vector<8x256xf32>
    %300 = tpu.matmul %299, %5, %cst_94 {dimension_numbers = #tpu.dot_dimension_numbers<[1], [0], [0], [1], [0, 0, 1, 1], [], []>} : vector<8x128xbf16>, vector<128x256xbf16>, vector<8x256xf32> -> vector<8x256xf32>
    %301 = arith.addf %298, %300 : vector<8x256xf32>
    %302 = vector.extract_strided_slice %301 {offsets = [0, 0], sizes = [8, 128], strides = [1, 1]} : vector<8x256xf32> to vector<8x128xf32>
    %303 = arith.negf %302 : vector<8x128xf32>
    %304 = math.exp %303 : vector<8x128xf32>
    %cst_95 = arith.constant 1.000000e+00 : f32
    %305 = vector.broadcast %cst_95 : f32 to vector<8x128xf32>
    %306 = arith.addf %305, %304 : vector<8x128xf32>
    %307 = arith.divf %305, %306 : vector<8x128xf32>
    %308 = vector.extract_strided_slice %301 {offsets = [0, 128], sizes = [8, 128], strides = [1, 1]} : vector<8x256xf32> to vector<8x128xf32>
    %309 = arith.negf %308 : vector<8x128xf32>
    %310 = math.exp %309 : vector<8x128xf32>
    %cst_96 = arith.constant 1.000000e+00 : f32
    %311 = vector.broadcast %cst_96 : f32 to vector<8x128xf32>
    %312 = arith.addf %311, %310 : vector<8x128xf32>
    %313 = arith.divf %311, %312 : vector<8x128xf32>
    %314 = vector.extract_strided_slice %297 {offsets = [0, 256], sizes = [8, 128], strides = [1, 1]} : vector<8x384xf32> to vector<8x128xf32>
    %315 = arith.mulf %313, %284 : vector<8x128xf32>
    %316 = arith.truncf %315 : vector<8x128xf32> to vector<8x128xbf16>
    %cst_97 = arith.constant dense<0.000000e+00> : vector<8x128xf32>
    %317 = tpu.matmul %316, %6, %cst_97 {dimension_numbers = #tpu.dot_dimension_numbers<[1], [0], [0], [1], [0, 0, 1, 1], [], []>} : vector<8x128xbf16>, vector<128x128xbf16>, vector<8x128xf32> -> vector<8x128xf32>
    %318 = arith.addf %314, %317 : vector<8x128xf32>
    %319 = math.tanh %318 : vector<8x128xf32>
    %320 = arith.mulf %307, %284 : vector<8x128xf32>
    %cst_98 = arith.constant 1.000000e+00 : f32
    %321 = vector.broadcast %cst_98 : f32 to vector<8x128xf32>
    %322 = arith.subf %321, %307 : vector<8x128xf32>
    %323 = arith.mulf %322, %319 : vector<8x128xf32>
    %324 = arith.addf %320, %323 : vector<8x128xf32>
    %325 = arith.truncf %324 : vector<8x128xf32> to vector<8x128xbf16>
    %cst_99 = arith.constant dense<0.000000e+00> : vector<8x128xf32>
    %326 = tpu.matmul %325, %7, %cst_99 {dimension_numbers = #tpu.dot_dimension_numbers<[1], [0], [0], [1], [0, 0, 1, 1], [], []>} : vector<8x128xbf16>, vector<128x128xbf16>, vector<8x128xf32> -> vector<8x128xf32>
    %327 = arith.addf %326, %10 : vector<8x128xf32>
    %328 = arith.index_cast %c7_i32 : i32 to index
    %c0_100 = arith.constant 0 : index
    %c0_101 = arith.constant 0 : index
    %329 = vector.load %arg10[%328, %c0_100, %c0_101] : memref<8x8x128xf32, #tpu.memory_space<vmem>>, vector<1x8x128xf32>
    %330 = vector.shape_cast %329 : vector<1x8x128xf32> to vector<8x128xf32>
    %331 = vector.shape_cast %327 : vector<8x128xf32> to vector<1x8x128xf32>
    tpu.vector_store %arg10[%328, %c0_100, %c0_101], %331 {strides = array<i32>} : memref<8x8x128xf32, #tpu.memory_space<vmem>>, vector<1x8x128xf32>,
    %c8_i32 = arith.constant 8 : i32
    %c0_i32_102 = arith.constant 0 : i32
    %332 = arith.cmpi slt, %arg1, %c0_i32_102 : i32
    %333 = arith.extui %332 : i1 to i32
    %c0_i32_103 = arith.constant 0 : i32
    %334 = arith.cmpi ne, %333, %c0_i32_103 : i32
    scf.if %334 {
      %c0_106 = arith.constant 0 : index
      %c0_107 = arith.constant 0 : index
      %338 = vector.load %arg12[%c0_106, %c0_107] : memref<8x128xf32, #tpu.memory_space<vmem>>, vector<8x128xf32>
      tpu.vector_store %arg12[%c0_106, %c0_107], %324 {strides = array<i32>} : memref<8x128xf32, #tpu.memory_space<vmem>>, vector<8x128xf32>,
    } else {
    }
    %c0_i32_104 = arith.constant 0 : i32
    %335 = arith.cmpi eq, %arg1, %c0_i32_104 : i32
    %336 = arith.extui %335 : i1 to i32
    %c0_i32_105 = arith.constant 0 : i32
    %337 = arith.cmpi ne, %336, %c0_i32_105 : i32
    scf.if %337 {
      %c0_106 = arith.constant 0 : index
      %c0_107 = arith.constant 0 : index
      %338 = vector.load %arg11[%c0_106, %c0_107] : memref<8x128xf32, #tpu.memory_space<vmem>>, vector<8x128xf32>
      tpu.vector_store %arg11[%c0_106, %c0_107], %324 {strides = array<i32>} : memref<8x128xf32, #tpu.memory_space<vmem>>, vector<8x128xf32>,
    } else {
    }
    return
  }
  func.func @transform_0(%arg0: i32, %arg1: i32) -> (i32, i32, i32) {
    %c0_i32 = arith.constant 0 : i32
    %c0_i32_0 = arith.constant 0 : i32
    return %arg1, %arg0, %c0_i32 : i32, i32, i32
  }
  func.func @transform_1(%arg0: i32, %arg1: i32) -> (i32, i32) {
    %c0_i32 = arith.constant 0 : i32
    %c0_i32_0 = arith.constant 0 : i32
    return %arg0, %c0_i32 : i32, i32
  }
  func.func @transform_2(%arg0: i32, %arg1: i32) -> (i32, i32) {
    %c0_i32 = arith.constant 0 : i32
    %c0_i32_0 = arith.constant 0 : i32
    %c0_i32_1 = arith.constant 0 : i32
    return %c0_i32, %c0_i32_0 : i32, i32
  }
  func.func @transform_3(%arg0: i32, %arg1: i32) -> (i32, i32) {
    %c0_i32 = arith.constant 0 : i32
    %c0_i32_0 = arith.constant 0 : i32
    %c0_i32_1 = arith.constant 0 : i32
    return %c0_i32, %c0_i32_0 : i32, i32
  }
  func.func @transform_4(%arg0: i32, %arg1: i32) -> (i32, i32) {
    %c0_i32 = arith.constant 0 : i32
    %c0_i32_0 = arith.constant 0 : i32
    %c0_i32_1 = arith.constant 0 : i32
    return %c0_i32, %c0_i32_0 : i32, i32
  }
  func.func @transform_5(%arg0: i32, %arg1: i32) -> (i32, i32) {
    %c0_i32 = arith.constant 0 : i32
    %c0_i32_0 = arith.constant 0 : i32
    %c0_i32_1 = arith.constant 0 : i32
    return %c0_i32, %c0_i32_0 : i32, i32
  }
  func.func @transform_6(%arg0: i32, %arg1: i32) -> (i32, i32) {
    %c0_i32 = arith.constant 0 : i32
    %c0_i32_0 = arith.constant 0 : i32
    %c0_i32_1 = arith.constant 0 : i32
    return %c0_i32, %c0_i32_0 : i32, i32
  }
  func.func @transform_7(%arg0: i32, %arg1: i32) -> (i32, i32) {
    %c0_i32 = arith.constant 0 : i32
    %c0_i32_0 = arith.constant 0 : i32
    %c0_i32_1 = arith.constant 0 : i32
    return %c0_i32, %c0_i32_0 : i32, i32
  }
  func.func @transform_8(%arg0: i32, %arg1: i32) -> (i32, i32, i32) {
    %c0_i32 = arith.constant 0 : i32
    %c0_i32_0 = arith.constant 0 : i32
    return %arg1, %arg0, %c0_i32 : i32, i32, i32
  }
  func.func @transform_9(%arg0: i32, %arg1: i32) -> (i32, i32) {
    %c0_i32 = arith.constant 0 : i32
    %c0_i32_0 = arith.constant 0 : i32
    return %arg0, %c0_i32 : i32, i32
  }
}

module attributes {stable_mosaic.version = 11 : i64} {
  func.func @_gru_layer_kernel(%arg0: i32, %arg1: i32, %arg2: memref<8x8x128xbf16, #tpu.memory_space<vmem>>, %arg3: memref<8x128xf32, #tpu.memory_space<vmem>>, %arg4: memref<128x384xbf16, #tpu.memory_space<vmem>>, %arg5: memref<1x384xf32, #tpu.memory_space<vmem>>, %arg6: memref<128x256xbf16, #tpu.memory_space<vmem>>, %arg7: memref<128x128xbf16, #tpu.memory_space<vmem>>, %arg8: memref<8x8x128xbf16, #tpu.memory_space<vmem>>, %arg9: memref<8x128xf32, #tpu.memory_space<vmem>>, %arg10: memref<8x128xf32, #tpu.memory_space<vmem>>) attributes {dimension_semantics = [#tpu.dimension_semantics<parallel>, #tpu.dimension_semantics<arbitrary>], iteration_bounds = array<i64: 1, 1>, scalar_prefetch = 0 : i64, scratch_operands = 1 : i64, tpu.core_type = #tpu.core_type<tc>, window_params = [{transform_indices = @transform_0, window_bounds = array<i64: 8, 8, 128>}, {transform_indices = @transform_1, window_bounds = array<i64: 8, 128>}, {pipeline_mode = #tpu.pipeline_mode<synchronous>, transform_indices = @transform_2, window_bounds = array<i64: 128, 384>}, {pipeline_mode = #tpu.pipeline_mode<synchronous>, transform_indices = @transform_3, window_bounds = array<i64: 1, 384>}, {pipeline_mode = #tpu.pipeline_mode<synchronous>, transform_indices = @transform_4, window_bounds = array<i64: 128, 256>}, {pipeline_mode = #tpu.pipeline_mode<synchronous>, transform_indices = @transform_5, window_bounds = array<i64: 128, 128>}, {transform_indices = @transform_6, window_bounds = array<i64: 8, 8, 128>}, {transform_indices = @transform_7, window_bounds = array<i64: 8, 128>}]} {
    %c0_i32 = arith.constant 0 : i32
    %0 = arith.cmpi eq, %arg1, %c0_i32 : i32
    %1 = arith.extui %0 : i1 to i32
    %c0_i32_0 = arith.constant 0 : i32
    %2 = arith.cmpi ne, %1, %c0_i32_0 : i32
    scf.if %2 {
      %c0_94 = arith.constant 0 : index
      %c0_95 = arith.constant 0 : index
      %318 = vector.load %arg3[%c0_94, %c0_95] : memref<8x128xf32, #tpu.memory_space<vmem>>, vector<8x128xf32>
      %c0_96 = arith.constant 0 : index
      %c0_97 = arith.constant 0 : index
      %319 = vector.load %arg10[%c0_96, %c0_97] : memref<8x128xf32, #tpu.memory_space<vmem>>, vector<8x128xf32>
      tpu.vector_store %arg10[%c0_96, %c0_97], %318 {strides = array<i32>} : memref<8x128xf32, #tpu.memory_space<vmem>>, vector<8x128xf32>,
    } else {
    }
    %c0 = arith.constant 0 : index
    %c0_1 = arith.constant 0 : index
    %3 = vector.load %arg4[%c0, %c0_1] : memref<128x384xbf16, #tpu.memory_space<vmem>>, vector<128x384xbf16>
    %c0_2 = arith.constant 0 : index
    %c0_3 = arith.constant 0 : index
    %4 = vector.load %arg5[%c0_2, %c0_3] : memref<1x384xf32, #tpu.memory_space<vmem>>, vector<1x384xf32>
    %c0_4 = arith.constant 0 : index
    %c0_5 = arith.constant 0 : index
    %5 = vector.load %arg6[%c0_4, %c0_5] : memref<128x256xbf16, #tpu.memory_space<vmem>>, vector<128x256xbf16>
    %c0_6 = arith.constant 0 : index
    %c0_7 = arith.constant 0 : index
    %6 = vector.load %arg7[%c0_6, %c0_7] : memref<128x128xbf16, #tpu.memory_space<vmem>>, vector<128x128xbf16>
    %c0_8 = arith.constant 0 : index
    %c0_9 = arith.constant 0 : index
    %7 = vector.load %arg10[%c0_8, %c0_9] : memref<8x128xf32, #tpu.memory_space<vmem>>, vector<8x128xf32>
    %c0_i32_10 = arith.constant 0 : i32
    %8 = arith.index_cast %c0_i32_10 : i32 to index
    %c0_11 = arith.constant 0 : index
    %c0_12 = arith.constant 0 : index
    %9 = vector.load %arg2[%8, %c0_11, %c0_12] : memref<8x8x128xbf16, #tpu.memory_space<vmem>>, vector<1x8x128xbf16>
    %10 = vector.shape_cast %9 : vector<1x8x128xbf16> to vector<8x128xbf16>
    %cst = arith.constant dense<0.000000e+00> : vector<8x384xf32>
    %11 = tpu.matmul %10, %3, %cst {dimension_numbers = #tpu.dot_dimension_numbers<[1], [0], [0], [1], [0, 0, 1, 1], [], []>} : vector<8x128xbf16>, vector<128x384xbf16>, vector<8x384xf32> -> vector<8x384xf32>
    %12 = vector.broadcast %4 : vector<1x384xf32> to vector<8x384xf32>
    %13 = arith.addf %11, %12 : vector<8x384xf32>
    %14 = vector.extract_strided_slice %13 {offsets = [0, 0], sizes = [8, 256], strides = [1, 1]} : vector<8x384xf32> to vector<8x256xf32>
    %15 = arith.truncf %7 : vector<8x128xf32> to vector<8x128xbf16>
    %cst_13 = arith.constant dense<0.000000e+00> : vector<8x256xf32>
    %16 = tpu.matmul %15, %5, %cst_13 {dimension_numbers = #tpu.dot_dimension_numbers<[1], [0], [0], [1], [0, 0, 1, 1], [], []>} : vector<8x128xbf16>, vector<128x256xbf16>, vector<8x256xf32> -> vector<8x256xf32>
    %17 = arith.addf %14, %16 : vector<8x256xf32>
    %18 = vector.extract_strided_slice %17 {offsets = [0, 0], sizes = [8, 128], strides = [1, 1]} : vector<8x256xf32> to vector<8x128xf32>
    %19 = arith.negf %18 : vector<8x128xf32>
    %20 = math.exp %19 : vector<8x128xf32>
    %cst_14 = arith.constant 1.000000e+00 : f32
    %21 = vector.broadcast %cst_14 : f32 to vector<8x128xf32>
    %22 = arith.addf %21, %20 : vector<8x128xf32>
    %23 = arith.divf %21, %22 : vector<8x128xf32>
    %24 = vector.extract_strided_slice %17 {offsets = [0, 128], sizes = [8, 128], strides = [1, 1]} : vector<8x256xf32> to vector<8x128xf32>
    %25 = arith.negf %24 : vector<8x128xf32>
    %26 = math.exp %25 : vector<8x128xf32>
    %cst_15 = arith.constant 1.000000e+00 : f32
    %27 = vector.broadcast %cst_15 : f32 to vector<8x128xf32>
    %28 = arith.addf %27, %26 : vector<8x128xf32>
    %29 = arith.divf %27, %28 : vector<8x128xf32>
    %30 = vector.extract_strided_slice %13 {offsets = [0, 256], sizes = [8, 128], strides = [1, 1]} : vector<8x384xf32> to vector<8x128xf32>
    %31 = arith.mulf %29, %7 : vector<8x128xf32>
    %32 = arith.truncf %31 : vector<8x128xf32> to vector<8x128xbf16>
    %cst_16 = arith.constant dense<0.000000e+00> : vector<8x128xf32>
    %33 = tpu.matmul %32, %6, %cst_16 {dimension_numbers = #tpu.dot_dimension_numbers<[1], [0], [0], [1], [0, 0, 1, 1], [], []>} : vector<8x128xbf16>, vector<128x128xbf16>, vector<8x128xf32> -> vector<8x128xf32>
    %34 = arith.addf %30, %33 : vector<8x128xf32>
    %35 = math.tanh %34 : vector<8x128xf32>
    %36 = arith.mulf %23, %7 : vector<8x128xf32>
    %cst_17 = arith.constant 1.000000e+00 : f32
    %37 = vector.broadcast %cst_17 : f32 to vector<8x128xf32>
    %38 = arith.subf %37, %23 : vector<8x128xf32>
    %39 = arith.mulf %38, %35 : vector<8x128xf32>
    %40 = arith.addf %36, %39 : vector<8x128xf32>
    %41 = arith.truncf %40 : vector<8x128xf32> to vector<8x128xbf16>
    %42 = arith.index_cast %c0_i32_10 : i32 to index
    %c0_18 = arith.constant 0 : index
    %c0_19 = arith.constant 0 : index
    %43 = vector.load %arg8[%42, %c0_18, %c0_19] : memref<8x8x128xbf16, #tpu.memory_space<vmem>>, vector<1x8x128xbf16>
    %44 = vector.shape_cast %43 : vector<1x8x128xbf16> to vector<8x128xbf16>
    %45 = vector.shape_cast %41 : vector<8x128xbf16> to vector<1x8x128xbf16>
    tpu.vector_store %arg8[%42, %c0_18, %c0_19], %45 {strides = array<i32>} : memref<8x8x128xbf16, #tpu.memory_space<vmem>>, vector<1x8x128xbf16>,
    %c1_i32 = arith.constant 1 : i32
    %46 = arith.index_cast %c1_i32 : i32 to index
    %c0_20 = arith.constant 0 : index
    %c0_21 = arith.constant 0 : index
    %47 = vector.load %arg2[%46, %c0_20, %c0_21] : memref<8x8x128xbf16, #tpu.memory_space<vmem>>, vector<1x8x128xbf16>
    %48 = vector.shape_cast %47 : vector<1x8x128xbf16> to vector<8x128xbf16>
    %cst_22 = arith.constant dense<0.000000e+00> : vector<8x384xf32>
    %49 = tpu.matmul %48, %3, %cst_22 {dimension_numbers = #tpu.dot_dimension_numbers<[1], [0], [0], [1], [0, 0, 1, 1], [], []>} : vector<8x128xbf16>, vector<128x384xbf16>, vector<8x384xf32> -> vector<8x384xf32>
    %50 = vector.broadcast %4 : vector<1x384xf32> to vector<8x384xf32>
    %51 = arith.addf %49, %50 : vector<8x384xf32>
    %52 = vector.extract_strided_slice %51 {offsets = [0, 0], sizes = [8, 256], strides = [1, 1]} : vector<8x384xf32> to vector<8x256xf32>
    %53 = arith.truncf %40 : vector<8x128xf32> to vector<8x128xbf16>
    %cst_23 = arith.constant dense<0.000000e+00> : vector<8x256xf32>
    %54 = tpu.matmul %53, %5, %cst_23 {dimension_numbers = #tpu.dot_dimension_numbers<[1], [0], [0], [1], [0, 0, 1, 1], [], []>} : vector<8x128xbf16>, vector<128x256xbf16>, vector<8x256xf32> -> vector<8x256xf32>
    %55 = arith.addf %52, %54 : vector<8x256xf32>
    %56 = vector.extract_strided_slice %55 {offsets = [0, 0], sizes = [8, 128], strides = [1, 1]} : vector<8x256xf32> to vector<8x128xf32>
    %57 = arith.negf %56 : vector<8x128xf32>
    %58 = math.exp %57 : vector<8x128xf32>
    %cst_24 = arith.constant 1.000000e+00 : f32
    %59 = vector.broadcast %cst_24 : f32 to vector<8x128xf32>
    %60 = arith.addf %59, %58 : vector<8x128xf32>
    %61 = arith.divf %59, %60 : vector<8x128xf32>
    %62 = vector.extract_strided_slice %55 {offsets = [0, 128], sizes = [8, 128], strides = [1, 1]} : vector<8x256xf32> to vector<8x128xf32>
    %63 = arith.negf %62 : vector<8x128xf32>
    %64 = math.exp %63 : vector<8x128xf32>
    %cst_25 = arith.constant 1.000000e+00 : f32
    %65 = vector.broadcast %cst_25 : f32 to vector<8x128xf32>
    %66 = arith.addf %65, %64 : vector<8x128xf32>
    %67 = arith.divf %65, %66 : vector<8x128xf32>
    %68 = vector.extract_strided_slice %51 {offsets = [0, 256], sizes = [8, 128], strides = [1, 1]} : vector<8x384xf32> to vector<8x128xf32>
    %69 = arith.mulf %67, %40 : vector<8x128xf32>
    %70 = arith.truncf %69 : vector<8x128xf32> to vector<8x128xbf16>
    %cst_26 = arith.constant dense<0.000000e+00> : vector<8x128xf32>
    %71 = tpu.matmul %70, %6, %cst_26 {dimension_numbers = #tpu.dot_dimension_numbers<[1], [0], [0], [1], [0, 0, 1, 1], [], []>} : vector<8x128xbf16>, vector<128x128xbf16>, vector<8x128xf32> -> vector<8x128xf32>
    %72 = arith.addf %68, %71 : vector<8x128xf32>
    %73 = math.tanh %72 : vector<8x128xf32>
    %74 = arith.mulf %61, %40 : vector<8x128xf32>
    %cst_27 = arith.constant 1.000000e+00 : f32
    %75 = vector.broadcast %cst_27 : f32 to vector<8x128xf32>
    %76 = arith.subf %75, %61 : vector<8x128xf32>
    %77 = arith.mulf %76, %73 : vector<8x128xf32>
    %78 = arith.addf %74, %77 : vector<8x128xf32>
    %79 = arith.truncf %78 : vector<8x128xf32> to vector<8x128xbf16>
    %80 = arith.index_cast %c1_i32 : i32 to index
    %c0_28 = arith.constant 0 : index
    %c0_29 = arith.constant 0 : index
    %81 = vector.load %arg8[%80, %c0_28, %c0_29] : memref<8x8x128xbf16, #tpu.memory_space<vmem>>, vector<1x8x128xbf16>
    %82 = vector.shape_cast %81 : vector<1x8x128xbf16> to vector<8x128xbf16>
    %83 = vector.shape_cast %79 : vector<8x128xbf16> to vector<1x8x128xbf16>
    tpu.vector_store %arg8[%80, %c0_28, %c0_29], %83 {strides = array<i32>} : memref<8x8x128xbf16, #tpu.memory_space<vmem>>, vector<1x8x128xbf16>,
    %c2_i32 = arith.constant 2 : i32
    %84 = arith.index_cast %c2_i32 : i32 to index
    %c0_30 = arith.constant 0 : index
    %c0_31 = arith.constant 0 : index
    %85 = vector.load %arg2[%84, %c0_30, %c0_31] : memref<8x8x128xbf16, #tpu.memory_space<vmem>>, vector<1x8x128xbf16>
    %86 = vector.shape_cast %85 : vector<1x8x128xbf16> to vector<8x128xbf16>
    %cst_32 = arith.constant dense<0.000000e+00> : vector<8x384xf32>
    %87 = tpu.matmul %86, %3, %cst_32 {dimension_numbers = #tpu.dot_dimension_numbers<[1], [0], [0], [1], [0, 0, 1, 1], [], []>} : vector<8x128xbf16>, vector<128x384xbf16>, vector<8x384xf32> -> vector<8x384xf32>
    %88 = vector.broadcast %4 : vector<1x384xf32> to vector<8x384xf32>
    %89 = arith.addf %87, %88 : vector<8x384xf32>
    %90 = vector.extract_strided_slice %89 {offsets = [0, 0], sizes = [8, 256], strides = [1, 1]} : vector<8x384xf32> to vector<8x256xf32>
    %91 = arith.truncf %78 : vector<8x128xf32> to vector<8x128xbf16>
    %cst_33 = arith.constant dense<0.000000e+00> : vector<8x256xf32>
    %92 = tpu.matmul %91, %5, %cst_33 {dimension_numbers = #tpu.dot_dimension_numbers<[1], [0], [0], [1], [0, 0, 1, 1], [], []>} : vector<8x128xbf16>, vector<128x256xbf16>, vector<8x256xf32> -> vector<8x256xf32>
    %93 = arith.addf %90, %92 : vector<8x256xf32>
    %94 = vector.extract_strided_slice %93 {offsets = [0, 0], sizes = [8, 128], strides = [1, 1]} : vector<8x256xf32> to vector<8x128xf32>
    %95 = arith.negf %94 : vector<8x128xf32>
    %96 = math.exp %95 : vector<8x128xf32>
    %cst_34 = arith.constant 1.000000e+00 : f32
    %97 = vector.broadcast %cst_34 : f32 to vector<8x128xf32>
    %98 = arith.addf %97, %96 : vector<8x128xf32>
    %99 = arith.divf %97, %98 : vector<8x128xf32>
    %100 = vector.extract_strided_slice %93 {offsets = [0, 128], sizes = [8, 128], strides = [1, 1]} : vector<8x256xf32> to vector<8x128xf32>
    %101 = arith.negf %100 : vector<8x128xf32>
    %102 = math.exp %101 : vector<8x128xf32>
    %cst_35 = arith.constant 1.000000e+00 : f32
    %103 = vector.broadcast %cst_35 : f32 to vector<8x128xf32>
    %104 = arith.addf %103, %102 : vector<8x128xf32>
    %105 = arith.divf %103, %104 : vector<8x128xf32>
    %106 = vector.extract_strided_slice %89 {offsets = [0, 256], sizes = [8, 128], strides = [1, 1]} : vector<8x384xf32> to vector<8x128xf32>
    %107 = arith.mulf %105, %78 : vector<8x128xf32>
    %108 = arith.truncf %107 : vector<8x128xf32> to vector<8x128xbf16>
    %cst_36 = arith.constant dense<0.000000e+00> : vector<8x128xf32>
    %109 = tpu.matmul %108, %6, %cst_36 {dimension_numbers = #tpu.dot_dimension_numbers<[1], [0], [0], [1], [0, 0, 1, 1], [], []>} : vector<8x128xbf16>, vector<128x128xbf16>, vector<8x128xf32> -> vector<8x128xf32>
    %110 = arith.addf %106, %109 : vector<8x128xf32>
    %111 = math.tanh %110 : vector<8x128xf32>
    %112 = arith.mulf %99, %78 : vector<8x128xf32>
    %cst_37 = arith.constant 1.000000e+00 : f32
    %113 = vector.broadcast %cst_37 : f32 to vector<8x128xf32>
    %114 = arith.subf %113, %99 : vector<8x128xf32>
    %115 = arith.mulf %114, %111 : vector<8x128xf32>
    %116 = arith.addf %112, %115 : vector<8x128xf32>
    %117 = arith.truncf %116 : vector<8x128xf32> to vector<8x128xbf16>
    %118 = arith.index_cast %c2_i32 : i32 to index
    %c0_38 = arith.constant 0 : index
    %c0_39 = arith.constant 0 : index
    %119 = vector.load %arg8[%118, %c0_38, %c0_39] : memref<8x8x128xbf16, #tpu.memory_space<vmem>>, vector<1x8x128xbf16>
    %120 = vector.shape_cast %119 : vector<1x8x128xbf16> to vector<8x128xbf16>
    %121 = vector.shape_cast %117 : vector<8x128xbf16> to vector<1x8x128xbf16>
    tpu.vector_store %arg8[%118, %c0_38, %c0_39], %121 {strides = array<i32>} : memref<8x8x128xbf16, #tpu.memory_space<vmem>>, vector<1x8x128xbf16>,
    %c3_i32 = arith.constant 3 : i32
    %122 = arith.index_cast %c3_i32 : i32 to index
    %c0_40 = arith.constant 0 : index
    %c0_41 = arith.constant 0 : index
    %123 = vector.load %arg2[%122, %c0_40, %c0_41] : memref<8x8x128xbf16, #tpu.memory_space<vmem>>, vector<1x8x128xbf16>
    %124 = vector.shape_cast %123 : vector<1x8x128xbf16> to vector<8x128xbf16>
    %cst_42 = arith.constant dense<0.000000e+00> : vector<8x384xf32>
    %125 = tpu.matmul %124, %3, %cst_42 {dimension_numbers = #tpu.dot_dimension_numbers<[1], [0], [0], [1], [0, 0, 1, 1], [], []>} : vector<8x128xbf16>, vector<128x384xbf16>, vector<8x384xf32> -> vector<8x384xf32>
    %126 = vector.broadcast %4 : vector<1x384xf32> to vector<8x384xf32>
    %127 = arith.addf %125, %126 : vector<8x384xf32>
    %128 = vector.extract_strided_slice %127 {offsets = [0, 0], sizes = [8, 256], strides = [1, 1]} : vector<8x384xf32> to vector<8x256xf32>
    %129 = arith.truncf %116 : vector<8x128xf32> to vector<8x128xbf16>
    %cst_43 = arith.constant dense<0.000000e+00> : vector<8x256xf32>
    %130 = tpu.matmul %129, %5, %cst_43 {dimension_numbers = #tpu.dot_dimension_numbers<[1], [0], [0], [1], [0, 0, 1, 1], [], []>} : vector<8x128xbf16>, vector<128x256xbf16>, vector<8x256xf32> -> vector<8x256xf32>
    %131 = arith.addf %128, %130 : vector<8x256xf32>
    %132 = vector.extract_strided_slice %131 {offsets = [0, 0], sizes = [8, 128], strides = [1, 1]} : vector<8x256xf32> to vector<8x128xf32>
    %133 = arith.negf %132 : vector<8x128xf32>
    %134 = math.exp %133 : vector<8x128xf32>
    %cst_44 = arith.constant 1.000000e+00 : f32
    %135 = vector.broadcast %cst_44 : f32 to vector<8x128xf32>
    %136 = arith.addf %135, %134 : vector<8x128xf32>
    %137 = arith.divf %135, %136 : vector<8x128xf32>
    %138 = vector.extract_strided_slice %131 {offsets = [0, 128], sizes = [8, 128], strides = [1, 1]} : vector<8x256xf32> to vector<8x128xf32>
    %139 = arith.negf %138 : vector<8x128xf32>
    %140 = math.exp %139 : vector<8x128xf32>
    %cst_45 = arith.constant 1.000000e+00 : f32
    %141 = vector.broadcast %cst_45 : f32 to vector<8x128xf32>
    %142 = arith.addf %141, %140 : vector<8x128xf32>
    %143 = arith.divf %141, %142 : vector<8x128xf32>
    %144 = vector.extract_strided_slice %127 {offsets = [0, 256], sizes = [8, 128], strides = [1, 1]} : vector<8x384xf32> to vector<8x128xf32>
    %145 = arith.mulf %143, %116 : vector<8x128xf32>
    %146 = arith.truncf %145 : vector<8x128xf32> to vector<8x128xbf16>
    %cst_46 = arith.constant dense<0.000000e+00> : vector<8x128xf32>
    %147 = tpu.matmul %146, %6, %cst_46 {dimension_numbers = #tpu.dot_dimension_numbers<[1], [0], [0], [1], [0, 0, 1, 1], [], []>} : vector<8x128xbf16>, vector<128x128xbf16>, vector<8x128xf32> -> vector<8x128xf32>
    %148 = arith.addf %144, %147 : vector<8x128xf32>
    %149 = math.tanh %148 : vector<8x128xf32>
    %150 = arith.mulf %137, %116 : vector<8x128xf32>
    %cst_47 = arith.constant 1.000000e+00 : f32
    %151 = vector.broadcast %cst_47 : f32 to vector<8x128xf32>
    %152 = arith.subf %151, %137 : vector<8x128xf32>
    %153 = arith.mulf %152, %149 : vector<8x128xf32>
    %154 = arith.addf %150, %153 : vector<8x128xf32>
    %155 = arith.truncf %154 : vector<8x128xf32> to vector<8x128xbf16>
    %156 = arith.index_cast %c3_i32 : i32 to index
    %c0_48 = arith.constant 0 : index
    %c0_49 = arith.constant 0 : index
    %157 = vector.load %arg8[%156, %c0_48, %c0_49] : memref<8x8x128xbf16, #tpu.memory_space<vmem>>, vector<1x8x128xbf16>
    %158 = vector.shape_cast %157 : vector<1x8x128xbf16> to vector<8x128xbf16>
    %159 = vector.shape_cast %155 : vector<8x128xbf16> to vector<1x8x128xbf16>
    tpu.vector_store %arg8[%156, %c0_48, %c0_49], %159 {strides = array<i32>} : memref<8x8x128xbf16, #tpu.memory_space<vmem>>, vector<1x8x128xbf16>,
    %c4_i32 = arith.constant 4 : i32
    %160 = arith.index_cast %c4_i32 : i32 to index
    %c0_50 = arith.constant 0 : index
    %c0_51 = arith.constant 0 : index
    %161 = vector.load %arg2[%160, %c0_50, %c0_51] : memref<8x8x128xbf16, #tpu.memory_space<vmem>>, vector<1x8x128xbf16>
    %162 = vector.shape_cast %161 : vector<1x8x128xbf16> to vector<8x128xbf16>
    %cst_52 = arith.constant dense<0.000000e+00> : vector<8x384xf32>
    %163 = tpu.matmul %162, %3, %cst_52 {dimension_numbers = #tpu.dot_dimension_numbers<[1], [0], [0], [1], [0, 0, 1, 1], [], []>} : vector<8x128xbf16>, vector<128x384xbf16>, vector<8x384xf32> -> vector<8x384xf32>
    %164 = vector.broadcast %4 : vector<1x384xf32> to vector<8x384xf32>
    %165 = arith.addf %163, %164 : vector<8x384xf32>
    %166 = vector.extract_strided_slice %165 {offsets = [0, 0], sizes = [8, 256], strides = [1, 1]} : vector<8x384xf32> to vector<8x256xf32>
    %167 = arith.truncf %154 : vector<8x128xf32> to vector<8x128xbf16>
    %cst_53 = arith.constant dense<0.000000e+00> : vector<8x256xf32>
    %168 = tpu.matmul %167, %5, %cst_53 {dimension_numbers = #tpu.dot_dimension_numbers<[1], [0], [0], [1], [0, 0, 1, 1], [], []>} : vector<8x128xbf16>, vector<128x256xbf16>, vector<8x256xf32> -> vector<8x256xf32>
    %169 = arith.addf %166, %168 : vector<8x256xf32>
    %170 = vector.extract_strided_slice %169 {offsets = [0, 0], sizes = [8, 128], strides = [1, 1]} : vector<8x256xf32> to vector<8x128xf32>
    %171 = arith.negf %170 : vector<8x128xf32>
    %172 = math.exp %171 : vector<8x128xf32>
    %cst_54 = arith.constant 1.000000e+00 : f32
    %173 = vector.broadcast %cst_54 : f32 to vector<8x128xf32>
    %174 = arith.addf %173, %172 : vector<8x128xf32>
    %175 = arith.divf %173, %174 : vector<8x128xf32>
    %176 = vector.extract_strided_slice %169 {offsets = [0, 128], sizes = [8, 128], strides = [1, 1]} : vector<8x256xf32> to vector<8x128xf32>
    %177 = arith.negf %176 : vector<8x128xf32>
    %178 = math.exp %177 : vector<8x128xf32>
    %cst_55 = arith.constant 1.000000e+00 : f32
    %179 = vector.broadcast %cst_55 : f32 to vector<8x128xf32>
    %180 = arith.addf %179, %178 : vector<8x128xf32>
    %181 = arith.divf %179, %180 : vector<8x128xf32>
    %182 = vector.extract_strided_slice %165 {offsets = [0, 256], sizes = [8, 128], strides = [1, 1]} : vector<8x384xf32> to vector<8x128xf32>
    %183 = arith.mulf %181, %154 : vector<8x128xf32>
    %184 = arith.truncf %183 : vector<8x128xf32> to vector<8x128xbf16>
    %cst_56 = arith.constant dense<0.000000e+00> : vector<8x128xf32>
    %185 = tpu.matmul %184, %6, %cst_56 {dimension_numbers = #tpu.dot_dimension_numbers<[1], [0], [0], [1], [0, 0, 1, 1], [], []>} : vector<8x128xbf16>, vector<128x128xbf16>, vector<8x128xf32> -> vector<8x128xf32>
    %186 = arith.addf %182, %185 : vector<8x128xf32>
    %187 = math.tanh %186 : vector<8x128xf32>
    %188 = arith.mulf %175, %154 : vector<8x128xf32>
    %cst_57 = arith.constant 1.000000e+00 : f32
    %189 = vector.broadcast %cst_57 : f32 to vector<8x128xf32>
    %190 = arith.subf %189, %175 : vector<8x128xf32>
    %191 = arith.mulf %190, %187 : vector<8x128xf32>
    %192 = arith.addf %188, %191 : vector<8x128xf32>
    %193 = arith.truncf %192 : vector<8x128xf32> to vector<8x128xbf16>
    %194 = arith.index_cast %c4_i32 : i32 to index
    %c0_58 = arith.constant 0 : index
    %c0_59 = arith.constant 0 : index
    %195 = vector.load %arg8[%194, %c0_58, %c0_59] : memref<8x8x128xbf16, #tpu.memory_space<vmem>>, vector<1x8x128xbf16>
    %196 = vector.shape_cast %195 : vector<1x8x128xbf16> to vector<8x128xbf16>
    %197 = vector.shape_cast %193 : vector<8x128xbf16> to vector<1x8x128xbf16>
    tpu.vector_store %arg8[%194, %c0_58, %c0_59], %197 {strides = array<i32>} : memref<8x8x128xbf16, #tpu.memory_space<vmem>>, vector<1x8x128xbf16>,
    %c5_i32 = arith.constant 5 : i32
    %198 = arith.index_cast %c5_i32 : i32 to index
    %c0_60 = arith.constant 0 : index
    %c0_61 = arith.constant 0 : index
    %199 = vector.load %arg2[%198, %c0_60, %c0_61] : memref<8x8x128xbf16, #tpu.memory_space<vmem>>, vector<1x8x128xbf16>
    %200 = vector.shape_cast %199 : vector<1x8x128xbf16> to vector<8x128xbf16>
    %cst_62 = arith.constant dense<0.000000e+00> : vector<8x384xf32>
    %201 = tpu.matmul %200, %3, %cst_62 {dimension_numbers = #tpu.dot_dimension_numbers<[1], [0], [0], [1], [0, 0, 1, 1], [], []>} : vector<8x128xbf16>, vector<128x384xbf16>, vector<8x384xf32> -> vector<8x384xf32>
    %202 = vector.broadcast %4 : vector<1x384xf32> to vector<8x384xf32>
    %203 = arith.addf %201, %202 : vector<8x384xf32>
    %204 = vector.extract_strided_slice %203 {offsets = [0, 0], sizes = [8, 256], strides = [1, 1]} : vector<8x384xf32> to vector<8x256xf32>
    %205 = arith.truncf %192 : vector<8x128xf32> to vector<8x128xbf16>
    %cst_63 = arith.constant dense<0.000000e+00> : vector<8x256xf32>
    %206 = tpu.matmul %205, %5, %cst_63 {dimension_numbers = #tpu.dot_dimension_numbers<[1], [0], [0], [1], [0, 0, 1, 1], [], []>} : vector<8x128xbf16>, vector<128x256xbf16>, vector<8x256xf32> -> vector<8x256xf32>
    %207 = arith.addf %204, %206 : vector<8x256xf32>
    %208 = vector.extract_strided_slice %207 {offsets = [0, 0], sizes = [8, 128], strides = [1, 1]} : vector<8x256xf32> to vector<8x128xf32>
    %209 = arith.negf %208 : vector<8x128xf32>
    %210 = math.exp %209 : vector<8x128xf32>
    %cst_64 = arith.constant 1.000000e+00 : f32
    %211 = vector.broadcast %cst_64 : f32 to vector<8x128xf32>
    %212 = arith.addf %211, %210 : vector<8x128xf32>
    %213 = arith.divf %211, %212 : vector<8x128xf32>
    %214 = vector.extract_strided_slice %207 {offsets = [0, 128], sizes = [8, 128], strides = [1, 1]} : vector<8x256xf32> to vector<8x128xf32>
    %215 = arith.negf %214 : vector<8x128xf32>
    %216 = math.exp %215 : vector<8x128xf32>
    %cst_65 = arith.constant 1.000000e+00 : f32
    %217 = vector.broadcast %cst_65 : f32 to vector<8x128xf32>
    %218 = arith.addf %217, %216 : vector<8x128xf32>
    %219 = arith.divf %217, %218 : vector<8x128xf32>
    %220 = vector.extract_strided_slice %203 {offsets = [0, 256], sizes = [8, 128], strides = [1, 1]} : vector<8x384xf32> to vector<8x128xf32>
    %221 = arith.mulf %219, %192 : vector<8x128xf32>
    %222 = arith.truncf %221 : vector<8x128xf32> to vector<8x128xbf16>
    %cst_66 = arith.constant dense<0.000000e+00> : vector<8x128xf32>
    %223 = tpu.matmul %222, %6, %cst_66 {dimension_numbers = #tpu.dot_dimension_numbers<[1], [0], [0], [1], [0, 0, 1, 1], [], []>} : vector<8x128xbf16>, vector<128x128xbf16>, vector<8x128xf32> -> vector<8x128xf32>
    %224 = arith.addf %220, %223 : vector<8x128xf32>
    %225 = math.tanh %224 : vector<8x128xf32>
    %226 = arith.mulf %213, %192 : vector<8x128xf32>
    %cst_67 = arith.constant 1.000000e+00 : f32
    %227 = vector.broadcast %cst_67 : f32 to vector<8x128xf32>
    %228 = arith.subf %227, %213 : vector<8x128xf32>
    %229 = arith.mulf %228, %225 : vector<8x128xf32>
    %230 = arith.addf %226, %229 : vector<8x128xf32>
    %231 = arith.truncf %230 : vector<8x128xf32> to vector<8x128xbf16>
    %232 = arith.index_cast %c5_i32 : i32 to index
    %c0_68 = arith.constant 0 : index
    %c0_69 = arith.constant 0 : index
    %233 = vector.load %arg8[%232, %c0_68, %c0_69] : memref<8x8x128xbf16, #tpu.memory_space<vmem>>, vector<1x8x128xbf16>
    %234 = vector.shape_cast %233 : vector<1x8x128xbf16> to vector<8x128xbf16>
    %235 = vector.shape_cast %231 : vector<8x128xbf16> to vector<1x8x128xbf16>
    tpu.vector_store %arg8[%232, %c0_68, %c0_69], %235 {strides = array<i32>} : memref<8x8x128xbf16, #tpu.memory_space<vmem>>, vector<1x8x128xbf16>,
    %c6_i32 = arith.constant 6 : i32
    %236 = arith.index_cast %c6_i32 : i32 to index
    %c0_70 = arith.constant 0 : index
    %c0_71 = arith.constant 0 : index
    %237 = vector.load %arg2[%236, %c0_70, %c0_71] : memref<8x8x128xbf16, #tpu.memory_space<vmem>>, vector<1x8x128xbf16>
    %238 = vector.shape_cast %237 : vector<1x8x128xbf16> to vector<8x128xbf16>
    %cst_72 = arith.constant dense<0.000000e+00> : vector<8x384xf32>
    %239 = tpu.matmul %238, %3, %cst_72 {dimension_numbers = #tpu.dot_dimension_numbers<[1], [0], [0], [1], [0, 0, 1, 1], [], []>} : vector<8x128xbf16>, vector<128x384xbf16>, vector<8x384xf32> -> vector<8x384xf32>
    %240 = vector.broadcast %4 : vector<1x384xf32> to vector<8x384xf32>
    %241 = arith.addf %239, %240 : vector<8x384xf32>
    %242 = vector.extract_strided_slice %241 {offsets = [0, 0], sizes = [8, 256], strides = [1, 1]} : vector<8x384xf32> to vector<8x256xf32>
    %243 = arith.truncf %230 : vector<8x128xf32> to vector<8x128xbf16>
    %cst_73 = arith.constant dense<0.000000e+00> : vector<8x256xf32>
    %244 = tpu.matmul %243, %5, %cst_73 {dimension_numbers = #tpu.dot_dimension_numbers<[1], [0], [0], [1], [0, 0, 1, 1], [], []>} : vector<8x128xbf16>, vector<128x256xbf16>, vector<8x256xf32> -> vector<8x256xf32>
    %245 = arith.addf %242, %244 : vector<8x256xf32>
    %246 = vector.extract_strided_slice %245 {offsets = [0, 0], sizes = [8, 128], strides = [1, 1]} : vector<8x256xf32> to vector<8x128xf32>
    %247 = arith.negf %246 : vector<8x128xf32>
    %248 = math.exp %247 : vector<8x128xf32>
    %cst_74 = arith.constant 1.000000e+00 : f32
    %249 = vector.broadcast %cst_74 : f32 to vector<8x128xf32>
    %250 = arith.addf %249, %248 : vector<8x128xf32>
    %251 = arith.divf %249, %250 : vector<8x128xf32>
    %252 = vector.extract_strided_slice %245 {offsets = [0, 128], sizes = [8, 128], strides = [1, 1]} : vector<8x256xf32> to vector<8x128xf32>
    %253 = arith.negf %252 : vector<8x128xf32>
    %254 = math.exp %253 : vector<8x128xf32>
    %cst_75 = arith.constant 1.000000e+00 : f32
    %255 = vector.broadcast %cst_75 : f32 to vector<8x128xf32>
    %256 = arith.addf %255, %254 : vector<8x128xf32>
    %257 = arith.divf %255, %256 : vector<8x128xf32>
    %258 = vector.extract_strided_slice %241 {offsets = [0, 256], sizes = [8, 128], strides = [1, 1]} : vector<8x384xf32> to vector<8x128xf32>
    %259 = arith.mulf %257, %230 : vector<8x128xf32>
    %260 = arith.truncf %259 : vector<8x128xf32> to vector<8x128xbf16>
    %cst_76 = arith.constant dense<0.000000e+00> : vector<8x128xf32>
    %261 = tpu.matmul %260, %6, %cst_76 {dimension_numbers = #tpu.dot_dimension_numbers<[1], [0], [0], [1], [0, 0, 1, 1], [], []>} : vector<8x128xbf16>, vector<128x128xbf16>, vector<8x128xf32> -> vector<8x128xf32>
    %262 = arith.addf %258, %261 : vector<8x128xf32>
    %263 = math.tanh %262 : vector<8x128xf32>
    %264 = arith.mulf %251, %230 : vector<8x128xf32>
    %cst_77 = arith.constant 1.000000e+00 : f32
    %265 = vector.broadcast %cst_77 : f32 to vector<8x128xf32>
    %266 = arith.subf %265, %251 : vector<8x128xf32>
    %267 = arith.mulf %266, %263 : vector<8x128xf32>
    %268 = arith.addf %264, %267 : vector<8x128xf32>
    %269 = arith.truncf %268 : vector<8x128xf32> to vector<8x128xbf16>
    %270 = arith.index_cast %c6_i32 : i32 to index
    %c0_78 = arith.constant 0 : index
    %c0_79 = arith.constant 0 : index
    %271 = vector.load %arg8[%270, %c0_78, %c0_79] : memref<8x8x128xbf16, #tpu.memory_space<vmem>>, vector<1x8x128xbf16>
    %272 = vector.shape_cast %271 : vector<1x8x128xbf16> to vector<8x128xbf16>
    %273 = vector.shape_cast %269 : vector<8x128xbf16> to vector<1x8x128xbf16>
    tpu.vector_store %arg8[%270, %c0_78, %c0_79], %273 {strides = array<i32>} : memref<8x8x128xbf16, #tpu.memory_space<vmem>>, vector<1x8x128xbf16>,
    %c7_i32 = arith.constant 7 : i32
    %274 = arith.index_cast %c7_i32 : i32 to index
    %c0_80 = arith.constant 0 : index
    %c0_81 = arith.constant 0 : index
    %275 = vector.load %arg2[%274, %c0_80, %c0_81] : memref<8x8x128xbf16, #tpu.memory_space<vmem>>, vector<1x8x128xbf16>
    %276 = vector.shape_cast %275 : vector<1x8x128xbf16> to vector<8x128xbf16>
    %cst_82 = arith.constant dense<0.000000e+00> : vector<8x384xf32>
    %277 = tpu.matmul %276, %3, %cst_82 {dimension_numbers = #tpu.dot_dimension_numbers<[1], [0], [0], [1], [0, 0, 1, 1], [], []>} : vector<8x128xbf16>, vector<128x384xbf16>, vector<8x384xf32> -> vector<8x384xf32>
    %278 = vector.broadcast %4 : vector<1x384xf32> to vector<8x384xf32>
    %279 = arith.addf %277, %278 : vector<8x384xf32>
    %280 = vector.extract_strided_slice %279 {offsets = [0, 0], sizes = [8, 256], strides = [1, 1]} : vector<8x384xf32> to vector<8x256xf32>
    %281 = arith.truncf %268 : vector<8x128xf32> to vector<8x128xbf16>
    %cst_83 = arith.constant dense<0.000000e+00> : vector<8x256xf32>
    %282 = tpu.matmul %281, %5, %cst_83 {dimension_numbers = #tpu.dot_dimension_numbers<[1], [0], [0], [1], [0, 0, 1, 1], [], []>} : vector<8x128xbf16>, vector<128x256xbf16>, vector<8x256xf32> -> vector<8x256xf32>
    %283 = arith.addf %280, %282 : vector<8x256xf32>
    %284 = vector.extract_strided_slice %283 {offsets = [0, 0], sizes = [8, 128], strides = [1, 1]} : vector<8x256xf32> to vector<8x128xf32>
    %285 = arith.negf %284 : vector<8x128xf32>
    %286 = math.exp %285 : vector<8x128xf32>
    %cst_84 = arith.constant 1.000000e+00 : f32
    %287 = vector.broadcast %cst_84 : f32 to vector<8x128xf32>
    %288 = arith.addf %287, %286 : vector<8x128xf32>
    %289 = arith.divf %287, %288 : vector<8x128xf32>
    %290 = vector.extract_strided_slice %283 {offsets = [0, 128], sizes = [8, 128], strides = [1, 1]} : vector<8x256xf32> to vector<8x128xf32>
    %291 = arith.negf %290 : vector<8x128xf32>
    %292 = math.exp %291 : vector<8x128xf32>
    %cst_85 = arith.constant 1.000000e+00 : f32
    %293 = vector.broadcast %cst_85 : f32 to vector<8x128xf32>
    %294 = arith.addf %293, %292 : vector<8x128xf32>
    %295 = arith.divf %293, %294 : vector<8x128xf32>
    %296 = vector.extract_strided_slice %279 {offsets = [0, 256], sizes = [8, 128], strides = [1, 1]} : vector<8x384xf32> to vector<8x128xf32>
    %297 = arith.mulf %295, %268 : vector<8x128xf32>
    %298 = arith.truncf %297 : vector<8x128xf32> to vector<8x128xbf16>
    %cst_86 = arith.constant dense<0.000000e+00> : vector<8x128xf32>
    %299 = tpu.matmul %298, %6, %cst_86 {dimension_numbers = #tpu.dot_dimension_numbers<[1], [0], [0], [1], [0, 0, 1, 1], [], []>} : vector<8x128xbf16>, vector<128x128xbf16>, vector<8x128xf32> -> vector<8x128xf32>
    %300 = arith.addf %296, %299 : vector<8x128xf32>
    %301 = math.tanh %300 : vector<8x128xf32>
    %302 = arith.mulf %289, %268 : vector<8x128xf32>
    %cst_87 = arith.constant 1.000000e+00 : f32
    %303 = vector.broadcast %cst_87 : f32 to vector<8x128xf32>
    %304 = arith.subf %303, %289 : vector<8x128xf32>
    %305 = arith.mulf %304, %301 : vector<8x128xf32>
    %306 = arith.addf %302, %305 : vector<8x128xf32>
    %307 = arith.truncf %306 : vector<8x128xf32> to vector<8x128xbf16>
    %308 = arith.index_cast %c7_i32 : i32 to index
    %c0_88 = arith.constant 0 : index
    %c0_89 = arith.constant 0 : index
    %309 = vector.load %arg8[%308, %c0_88, %c0_89] : memref<8x8x128xbf16, #tpu.memory_space<vmem>>, vector<1x8x128xbf16>
    %310 = vector.shape_cast %309 : vector<1x8x128xbf16> to vector<8x128xbf16>
    %311 = vector.shape_cast %307 : vector<8x128xbf16> to vector<1x8x128xbf16>
    tpu.vector_store %arg8[%308, %c0_88, %c0_89], %311 {strides = array<i32>} : memref<8x8x128xbf16, #tpu.memory_space<vmem>>, vector<1x8x128xbf16>,
    %c8_i32 = arith.constant 8 : i32
    %c0_i32_90 = arith.constant 0 : i32
    %312 = arith.cmpi slt, %arg1, %c0_i32_90 : i32
    %313 = arith.extui %312 : i1 to i32
    %c0_i32_91 = arith.constant 0 : i32
    %314 = arith.cmpi ne, %313, %c0_i32_91 : i32
    scf.if %314 {
      %c0_94 = arith.constant 0 : index
      %c0_95 = arith.constant 0 : index
      %318 = vector.load %arg10[%c0_94, %c0_95] : memref<8x128xf32, #tpu.memory_space<vmem>>, vector<8x128xf32>
      tpu.vector_store %arg10[%c0_94, %c0_95], %306 {strides = array<i32>} : memref<8x128xf32, #tpu.memory_space<vmem>>, vector<8x128xf32>,
    } else {
    }
    %c0_i32_92 = arith.constant 0 : i32
    %315 = arith.cmpi eq, %arg1, %c0_i32_92 : i32
    %316 = arith.extui %315 : i1 to i32
    %c0_i32_93 = arith.constant 0 : i32
    %317 = arith.cmpi ne, %316, %c0_i32_93 : i32
    scf.if %317 {
      %c0_94 = arith.constant 0 : index
      %c0_95 = arith.constant 0 : index
      %318 = vector.load %arg9[%c0_94, %c0_95] : memref<8x128xf32, #tpu.memory_space<vmem>>, vector<8x128xf32>
      tpu.vector_store %arg9[%c0_94, %c0_95], %306 {strides = array<i32>} : memref<8x128xf32, #tpu.memory_space<vmem>>, vector<8x128xf32>,
    } else {
    }
    return
  }
  func.func @transform_0(%arg0: i32, %arg1: i32) -> (i32, i32, i32) {
    %c0_i32 = arith.constant 0 : i32
    %c0_i32_0 = arith.constant 0 : i32
    return %arg1, %arg0, %c0_i32 : i32, i32, i32
  }
  func.func @transform_1(%arg0: i32, %arg1: i32) -> (i32, i32) {
    %c0_i32 = arith.constant 0 : i32
    %c0_i32_0 = arith.constant 0 : i32
    return %arg0, %c0_i32 : i32, i32
  }
  func.func @transform_2(%arg0: i32, %arg1: i32) -> (i32, i32) {
    %c0_i32 = arith.constant 0 : i32
    %c0_i32_0 = arith.constant 0 : i32
    %c0_i32_1 = arith.constant 0 : i32
    return %c0_i32, %c0_i32_0 : i32, i32
  }
  func.func @transform_3(%arg0: i32, %arg1: i32) -> (i32, i32) {
    %c0_i32 = arith.constant 0 : i32
    %c0_i32_0 = arith.constant 0 : i32
    %c0_i32_1 = arith.constant 0 : i32
    return %c0_i32, %c0_i32_0 : i32, i32
  }
  func.func @transform_4(%arg0: i32, %arg1: i32) -> (i32, i32) {
    %c0_i32 = arith.constant 0 : i32
    %c0_i32_0 = arith.constant 0 : i32
    %c0_i32_1 = arith.constant 0 : i32
    return %c0_i32, %c0_i32_0 : i32, i32
  }
  func.func @transform_5(%arg0: i32, %arg1: i32) -> (i32, i32) {
    %c0_i32 = arith.constant 0 : i32
    %c0_i32_0 = arith.constant 0 : i32
    %c0_i32_1 = arith.constant 0 : i32
    return %c0_i32, %c0_i32_0 : i32, i32
  }
  func.func @transform_6(%arg0: i32, %arg1: i32) -> (i32, i32, i32) {
    %c0_i32 = arith.constant 0 : i32
    %c0_i32_0 = arith.constant 0 : i32
    return %arg1, %arg0, %c0_i32 : i32, i32, i32
  }
  func.func @transform_7(%arg0: i32, %arg1: i32) -> (i32, i32) {
    %c0_i32 = arith.constant 0 : i32
    %c0_i32_0 = arith.constant 0 : i32
    return %arg0, %c0_i32 : i32, i32
  }
}

</mosaic_0001>

<llo_original>
// kernel: multilayer_gru_forward.2
$region0: #{multilayer_gru_forward.2}
  #allocation0 [shape = 'u32[]', space=smem, size = 0x4, offset = 0x4, fixed_abs, tag = 'smem constant byte address 0x4 - core index']
  #allocation1 [shape = 'u32[72,128]{1,0:T(1,128)}', space=vmem, size = 0x9000, scoped, tag = 'internal scratch']
  #allocation2 [shape = 'f32[8,128]{1,0:T(8,128)}', space=vmem, size = 0x1000, scoped, tag = 'scratch operand']
  %s0 = inlined_call_operand.vmem [shape: bf16[8,8,128], index: 0, kind: input, shape index: {}]
  %s1 = inlined_call_operand.vmem [shape: f32[8,128], index: 1, kind: input, shape index: {}]
  %s2 = inlined_call_operand.hbm [shape: bf16[128,384], index: 2, kind: input, shape index: {}]
  %s3 = inlined_call_operand.vmem [shape: f32[1,384], index: 3, kind: input, shape index: {}]
  %s4 = inlined_call_operand.hbm [shape: bf16[128,256], index: 4, kind: input, shape index: {}]
  %s5 = inlined_call_operand.vmem [shape: bf16[128,128], index: 5, kind: input, shape index: {}]
  %s6 = inlined_call_operand.vmem [shape: bf16[8,8,128], index: 6, kind: output, shape index: {0}]
  %s7 = inlined_call_operand.vmem [shape: f32[8,128], index: 7, kind: output, shape index: {1}]
  %8 = xla_tuple %s6, %s7
  %s9 = sld [smem:[#allocation0]]
  $region62: #{multilayer_gru_forward.2} parent=0
    _
  %s11 = ssub.s32 1, %s9
  %s12 = scalar_select 0, %s11, %s9
  $region1: #{multilayer_gru_forward.2} parent=0
    #allocation3 [shape = 'u8[98304]{0}', space=vmem, size = 0x18000, scoped, tag = 'input window, operand 2, single buffered']
    #allocation4 [shape = 's32[1]{0}', space=sflag, size = 0x4, scoped, tag = 'scoped memory for multilayer_gru_forward.2']
    #allocation5 [shape = 'u8[65536]{0}', space=vmem, size = 0x10000, scoped, tag = 'input window, operand 4, single buffered']
    #allocation6 [shape = 's32[1]{0}', space=sflag, size = 0x4, scoped, tag = 'scoped memory for multilayer_gru_forward.2']
    %13 = vsyncpa [#allocation4], 0
    %14 = vsyncpa [#allocation6], 0
    // Predicated region
    $region2: #{multilayer_gru_forward.2} parent=1 // pred_check
      _
    $region3: #{multilayer_gru_forward.2} parent=1 // pred_check_branch
      %16 = sbr.rel (0) target = $region5
    $region4: #{multilayer_gru_forward.2} parent=1 // pred_region
      _
    $region5: #{multilayer_gru_forward.2} parent=1 // pred_fallthru
      _
    // Predicated region
    $region6: #{multilayer_gru_forward.2} parent=1 // pred_check
      _
    $region7: #{multilayer_gru_forward.2} parent=1 // pred_check_branch
      %18 = sbr.rel (0) target = $region9
    $region8: #{multilayer_gru_forward.2} parent=1 // pred_region
      _
    $region9: #{multilayer_gru_forward.2} parent=1 // pred_fallthru
      _
    // Predicated region
    $region10: #{multilayer_gru_forward.2} parent=1 // pred_check
      _
    $region11: #{multilayer_gru_forward.2} parent=1 // pred_check_branch
      %20 = sbr.rel (0) target = $region13
    $region12: #{multilayer_gru_forward.2} parent=1 // pred_region
      %22 = vsyncadd [#allocation4], 0
      %s23 = sshll.u32 %s2, 4
      %s24 = int_to_ptr.hbm [resolvable:$true] %s23
      %s25 = sshll.u32 [#allocation3], 4
      %s26 = int_to_ptr.vmem [resolvable:$true] %s25
      %31 = dma.hbm_to_vmem [thread:$0]  %s24, 3072, %s26, [#allocation4], 192, 192, 12
    $region13: #{multilayer_gru_forward.2} parent=1 // pred_fallthru
      _
    // Predicated region
    $region14: #{multilayer_gru_forward.2} parent=1 // pred_check
      _
    $region15: #{multilayer_gru_forward.2} parent=1 // pred_check_branch
      %33 = sbr.rel (0) target = $region17
    $region16: #{multilayer_gru_forward.2} parent=1 // pred_region
      _
    $region17: #{multilayer_gru_forward.2} parent=1 // pred_fallthru
      _
    // Predicated region
    $region18: #{multilayer_gru_forward.2} parent=1 // pred_check
      _
    $region19: #{multilayer_gru_forward.2} parent=1 // pred_check_branch
      %35 = sbr.rel (0) target = $region21
    $region20: #{multilayer_gru_forward.2} parent=1 // pred_region
      %37 = vsyncadd [#allocation6], 0
      %s38 = sshll.u32 %s4, 4
      %s39 = int_to_ptr.hbm [resolvable:$true] %s38
      %s40 = sshll.u32 [#allocation5], 4
      %s41 = int_to_ptr.vmem [resolvable:$true] %s40
      %46 = dma.hbm_to_vmem [thread:$0]  %s39, 2048, %s41, [#allocation6], 128, 128, 8
    $region21: #{multilayer_gru_forward.2} parent=1 // pred_fallthru
      _
    // Predicated region
    $region22: #{multilayer_gru_forward.2} parent=1 // pred_check
      _
    $region23: #{multilayer_gru_forward.2} parent=1 // pred_check_branch
      %48 = sbr.rel (0) target = $region25
    $region24: #{multilayer_gru_forward.2} parent=1 // pred_region
      _
    $region25: #{multilayer_gru_forward.2} parent=1 // pred_fallthru
      _
    // Predicated region
    $region26: #{multilayer_gru_forward.2} parent=1 // pred_check
      _
    $region27: #{multilayer_gru_forward.2} parent=1 // pred_check_branch
      %50 = sbr.rel (0) target = $region29
    $region28: #{multilayer_gru_forward.2} parent=1 // pred_region
      %52 = dma.done [#allocation4], 3072
    $region29: #{multilayer_gru_forward.2} parent=1 // pred_fallthru
      _
    // Predicated region
    $region30: #{multilayer_gru_forward.2} parent=1 // pred_check
      _
    $region31: #{multilayer_gru_forward.2} parent=1 // pred_check_branch
      %54 = sbr.rel (0) target = $region33
    $region32: #{multilayer_gru_forward.2} parent=1 // pred_region
      %56 = dma.done [#allocation6], 2048
    $region33: #{multilayer_gru_forward.2} parent=1 // pred_fallthru
      _
    %p57 = scmp.eq.s32.totalorder 0, 0
    // Predicated region
    $region34: #{multilayer_gru_forward.2} parent=1 // pred_check
      %p58 = pneg %p57
    $region35: #{multilayer_gru_forward.2} parent=1 // pred_check_branch
      %60 = sbr.rel (%p58) target = $region37
    $region36: #{multilayer_gru_forward.2} parent=1 // pred_region
      %v61 = vld [vmem:[%s1] sm:$0xff]
      %62 = vst [vmem:[#allocation2] sm:$0xff] %v61
    $region37: #{multilayer_gru_forward.2} parent=1 // pred_fallthru
      _
    %v63 = vld [vmem:[#allocation3] sm:$0xff]
    %v64 = vld [vmem:[#allocation3 + $0x8] sm:$0xf]
    %v65 = vld [vmem:[#allocation3 + $0xc] sm:$0xff]
    %v66 = vld [vmem:[#allocation3 + $0x14] sm:$0xf]
    %v67 = vld [vmem:[#allocation3 + $0x18] sm:$0xff]
    %v68 = vld [vmem:[#allocation3 + $0x20] sm:$0xf]
    %v69 = vld [vmem:[#allocation3 + $0x24] sm:$0xff]
    %v70 = vld [vmem:[#allocation3 + $0x2c] sm:$0xf]
    %v71 = vld [vmem:[#allocation3 + $0x30] sm:$0xff]
    %v72 = vld [vmem:[#allocation3 + $0x38] sm:$0xf]
    %v73 = vld [vmem:[#allocation3 + $0x3c] sm:$0xff]
    %v74 = vld [vmem:[#allocation3 + $0x44] sm:$0xf]
    %v75 = vld [vmem:[#allocation3 + $0x48] sm:$0xff]
    %v76 = vld [vmem:[#allocation3 + $0x50] sm:$0xf]
    %v77 = vld [vmem:[#allocation3 + $0x54] sm:$0xff]
    %v78 = vld [vmem:[#allocation3 + $0x5c] sm:$0xf]
    %v79 = vld [vmem:[#allocation3 + $0x60] sm:$0xff]
    %v80 = vld [vmem:[#allocation3 + $0x68] sm:$0xf]
    %v81 = vld [vmem:[#allocation3 + $0x6c] sm:$0xff]
    %v82 = vld [vmem:[#allocation3 + $0x74] sm:$0xf]
    %v83 = vld [vmem:[#allocation3 + $0x78] sm:$0xff]
    %v84 = vld [vmem:[#allocation3 + $0x80] sm:$0xf]
    %v85 = vld [vmem:[#allocation3 + $0x84] sm:$0xff]
    %v86 = vld [vmem:[#allocation3 + $0x8c] sm:$0xf]
    %v87 = vld [vmem:[#allocation3 + $0x90] sm:$0xff]
    %v88 = vld [vmem:[#allocation3 + $0x98] sm:$0xf]
    %v89 = vld [vmem:[#allocation3 + $0x9c] sm:$0xff]
    %v90 = vld [vmem:[#allocation3 + $0xa4] sm:$0xf]
    %v91 = vld [vmem:[#allocation3 + $0xa8] sm:$0xff]
    %v92 = vld [vmem:[#allocation3 + $0xb0] sm:$0xf]
    %v93 = vld [vmem:[#allocation3 + $0xb4] sm:$0xff]
    %v94 = vld [vmem:[#allocation3 + $0xbc] sm:$0xf]
    %v95 = vld [vmem:[%s3] sm:$0x7]
    %v96 = vld [vmem:[#allocation5] sm:$0xff]
    %v97 = vld [vmem:[#allocation5 + $0x8] sm:$0xff]
    %v98 = vld [vmem:[#allocation5 + $0x10] sm:$0xff]
    %v99 = vld [vmem:[#allocation5 + $0x18] sm:$0xff]
    %v100 = vld [vmem:[#allocation5 + $0x20] sm:$0xff]
    %v101 = vld [vmem:[#allocation5 + $0x28] sm:$0xff]
    %v102 = vld [vmem:[#allocation5 + $0x30] sm:$0xff]
    %v103 = vld [vmem:[#allocation5 + $0x38] sm:$0xff]
    %v104 = vld [vmem:[#allocation5 + $0x40] sm:$0xff]
    %v105 = vld [vmem:[#allocation5 + $0x48] sm:$0xff]
    %v106 = vld [vmem:[#allocation5 + $0x50] sm:$0xff]
    %v107 = vld [vmem:[#allocation5 + $0x58] sm:$0xff]
    %v108 = vld [vmem:[#allocation5 + $0x60] sm:$0xff]
    %v109 = vld [vmem:[#allocation5 + $0x68] sm:$0xff]
    %v110 = vld [vmem:[#allocation5 + $0x70] sm:$0xff]
    %v111 = vld [vmem:[#allocation5 + $0x78] sm:$0xff]
    %v112 = vld [vmem:[%s5] sm:$0xf]
    %v113 = vld [vmem:[%s5 + $0x4] sm:$0xf]
    %v114 = vld [vmem:[%s5 + $0x8] sm:$0xf]
    %v115 = vld [vmem:[%s5 + $0xc] sm:$0xf]
    %v116 = vld [vmem:[%s5 + $0x10] sm:$0xf]
    %v117 = vld [vmem:[%s5 + $0x14] sm:$0xf]
    %v118 = vld [vmem:[%s5 + $0x18] sm:$0xf]
    %v119 = vld [vmem:[%s5 + $0x1c] sm:$0xf]
    %v120 = vld [vmem:[%s5 + $0x20] sm:$0xf]
    %v121 = vld [vmem:[%s5 + $0x24] sm:$0xf]
    %v122 = vld [vmem:[%s5 + $0x28] sm:$0xf]
    %v123 = vld [vmem:[%s5 + $0x2c] sm:$0xf]
    %v124 = vld [vmem:[%s5 + $0x30] sm:$0xf]
    %v125 = vld [vmem:[%s5 + $0x34] sm:$0xf]
    %v126 = vld [vmem:[%s5 + $0x38] sm:$0xf]
    %v127 = vld [vmem:[%s5 + $0x3c] sm:$0xf]
    %v128 = vld [vmem:[#allocation2] sm:$0xff]
    %v129 = vld [vmem:[%s0] sm:$0xf]
    %v131 = vperm.slane %v95, 0
    %v132 = vperm.slane %v95, 1
    %v133 = vperm.slane %v95, 2
    %v169 = vunpack.c.l.b16 %v63
    %v170 = vunpack.c.h.b16 %v63
    %v171 = vunpack.c.l.b16 %v64
    %v172 = vunpack.c.l.b16 %v65
    %v173 = vunpack.c.h.b16 %v65
    %v174 = vunpack.c.l.b16 %v66
    %v175 = vunpack.c.l.b16 %v67
    %v176 = vunpack.c.h.b16 %v67
    %v177 = vunpack.c.l.b16 %v68
    %v178 = vunpack.c.l.b16 %v69
    %v179 = vunpack.c.h.b16 %v69
    %v180 = vunpack.c.l.b16 %v70
    %v181 = vunpack.c.l.b16 %v71
    %v182 = vunpack.c.h.b16 %v71
    %v183 = vunpack.c.l.b16 %v72
    %v184 = vunpack.c.l.b16 %v73
    %v185 = vunpack.c.h.b16 %v73
    %v186 = vunpack.c.l.b16 %v74
    %v187 = vunpack.c.l.b16 %v75
    %v188 = vunpack.c.h.b16 %v75
    %v189 = vunpack.c.l.b16 %v76
    %v190 = vunpack.c.l.b16 %v77
    %v191 = vunpack.c.h.b16 %v77
    %v192 = vunpack.c.l.b16 %v78
    %v193 = vunpack.c.l.b16 %v79
    %v194 = vunpack.c.h.b16 %v79
    %v195 = vunpack.c.l.b16 %v80
    %v196 = vunpack.c.l.b16 %v81
    %v197 = vunpack.c.h.b16 %v81
    %v198 = vunpack.c.l.b16 %v82
    %v199 = vunpack.c.l.b16 %v83
    %v200 = vunpack.c.h.b16 %v83
    %v201 = vunpack.c.l.b16 %v84
    %v202 = vunpack.c.l.b16 %v85
    %v203 = vunpack.c.h.b16 %v85
    %v204 = vunpack.c.l.b16 %v86
    %v205 = vunpack.c.l.b16 %v87
    %v206 = vunpack.c.h.b16 %v87
    %v207 = vunpack.c.l.b16 %v88
    %v208 = vunpack.c.l.b16 %v89
    %v209 = vunpack.c.h.b16 %v89
    %v210 = vunpack.c.l.b16 %v90
    %v211 = vunpack.c.l.b16 %v91
    %v212 = vunpack.c.h.b16 %v91
    %v213 = vunpack.c.l.b16 %v92
    %v214 = vunpack.c.l.b16 %v93
    %v215 = vunpack.c.h.b16 %v93
    %v216 = vunpack.c.l.b16 %v94
    %v217 = vpack.c.b16 %v172, %v169
    %v218 = vpack.c.b16 %v173, %v170
    %v219 = vpack.c.b16 %v174, %v171
    %v220 = vpack.c.b16 %v178, %v175
    %v221 = vpack.c.b16 %v179, %v176
    %v222 = vpack.c.b16 %v180, %v177
    %v223 = vpack.c.b16 %v184, %v181
    %v224 = vpack.c.b16 %v185, %v182
    %v225 = vpack.c.b16 %v186, %v183
    %v226 = vpack.c.b16 %v190, %v187
    %v227 = vpack.c.b16 %v191, %v188
    %v228 = vpack.c.b16 %v192, %v189
    %v229 = vpack.c.b16 %v196, %v193
    %v230 = vpack.c.b16 %v197, %v194
    %v231 = vpack.c.b16 %v198, %v195
    %v232 = vpack.c.b16 %v202, %v199
    %v233 = vpack.c.b16 %v203, %v200
    %v234 = vpack.c.b16 %v204, %v201
    %v235 = vpack.c.b16 %v208, %v205
    %v236 = vpack.c.b16 %v209, %v206
    %v237 = vpack.c.b16 %v210, %v207
    %v238 = vpack.c.b16 %v214, %v211
    %v239 = vpack.c.b16 %v215, %v212
    %v240 = vpack.c.b16 %v216, %v213
    %265 = vmatpush.bf16.msra.mxu0 %v238
    %266 = vmatpush.bf16.msra.mxu0 %v235
    %267 = vmatpush.bf16.msra.mxu0 %v232
    %268 = vmatpush.bf16.msra.mxu0 %v229
    %269 = vmatpush.bf16.msra.mxu0 %v226
    %270 = vmatpush.bf16.msra.mxu0 %v223
    %271 = vmatpush.bf16.msra.mxu0 %v220
    %272 = vmatpush.bf16.msra.mxu0 %v217
    %273 = vmatmul.bf16.gmra.mxu0 %v129
    %v274 = vpop.f32.mrf.mxu0
    %v275 = vadd.f32 %v131, %v274
    %v276 = vpop.f32.mrf.mxu0
    %277 = vdwg.mxu0
    %278 = vmatpush.bf16.msra.mxu0 %v239
    %279 = vmatpush.bf16.msra.mxu0 %v236
    %280 = vmatpush.bf16.msra.mxu0 %v233
    %281 = vmatpush.bf16.msra.mxu0 %v230
    %282 = vmatpush.bf16.msra.mxu0 %v227
    %283 = vmatpush.bf16.msra.mxu0 %v224
    %284 = vmatpush.bf16.msra.mxu0 %v221
    %285 = vmatpush.bf16.msra.mxu0 %v218
    %286 = vmatmul.bf16.gmra.mxu0 %v129
    %v287 = vpop.f32.mrf.mxu0
    %v288 = vadd.f32 %v132, %v287
    %v289 = vpop.f32.mrf.mxu0
    %290 = vdwg.mxu0
    %291 = vmatpush.bf16.msra.mxu0 %v240
    %292 = vmatpush.bf16.msra.mxu0 %v237
    %293 = vmatpush.bf16.msra.mxu0 %v234
    %294 = vmatpush.bf16.msra.mxu0 %v231
    %295 = vmatpush.bf16.msra.mxu0 %v228
    %296 = vmatpush.bf16.msra.mxu0 %v225
    %297 = vmatpush.bf16.msra.mxu0 %v222
    %298 = vmatpush.bf16.msra.mxu0 %v219
    %299 = vmatmul.bf16.gmra.mxu0 %v129
    %v300 = vpop.f32.mrf.mxu0
    %v301 = vadd.f32 %v133, %v300
    %v302 = vpop.f32.mrf.mxu0
    %303 = vdwg.mxu0
    %v304 = vpack.c.bf16 %v128, %v128
    %v321 = vunpack.c.l.b16 %v96
    %v322 = vunpack.c.h.b16 %v96
    %v323 = vunpack.c.l.b16 %v97
    %v324 = vunpack.c.h.b16 %v97
    %v325 = vunpack.c.l.b16 %v98
    %v326 = vunpack.c.h.b16 %v98
    %v327 = vunpack.c.l.b16 %v99
    %v328 = vunpack.c.h.b16 %v99
    %v329 = vunpack.c.l.b16 %v100
    %v330 = vunpack.c.h.b16 %v100
    %v331 = vunpack.c.l.b16 %v101
    %v332 = vunpack.c.h.b16 %v101
    %v333 = vunpack.c.l.b16 %v102
    %v334 = vunpack.c.h.b16 %v102
    %v335 = vunpack.c.l.b16 %v103
    %v336 = vunpack.c.h.b16 %v103
    %v337 = vunpack.c.l.b16 %v104
    %v338 = vunpack.c.h.b16 %v104
    %v339 = vunpack.c.l.b16 %v105
    %v340 = vunpack.c.h.b16 %v105
    %v341 = vunpack.c.l.b16 %v106
    %v342 = vunpack.c.h.b16 %v106
    %v343 = vunpack.c.l.b16 %v107
    %v344 = vunpack.c.h.b16 %v107
    %v345 = vunpack.c.l.b16 %v108
    %v346 = vunpack.c.h.b16 %v108
    %v347 = vunpack.c.l.b16 %v109
    %v348 = vunpack.c.h.b16 %v109
    %v349 = vunpack.c.l.b16 %v110
    %v350 = vunpack.c.h.b16 %v110
    %v351 = vunpack.c.l.b16 %v111
    %v352 = vunpack.c.h.b16 %v111
    %v353 = vpack.c.b16 %v323, %v321
    %v354 = vpack.c.b16 %v324, %v322
    %v355 = vpack.c.b16 %v327, %v325
    %v356 = vpack.c.b16 %v328, %v326
    %v357 = vpack.c.b16 %v331, %v329
    %v358 = vpack.c.b16 %v332, %v330
    %v359 = vpack.c.b16 %v335, %v333
    %v360 = vpack.c.b16 %v336, %v334
    %v361 = vpack.c.b16 %v339, %v337
    %v362 = vpack.c.b16 %v340, %v338
    %v363 = vpack.c.b16 %v343, %v341
    %v364 = vpack.c.b16 %v344, %v342
    %v365 = vpack.c.b16 %v347, %v345
    %v366 = vpack.c.b16 %v348, %v346
    %v367 = vpack.c.b16 %v351, %v349
    %v368 = vpack.c.b16 %v352, %v350
    %385 = vmatpush.bf16.msra.mxu0 %v367
    %386 = vmatpush.bf16.msra.mxu0 %v365
    %387 = vmatpush.bf16.msra.mxu0 %v363
    %388 = vmatpush.bf16.msra.mxu0 %v361
    %389 = vmatpush.bf16.msra.mxu0 %v359
    %390 = vmatpush.bf16.msra.mxu0 %v357
    %391 = vmatpush.bf16.msra.mxu0 %v355
    %392 = vmatpush.bf16.msra.mxu0 %v353
    %393 = vmatmul.bf16.gmra.mxu0 %v304
    %v394 = vpop.f32.mrf.mxu0
    %v395 = vadd.f32 0.0, %v394
    %v396 = vpop.f32.mrf.mxu0
    %397 = vdwg.mxu0
    %398 = vmatpush.bf16.msra.mxu0 %v368
    %399 = vmatpush.bf16.msra.mxu0 %v366
    %400 = vmatpush.bf16.msra.mxu0 %v364
    %401 = vmatpush.bf16.msra.mxu0 %v362
    %402 = vmatpush.bf16.msra.mxu0 %v360
    %403 = vmatpush.bf16.msra.mxu0 %v358
    %404 = vmatpush.bf16.msra.mxu0 %v356
    %405 = vmatpush.bf16.msra.mxu0 %v354
    %406 = vmatmul.bf16.gmra.mxu0 %v304
    %v407 = vpop.f32.mrf.mxu0
    %v408 = vadd.f32 0.0, %v407
    %v409 = vpop.f32.mrf.mxu0
    %410 = vdwg.mxu0
    %v411 = vadd.f32 %v275, %v395
    %v412 = vadd.f32 %v288, %v408
    %v413 = vxor.u32 %v411, 2147483648
    %v414 = vmul.f32 %v413, 1.442695
    %v415 = vpow.pop %v414
    %v416 = vadd.f32 %v415, 1.0
    %v417 = vrcp.pop %v416
    %v418 = vmul.f32 %v416, %v417
    %v419 = vsub.f32 1.0, %v418
    %v420 = vmul.f32 %v417, %v419
    %v421 = vadd.f32 %v417, %v420
    %vm422 = vweird.f32 %v416
    %vm423 = vweird.f32 %v417
    %vm424 = vmor %vm422, %vm423
    %v425 = vsel %vm424, %v417, %v421
    %v426 = vand.u32 2147483647, %v416
    %vm427 = vcmp.eq.f32.partialorder %v426, 8.507059e+37
    %v428 = vand.u32 %v416, 2147483648
    %v429 = vor.u32 1.1754944e-38, %v428
    %v430 = vsel %vm427, %v429, %v425
    %v431 = vmul.f32 1.0, %v430
    %v432 = vxor.u32 %v412, 2147483648
    %v433 = vmul.f32 %v432, 1.442695
    %v434 = vpow.pop %v433
    %v435 = vadd.f32 %v434, 1.0
    %v436 = vrcp.pop %v435
    %v437 = vmul.f32 %v435, %v436
    %v438 = vsub.f32 1.0, %v437
    %v439 = vmul.f32 %v436, %v438
    %v440 = vadd.f32 %v436, %v439
    %vm441 = vweird.f32 %v435
    %vm442 = vweird.f32 %v436
    %vm443 = vmor %vm441, %vm442
    %v444 = vsel %vm443, %v436, %v440
    %v445 = vand.u32 2147483647, %v435
    %vm446 = vcmp.eq.f32.partialorder %v445, 8.507059e+37
    %v447 = vand.u32 %v435, 2147483648
    %v448 = vor.u32 1.1754944e-38, %v447
    %v449 = vsel %vm446, %v448, %v444
    %v450 = vmul.f32 1.0, %v449
    %v451 = vmul.f32 %v450, %v128
    %v452 = vpack.c.bf16 %v451, %v451
    %v469 = vunpack.c.l.b16 %v112
    %v470 = vunpack.c.l.b16 %v113
    %v471 = vunpack.c.l.b16 %v114
    %v472 = vunpack.c.l.b16 %v115
    %v473 = vunpack.c.l.b16 %v116
    %v474 = vunpack.c.l.b16 %v117
    %v475 = vunpack.c.l.b16 %v118
    %v476 = vunpack.c.l.b16 %v119
    %v477 = vunpack.c.l.b16 %v120
    %v478 = vunpack.c.l.b16 %v121
    %v479 = vunpack.c.l.b16 %v122
    %v480 = vunpack.c.l.b16 %v123
    %v481 = vunpack.c.l.b16 %v124
    %v482 = vunpack.c.l.b16 %v125
    %v483 = vunpack.c.l.b16 %v126
    %v484 = vunpack.c.l.b16 %v127
    %v485 = vpack.c.b16 %v470, %v469
    %v486 = vpack.c.b16 %v472, %v471
    %v487 = vpack.c.b16 %v474, %v473
    %v488 = vpack.c.b16 %v476, %v475
    %v489 = vpack.c.b16 %v478, %v477
    %v490 = vpack.c.b16 %v480, %v479
    %v491 = vpack.c.b16 %v482, %v481
    %v492 = vpack.c.b16 %v484, %v483
    %501 = vmatpush.bf16.msra.mxu0 %v492
    %502 = vmatpush.bf16.msra.mxu0 %v491
    %503 = vmatpush.bf16.msra.mxu0 %v490
    %504 = vmatpush.bf16.msra.mxu0 %v489
    %505 = vmatpush.bf16.msra.mxu0 %v488
    %506 = vmatpush.bf16.msra.mxu0 %v487
    %507 = vmatpush.bf16.msra.mxu0 %v486
    %508 = vmatpush.bf16.msra.mxu0 %v485
    %509 = vmatmul.bf16.gmra.mxu0 %v452
    %v510 = vpop.f32.mrf.mxu0
    %v511 = vadd.f32 0.0, %v510
    %v512 = vpop.f32.mrf.mxu0
    %513 = vdwg.mxu0
    %v514 = vadd.f32 %v301, %v511
    %v515 = vtanh.pop %v514
    %v516 = vmul.f32 %v431, %v128
    %v517 = vsub.f32 1.0, %v431
    %v518 = vmul.f32 %v517, %v515
    %v519 = vadd.f32 %v516, %v518
    %v520 = vpack.c.bf16 %v519, %v519
    %521 = vst [vmem:[%s6] sm:$0xf] %v520
    %s522 = scalar_lea.vmem %s0, 4
    %v523 = vld [vmem:[%s522] sm:$0xf]
    %524 = vmatpush.bf16.msra.mxu0 %v238
    %525 = vmatpush.bf16.msra.mxu0 %v235
    %526 = vmatpush.bf16.msra.mxu0 %v232
    %527 = vmatpush.bf16.msra.mxu0 %v229
    %528 = vmatpush.bf16.msra.mxu0 %v226
    %529 = vmatpush.bf16.msra.mxu0 %v223
    %530 = vmatpush.bf16.msra.mxu0 %v220
    %531 = vmatpush.bf16.msra.mxu0 %v217
    %532 = vmatmul.bf16.gmra.mxu0 %v523
    %v533 = vpop.f32.mrf.mxu0
    %v534 = vadd.f32 %v131, %v533
    %v535 = vpop.f32.mrf.mxu0
    %536 = vdwg.mxu0
    %537 = vmatpush.bf16.msra.mxu0 %v239
    %538 = vmatpush.bf16.msra.mxu0 %v236
    %539 = vmatpush.bf16.msra.mxu0 %v233
    %540 = vmatpush.bf16.msra.mxu0 %v230
    %541 = vmatpush.bf16.msra.mxu0 %v227
    %542 = vmatpush.bf16.msra.mxu0 %v224
    %543 = vmatpush.bf16.msra.mxu0 %v221
    %544 = vmatpush.bf16.msra.mxu0 %v218
    %545 = vmatmul.bf16.gmra.mxu0 %v523
    %v546 = vpop.f32.mrf.mxu0
    %v547 = vadd.f32 %v132, %v546
    %v548 = vpop.f32.mrf.mxu0
    %549 = vdwg.mxu0
    %550 = vmatpush.bf16.msra.mxu0 %v240
    %551 = vmatpush.bf16.msra.mxu0 %v237
    %552 = vmatpush.bf16.msra.mxu0 %v234
    %553 = vmatpush.bf16.msra.mxu0 %v231
    %554 = vmatpush.bf16.msra.mxu0 %v228
    %555 = vmatpush.bf16.msra.mxu0 %v225
    %556 = vmatpush.bf16.msra.mxu0 %v222
    %557 = vmatpush.bf16.msra.mxu0 %v219
    %558 = vmatmul.bf16.gmra.mxu0 %v523
    %v559 = vpop.f32.mrf.mxu0
    %v560 = vadd.f32 %v133, %v559
    %v561 = vpop.f32.mrf.mxu0
    %562 = vdwg.mxu0
    %563 = vmatpush.bf16.msra.mxu0 %v367
    %564 = vmatpush.bf16.msra.mxu0 %v365
    %565 = vmatpush.bf16.msra.mxu0 %v363
    %566 = vmatpush.bf16.msra.mxu0 %v361
    %567 = vmatpush.bf16.msra.mxu0 %v359
    %568 = vmatpush.bf16.msra.mxu0 %v357
    %569 = vmatpush.bf16.msra.mxu0 %v355
    %570 = vmatpush.bf16.msra.mxu0 %v353
    %571 = vmatmul.bf16.gmra.mxu0 %v520
    %v572 = vpop.f32.mrf.mxu0
    %v573 = vadd.f32 0.0, %v572
    %v574 = vpop.f32.mrf.mxu0
    %575 = vdwg.mxu0
    %576 = vmatpush.bf16.msra.mxu0 %v368
    %577 = vmatpush.bf16.msra.mxu0 %v366
    %578 = vmatpush.bf16.msra.mxu0 %v364
    %579 = vmatpush.bf16.msra.mxu0 %v362
    %580 = vmatpush.bf16.msra.mxu0 %v360
    %581 = vmatpush.bf16.msra.mxu0 %v358
    %582 = vmatpush.bf16.msra.mxu0 %v356
    %583 = vmatpush.bf16.msra.mxu0 %v354
    %584 = vmatmul.bf16.gmra.mxu0 %v520
    %v585 = vpop.f32.mrf.mxu0
    %v586 = vadd.f32 0.0, %v585
    %v587 = vpop.f32.mrf.mxu0
    %588 = vdwg.mxu0
    %v589 = vadd.f32 %v534, %v573
    %v590 = vadd.f32 %v547, %v586
    %v591 = vxor.u32 %v589, 2147483648
    %v592 = vmul.f32 %v591, 1.442695
    %v593 = vpow.pop %v592
    %v594 = vadd.f32 %v593, 1.0
    %v595 = vrcp.pop %v594
    %v596 = vmul.f32 %v594, %v595
    %v597 = vsub.f32 1.0, %v596
    %v598 = vmul.f32 %v595, %v597
    %v599 = vadd.f32 %v595, %v598
    %vm600 = vweird.f32 %v594
    %vm601 = vweird.f32 %v595
    %vm602 = vmor %vm600, %vm601
    %v603 = vsel %vm602, %v595, %v599
    %v604 = vand.u32 2147483647, %v594
    %vm605 = vcmp.eq.f32.partialorder %v604, 8.507059e+37
    %v606 = vand.u32 %v594, 2147483648
    %v607 = vor.u32 1.1754944e-38, %v606
    %v608 = vsel %vm605, %v607, %v603
    %v609 = vmul.f32 1.0, %v608
    %v610 = vxor.u32 %v590, 2147483648
    %v611 = vmul.f32 %v610, 1.442695
    %v612 = vpow.pop %v611
    %v613 = vadd.f32 %v612, 1.0
    %v614 = vrcp.pop %v613
    %v615 = vmul.f32 %v613, %v614
    %v616 = vsub.f32 1.0, %v615
    %v617 = vmul.f32 %v614, %v616
    %v618 = vadd.f32 %v614, %v617
    %vm619 = vweird.f32 %v613
    %vm620 = vweird.f32 %v614
    %vm621 = vmor %vm619, %vm620
    %v622 = vsel %vm621, %v614, %v618
    %v623 = vand.u32 2147483647, %v613
    %vm624 = vcmp.eq.f32.partialorder %v623, 8.507059e+37
    %v625 = vand.u32 %v613, 2147483648
    %v626 = vor.u32 1.1754944e-38, %v625
    %v627 = vsel %vm624, %v626, %v622
    %v628 = vmul.f32 1.0, %v627
    %v629 = vmul.f32 %v628, %v519
    %v630 = vpack.c.bf16 %v629, %v629
    %631 = vmatpush.bf16.msra.mxu0 %v492
    %632 = vmatpush.bf16.msra.mxu0 %v491
    %633 = vmatpush.bf16.msra.mxu0 %v490
    %634 = vmatpush.bf16.msra.mxu0 %v489
    %635 = vmatpush.bf16.msra.mxu0 %v488
    %636 = vmatpush.bf16.msra.mxu0 %v487
    %637 = vmatpush.bf16.msra.mxu0 %v486
    %638 = vmatpush.bf16.msra.mxu0 %v485
    %639 = vmatmul.bf16.gmra.mxu0 %v630
    %v640 = vpop.f32.mrf.mxu0
    %v641 = vadd.f32 0.0, %v640
    %v642 = vpop.f32.mrf.mxu0
    %643 = vdwg.mxu0
    %v644 = vadd.f32 %v560, %v641
    %v645 = vtanh.pop %v644
    %v646 = vmul.f32 %v609, %v519
    %v647 = vsub.f32 1.0, %v609
    %v648 = vmul.f32 %v647, %v645
    %v649 = vadd.f32 %v646, %v648
    %v650 = vpack.c.bf16 %v649, %v649
    %s651 = scalar_lea.vmem %s6, 4
    %652 = vst [vmem:[%s651] sm:$0xf] %v650
    %s653 = scalar_lea.vmem %s0, 8
    %v654 = vld [vmem:[%s653] sm:$0xf]
    %655 = vmatpush.bf16.msra.mxu0 %v238
    %656 = vmatpush.bf16.msra.mxu0 %v235
    %657 = vmatpush.bf16.msra.mxu0 %v232
    %658 = vmatpush.bf16.msra.mxu0 %v229
    %659 = vmatpush.bf16.msra.mxu0 %v226
    %660 = vmatpush.bf16.msra.mxu0 %v223
    %661 = vmatpush.bf16.msra.mxu0 %v220
    %662 = vmatpush.bf16.msra.mxu0 %v217
    %663 = vmatmul.bf16.gmra.mxu0 %v654
    %v664 = vpop.f32.mrf.mxu0
    %v665 = vadd.f32 %v131, %v664
    %v666 = vpop.f32.mrf.mxu0
    %667 = vdwg.mxu0
    %668 = vmatpush.bf16.msra.mxu0 %v239
    %669 = vmatpush.bf16.msra.mxu0 %v236
    %670 = vmatpush.bf16.msra.mxu0 %v233
    %671 = vmatpush.bf16.msra.mxu0 %v230
    %672 = vmatpush.bf16.msra.mxu0 %v227
    %673 = vmatpush.bf16.msra.mxu0 %v224
    %674 = vmatpush.bf16.msra.mxu0 %v221
    %675 = vmatpush.bf16.msra.mxu0 %v218
    %676 = vmatmul.bf16.gmra.mxu0 %v654
    %v677 = vpop.f32.mrf.mxu0
    %v678 = vadd.f32 %v132, %v677
    %v679 = vpop.f32.mrf.mxu0
    %680 = vdwg.mxu0
    %681 = vmatpush.bf16.msra.mxu0 %v240
    %682 = vmatpush.bf16.msra.mxu0 %v237
    %683 = vmatpush.bf16.msra.mxu0 %v234
    %684 = vmatpush.bf16.msra.mxu0 %v231
    %685 = vmatpush.bf16.msra.mxu0 %v228
    %686 = vmatpush.bf16.msra.mxu0 %v225
    %687 = vmatpush.bf16.msra.mxu0 %v222
    %688 = vmatpush.bf16.msra.mxu0 %v219
    %689 = vmatmul.bf16.gmra.mxu0 %v654
    %v690 = vpop.f32.mrf.mxu0
    %v691 = vadd.f32 %v133, %v690
    %v692 = vpop.f32.mrf.mxu0
    %693 = vdwg.mxu0
    %694 = vmatpush.bf16.msra.mxu0 %v367
    %695 = vmatpush.bf16.msra.mxu0 %v365
    %696 = vmatpush.bf16.msra.mxu0 %v363
    %697 = vmatpush.bf16.msra.mxu0 %v361
    %698 = vmatpush.bf16.msra.mxu0 %v359
    %699 = vmatpush.bf16.msra.mxu0 %v357
    %700 = vmatpush.bf16.msra.mxu0 %v355
    %701 = vmatpush.bf16.msra.mxu0 %v353
    %702 = vmatmul.bf16.gmra.mxu0 %v650
    %v703 = vpop.f32.mrf.mxu0
    %v704 = vadd.f32 0.0, %v703
    %v705 = vpop.f32.mrf.mxu0
    %706 = vdwg.mxu0
    %707 = vmatpush.bf16.msra.mxu0 %v368
    %708 = vmatpush.bf16.msra.mxu0 %v366
    %709 = vmatpush.bf16.msra.mxu0 %v364
    %710 = vmatpush.bf16.msra.mxu0 %v362
    %711 = vmatpush.bf16.msra.mxu0 %v360
    %712 = vmatpush.bf16.msra.mxu0 %v358
    %713 = vmatpush.bf16.msra.mxu0 %v356
    %714 = vmatpush.bf16.msra.mxu0 %v354
    %715 = vmatmul.bf16.gmra.mxu0 %v650
    %v716 = vpop.f32.mrf.mxu0
    %v717 = vadd.f32 0.0, %v716
    %v718 = vpop.f32.mrf.mxu0
    %719 = vdwg.mxu0
    %v720 = vadd.f32 %v665, %v704
    %v721 = vadd.f32 %v678, %v717
    %v722 = vxor.u32 %v720, 2147483648
    %v723 = vmul.f32 %v722, 1.442695
    %v724 = vpow.pop %v723
    %v725 = vadd.f32 %v724, 1.0
    %v726 = vrcp.pop %v725
    %v727 = vmul.f32 %v725, %v726
    %v728 = vsub.f32 1.0, %v727
    %v729 = vmul.f32 %v726, %v728
    %v730 = vadd.f32 %v726, %v729
    %vm731 = vweird.f32 %v725
    %vm732 = vweird.f32 %v726
    %vm733 = vmor %vm731, %vm732
    %v734 = vsel %vm733, %v726, %v730
    %v735 = vand.u32 2147483647, %v725
    %vm736 = vcmp.eq.f32.partialorder %v735, 8.507059e+37
    %v737 = vand.u32 %v725, 2147483648
    %v738 = vor.u32 1.1754944e-38, %v737
    %v739 = vsel %vm736, %v738, %v734
    %v740 = vmul.f32 1.0, %v739
    %v741 = vxor.u32 %v721, 2147483648
    %v742 = vmul.f32 %v741, 1.442695
    %v743 = vpow.pop %v742
    %v744 = vadd.f32 %v743, 1.0
    %v745 = vrcp.pop %v744
    %v746 = vmul.f32 %v744, %v745
    %v747 = vsub.f32 1.0, %v746
    %v748 = vmul.f32 %v745, %v747
    %v749 = vadd.f32 %v745, %v748
    %vm750 = vweird.f32 %v744
    %vm751 = vweird.f32 %v745
    %vm752 = vmor %vm750, %vm751
    %v753 = vsel %vm752, %v745, %v749
    %v754 = vand.u32 2147483647, %v744
    %vm755 = vcmp.eq.f32.partialorder %v754, 8.507059e+37
    %v756 = vand.u32 %v744, 2147483648
    %v757 = vor.u32 1.1754944e-38, %v756
    %v758 = vsel %vm755, %v757, %v753
    %v759 = vmul.f32 1.0, %v758
    %v760 = vmul.f32 %v759, %v649
    %v761 = vpack.c.bf16 %v760, %v760
    %762 = vmatpush.bf16.msra.mxu0 %v492
    %763 = vmatpush.bf16.msra.mxu0 %v491
    %764 = vmatpush.bf16.msra.mxu0 %v490
    %765 = vmatpush.bf16.msra.mxu0 %v489
    %766 = vmatpush.bf16.msra.mxu0 %v488
    %767 = vmatpush.bf16.msra.mxu0 %v487
    %768 = vmatpush.bf16.msra.mxu0 %v486
    %769 = vmatpush.bf16.msra.mxu0 %v485
    %770 = vmatmul.bf16.gmra.mxu0 %v761
    %v771 = vpop.f32.mrf.mxu0
    %v772 = vadd.f32 0.0, %v771
    %v773 = vpop.f32.mrf.mxu0
    %774 = vdwg.mxu0
    %v775 = vadd.f32 %v691, %v772
    %v776 = vtanh.pop %v775
    %v777 = vmul.f32 %v740, %v649
    %v778 = vsub.f32 1.0, %v740
    %v779 = vmul.f32 %v778, %v776
    %v780 = vadd.f32 %v777, %v779
    %v781 = vpack.c.bf16 %v780, %v780
    %s782 = scalar_lea.vmem %s6, 8
    %783 = vst [vmem:[%s782] sm:$0xf] %v781
    %s784 = scalar_lea.vmem %s0, 12
    %v785 = vld [vmem:[%s784] sm:$0xf]
    %786 = vmatpush.bf16.msra.mxu0 %v238
    %787 = vmatpush.bf16.msra.mxu0 %v235
    %788 = vmatpush.bf16.msra.mxu0 %v232
    %789 = vmatpush.bf16.msra.mxu0 %v229
    %790 = vmatpush.bf16.msra.mxu0 %v226
    %791 = vmatpush.bf16.msra.mxu0 %v223
    %792 = vmatpush.bf16.msra.mxu0 %v220
    %793 = vmatpush.bf16.msra.mxu0 %v217
    %794 = vmatmul.bf16.gmra.mxu0 %v785
    %v795 = vpop.f32.mrf.mxu0
    %v796 = vadd.f32 %v131, %v795
    %v797 = vpop.f32.mrf.mxu0
    %798 = vdwg.mxu0
    %799 = vmatpush.bf16.msra.mxu0 %v239
    %800 = vmatpush.bf16.msra.mxu0 %v236
    %801 = vmatpush.bf16.msra.mxu0 %v233
    %802 = vmatpush.bf16.msra.mxu0 %v230
    %803 = vmatpush.bf16.msra.mxu0 %v227
    %804 = vmatpush.bf16.msra.mxu0 %v224
    %805 = vmatpush.bf16.msra.mxu0 %v221
    %806 = vmatpush.bf16.msra.mxu0 %v218
    %807 = vmatmul.bf16.gmra.mxu0 %v785
    %v808 = vpop.f32.mrf.mxu0
    %v809 = vadd.f32 %v132, %v808
    %v810 = vpop.f32.mrf.mxu0
    %811 = vdwg.mxu0
    %812 = vmatpush.bf16.msra.mxu0 %v240
    %813 = vmatpush.bf16.msra.mxu0 %v237
    %814 = vmatpush.bf16.msra.mxu0 %v234
    %815 = vmatpush.bf16.msra.mxu0 %v231
    %816 = vmatpush.bf16.msra.mxu0 %v228
    %817 = vmatpush.bf16.msra.mxu0 %v225
    %818 = vmatpush.bf16.msra.mxu0 %v222
    %819 = vmatpush.bf16.msra.mxu0 %v219
    %820 = vmatmul.bf16.gmra.mxu0 %v785
    %v821 = vpop.f32.mrf.mxu0
    %v822 = vadd.f32 %v133, %v821
    %v823 = vpop.f32.mrf.mxu0
    %824 = vdwg.mxu0
    %825 = vmatpush.bf16.msra.mxu0 %v367
    %826 = vmatpush.bf16.msra.mxu0 %v365
    %827 = vmatpush.bf16.msra.mxu0 %v363
    %828 = vmatpush.bf16.msra.mxu0 %v361
    %829 = vmatpush.bf16.msra.mxu0 %v359
    %830 = vmatpush.bf16.msra.mxu0 %v357
    %831 = vmatpush.bf16.msra.mxu0 %v355
    %832 = vmatpush.bf16.msra.mxu0 %v353
    %833 = vmatmul.bf16.gmra.mxu0 %v781
    %v834 = vpop.f32.mrf.mxu0
    %v835 = vadd.f32 0.0, %v834
    %v836 = vpop.f32.mrf.mxu0
    %837 = vdwg.mxu0
    %838 = vmatpush.bf16.msra.mxu0 %v368
    %839 = vmatpush.bf16.msra.mxu0 %v366
    %840 = vmatpush.bf16.msra.mxu0 %v364
    %841 = vmatpush.bf16.msra.mxu0 %v362
    %842 = vmatpush.bf16.msra.mxu0 %v360
    %843 = vmatpush.bf16.msra.mxu0 %v358
    %844 = vmatpush.bf16.msra.mxu0 %v356
    %845 = vmatpush.bf16.msra.mxu0 %v354
    %846 = vmatmul.bf16.gmra.mxu0 %v781
    %v847 = vpop.f32.mrf.mxu0
    %v848 = vadd.f32 0.0, %v847
    %v849 = vpop.f32.mrf.mxu0
    %850 = vdwg.mxu0
    %v851 = vadd.f32 %v796, %v835
    %v852 = vadd.f32 %v809, %v848
    %v853 = vxor.u32 %v851, 2147483648
    %v854 = vmul.f32 %v853, 1.442695
    %v855 = vpow.pop %v854
    %v856 = vadd.f32 %v855, 1.0
    %v857 = vrcp.pop %v856
    %v858 = vmul.f32 %v856, %v857
    %v859 = vsub.f32 1.0, %v858
    %v860 = vmul.f32 %v857, %v859
    %v861 = vadd.f32 %v857, %v860
    %vm862 = vweird.f32 %v856
    %vm863 = vweird.f32 %v857
    %vm864 = vmor %vm862, %vm863
    %v865 = vsel %vm864, %v857, %v861
    %v866 = vand.u32 2147483647, %v856
    %vm867 = vcmp.eq.f32.partialorder %v866, 8.507059e+37
    %v868 = vand.u32 %v856, 2147483648
    %v869 = vor.u32 1.1754944e-38, %v868
    %v870 = vsel %vm867, %v869, %v865
    %v871 = vmul.f32 1.0, %v870
    %v872 = vxor.u32 %v852, 2147483648
    %v873 = vmul.f32 %v872, 1.442695
    %v874 = vpow.pop %v873
    %v875 = vadd.f32 %v874, 1.0
    %v876 = vrcp.pop %v875
    %v877 = vmul.f32 %v875, %v876
    %v878 = vsub.f32 1.0, %v877
    %v879 = vmul.f32 %v876, %v878
    %v880 = vadd.f32 %v876, %v879
    %vm881 = vweird.f32 %v875
    %vm882 = vweird.f32 %v876
    %vm883 = vmor %vm881, %vm882
    %v884 = vsel %vm883, %v876, %v880
    %v885 = vand.u32 2147483647, %v875
    %vm886 = vcmp.eq.f32.partialorder %v885, 8.507059e+37
    %v887 = vand.u32 %v875, 2147483648
    %v888 = vor.u32 1.1754944e-38, %v887
    %v889 = vsel %vm886, %v888, %v884
    %v890 = vmul.f32 1.0, %v889
    %v891 = vmul.f32 %v890, %v780
    %v892 = vpack.c.bf16 %v891, %v891
    %893 = vmatpush.bf16.msra.mxu0 %v492
    %894 = vmatpush.bf16.msra.mxu0 %v491
    %895 = vmatpush.bf16.msra.mxu0 %v490
    %896 = vmatpush.bf16.msra.mxu0 %v489
    %897 = vmatpush.bf16.msra.mxu0 %v488
    %898 = vmatpush.bf16.msra.mxu0 %v487
    %899 = vmatpush.bf16.msra.mxu0 %v486
    %900 = vmatpush.bf16.msra.mxu0 %v485
    %901 = vmatmul.bf16.gmra.mxu0 %v892
    %v902 = vpop.f32.mrf.mxu0
    %v903 = vadd.f32 0.0, %v902
    %v904 = vpop.f32.mrf.mxu0
    %905 = vdwg.mxu0
    %v906 = vadd.f32 %v822, %v903
    %v907 = vtanh.pop %v906
    %v908 = vmul.f32 %v871, %v780
    %v909 = vsub.f32 1.0, %v871
    %v910 = vmul.f32 %v909, %v907
    %v911 = vadd.f32 %v908, %v910
    %v912 = vpack.c.bf16 %v911, %v911
    %s913 = scalar_lea.vmem %s6, 12
    %914 = vst [vmem:[%s913] sm:$0xf] %v912
    %s915 = scalar_lea.vmem %s0, 16
    %v916 = vld [vmem:[%s915] sm:$0xf]
    %917 = vmatpush.bf16.msra.mxu0 %v238
    %918 = vmatpush.bf16.msra.mxu0 %v235
    %919 = vmatpush.bf16.msra.mxu0 %v232
    %920 = vmatpush.bf16.msra.mxu0 %v229
    %921 = vmatpush.bf16.msra.mxu0 %v226
    %922 = vmatpush.bf16.msra.mxu0 %v223
    %923 = vmatpush.bf16.msra.mxu0 %v220
    %924 = vmatpush.bf16.msra.mxu0 %v217
    %925 = vmatmul.bf16.gmra.mxu0 %v916
    %v926 = vpop.f32.mrf.mxu0
    %v927 = vadd.f32 %v131, %v926
    %v928 = vpop.f32.mrf.mxu0
    %929 = vdwg.mxu0
    %930 = vmatpush.bf16.msra.mxu0 %v239
    %931 = vmatpush.bf16.msra.mxu0 %v236
    %932 = vmatpush.bf16.msra.mxu0 %v233
    %933 = vmatpush.bf16.msra.mxu0 %v230
    %934 = vmatpush.bf16.msra.mxu0 %v227
    %935 = vmatpush.bf16.msra.mxu0 %v224
    %936 = vmatpush.bf16.msra.mxu0 %v221
    %937 = vmatpush.bf16.msra.mxu0 %v218
    %938 = vmatmul.bf16.gmra.mxu0 %v916
    %v939 = vpop.f32.mrf.mxu0
    %v940 = vadd.f32 %v132, %v939
    %v941 = vpop.f32.mrf.mxu0
    %942 = vdwg.mxu0
    %943 = vmatpush.bf16.msra.mxu0 %v240
    %944 = vmatpush.bf16.msra.mxu0 %v237
    %945 = vmatpush.bf16.msra.mxu0 %v234
    %946 = vmatpush.bf16.msra.mxu0 %v231
    %947 = vmatpush.bf16.msra.mxu0 %v228
    %948 = vmatpush.bf16.msra.mxu0 %v225
    %949 = vmatpush.bf16.msra.mxu0 %v222
    %950 = vmatpush.bf16.msra.mxu0 %v219
    %951 = vmatmul.bf16.gmra.mxu0 %v916
    %v952 = vpop.f32.mrf.mxu0
    %v953 = vadd.f32 %v133, %v952
    %v954 = vpop.f32.mrf.mxu0
    %955 = vdwg.mxu0
    %956 = vmatpush.bf16.msra.mxu0 %v367
    %957 = vmatpush.bf16.msra.mxu0 %v365
    %958 = vmatpush.bf16.msra.mxu0 %v363
    %959 = vmatpush.bf16.msra.mxu0 %v361
    %960 = vmatpush.bf16.msra.mxu0 %v359
    %961 = vmatpush.bf16.msra.mxu0 %v357
    %962 = vmatpush.bf16.msra.mxu0 %v355
    %963 = vmatpush.bf16.msra.mxu0 %v353
    %964 = vmatmul.bf16.gmra.mxu0 %v912
    %v965 = vpop.f32.mrf.mxu0
    %v966 = vadd.f32 0.0, %v965
    %v967 = vpop.f32.mrf.mxu0
    %968 = vdwg.mxu0
    %969 = vmatpush.bf16.msra.mxu0 %v368
    %970 = vmatpush.bf16.msra.mxu0 %v366
    %971 = vmatpush.bf16.msra.mxu0 %v364
    %972 = vmatpush.bf16.msra.mxu0 %v362
    %973 = vmatpush.bf16.msra.mxu0 %v360
    %974 = vmatpush.bf16.msra.mxu0 %v358
    %975 = vmatpush.bf16.msra.mxu0 %v356
    %976 = vmatpush.bf16.msra.mxu0 %v354
    %977 = vmatmul.bf16.gmra.mxu0 %v912
    %v978 = vpop.f32.mrf.mxu0
    %v979 = vadd.f32 0.0, %v978
    %v980 = vpop.f32.mrf.mxu0
    %981 = vdwg.mxu0
    %v982 = vadd.f32 %v927, %v966
    %v983 = vadd.f32 %v940, %v979
    %v984 = vxor.u32 %v982, 2147483648
    %v985 = vmul.f32 %v984, 1.442695
    %v986 = vpow.pop %v985
    %v987 = vadd.f32 %v986, 1.0
    %v988 = vrcp.pop %v987
    %v989 = vmul.f32 %v987, %v988
    %v990 = vsub.f32 1.0, %v989
    %v991 = vmul.f32 %v988, %v990
    %v992 = vadd.f32 %v988, %v991
    %vm993 = vweird.f32 %v987
    %vm994 = vweird.f32 %v988
    %vm995 = vmor %vm993, %vm994
    %v996 = vsel %vm995, %v988, %v992
    %v997 = vand.u32 2147483647, %v987
    %vm998 = vcmp.eq.f32.partialorder %v997, 8.507059e+37
    %v999 = vand.u32 %v987, 2147483648
    %v1000 = vor.u32 1.1754944e-38, %v999
    %v1001 = vsel %vm998, %v1000, %v996
    %v1002 = vmul.f32 1.0, %v1001
    %v1003 = vxor.u32 %v983, 2147483648
    %v1004 = vmul.f32 %v1003, 1.442695
    %v1005 = vpow.pop %v1004
    %v1006 = vadd.f32 %v1005, 1.0
    %v1007 = vrcp.pop %v1006
    %v1008 = vmul.f32 %v1006, %v1007
    %v1009 = vsub.f32 1.0, %v1008
    %v1010 = vmul.f32 %v1007, %v1009
    %v1011 = vadd.f32 %v1007, %v1010
    %vm1012 = vweird.f32 %v1006
    %vm1013 = vweird.f32 %v1007
    %vm1014 = vmor %vm1012, %vm1013
    %v1015 = vsel %vm1014, %v1007, %v1011
    %v1016 = vand.u32 2147483647, %v1006
    %vm1017 = vcmp.eq.f32.partialorder %v1016, 8.507059e+37
    %v1018 = vand.u32 %v1006, 2147483648
    %v1019 = vor.u32 1.1754944e-38, %v1018
    %v1020 = vsel %vm1017, %v1019, %v1015
    %v1021 = vmul.f32 1.0, %v1020
    %v1022 = vmul.f32 %v1021, %v911
    %v1023 = vpack.c.bf16 %v1022, %v1022
    %1024 = vmatpush.bf16.msra.mxu0 %v492
    %1025 = vmatpush.bf16.msra.mxu0 %v491
    %1026 = vmatpush.bf16.msra.mxu0 %v490
    %1027 = vmatpush.bf16.msra.mxu0 %v489
    %1028 = vmatpush.bf16.msra.mxu0 %v488
    %1029 = vmatpush.bf16.msra.mxu0 %v487
    %1030 = vmatpush.bf16.msra.mxu0 %v486
    %1031 = vmatpush.bf16.msra.mxu0 %v485
    %1032 = vmatmul.bf16.gmra.mxu0 %v1023
    %v1033 = vpop.f32.mrf.mxu0
    %v1034 = vadd.f32 0.0, %v1033
    %v1035 = vpop.f32.mrf.mxu0
    %1036 = vdwg.mxu0
    %v1037 = vadd.f32 %v953, %v1034
    %v1038 = vtanh.pop %v1037
    %v1039 = vmul.f32 %v1002, %v911
    %v1040 = vsub.f32 1.0, %v1002
    %v1041 = vmul.f32 %v1040, %v1038
    %v1042 = vadd.f32 %v1039, %v1041
    %v1043 = vpack.c.bf16 %v1042, %v1042
    %s1044 = scalar_lea.vmem %s6, 16
    %1045 = vst [vmem:[%s1044] sm:$0xf] %v1043
    %s1046 = scalar_lea.vmem %s0, 20
    %v1047 = vld [vmem:[%s1046] sm:$0xf]
    %1048 = vmatpush.bf16.msra.mxu0 %v238
    %1049 = vmatpush.bf16.msra.mxu0 %v235
    %1050 = vmatpush.bf16.msra.mxu0 %v232
    %1051 = vmatpush.bf16.msra.mxu0 %v229
    %1052 = vmatpush.bf16.msra.mxu0 %v226
    %1053 = vmatpush.bf16.msra.mxu0 %v223
    %1054 = vmatpush.bf16.msra.mxu0 %v220
    %1055 = vmatpush.bf16.msra.mxu0 %v217
    %1056 = vmatmul.bf16.gmra.mxu0 %v1047
    %v1057 = vpop.f32.mrf.mxu0
    %v1058 = vadd.f32 %v131, %v1057
    %v1059 = vpop.f32.mrf.mxu0
    %1060 = vdwg.mxu0
    %1061 = vmatpush.bf16.msra.mxu0 %v239
    %1062 = vmatpush.bf16.msra.mxu0 %v236
    %1063 = vmatpush.bf16.msra.mxu0 %v233
    %1064 = vmatpush.bf16.msra.mxu0 %v230
    %1065 = vmatpush.bf16.msra.mxu0 %v227
    %1066 = vmatpush.bf16.msra.mxu0 %v224
    %1067 = vmatpush.bf16.msra.mxu0 %v221
    %1068 = vmatpush.bf16.msra.mxu0 %v218
    %1069 = vmatmul.bf16.gmra.mxu0 %v1047
    %v1070 = vpop.f32.mrf.mxu0
    %v1071 = vadd.f32 %v132, %v1070
    %v1072 = vpop.f32.mrf.mxu0
    %1073 = vdwg.mxu0
    %1074 = vmatpush.bf16.msra.mxu0 %v240
    %1075 = vmatpush.bf16.msra.mxu0 %v237
    %1076 = vmatpush.bf16.msra.mxu0 %v234
    %1077 = vmatpush.bf16.msra.mxu0 %v231
    %1078 = vmatpush.bf16.msra.mxu0 %v228
    %1079 = vmatpush.bf16.msra.mxu0 %v225
    %1080 = vmatpush.bf16.msra.mxu0 %v222
    %1081 = vmatpush.bf16.msra.mxu0 %v219
    %1082 = vmatmul.bf16.gmra.mxu0 %v1047
    %v1083 = vpop.f32.mrf.mxu0
    %v1084 = vadd.f32 %v133, %v1083
    %v1085 = vpop.f32.mrf.mxu0
    %1086 = vdwg.mxu0
    %1087 = vmatpush.bf16.msra.mxu0 %v367
    %1088 = vmatpush.bf16.msra.mxu0 %v365
    %1089 = vmatpush.bf16.msra.mxu0 %v363
    %1090 = vmatpush.bf16.msra.mxu0 %v361
    %1091 = vmatpush.bf16.msra.mxu0 %v359
    %1092 = vmatpush.bf16.msra.mxu0 %v357
    %1093 = vmatpush.bf16.msra.mxu0 %v355
    %1094 = vmatpush.bf16.msra.mxu0 %v353
    %1095 = vmatmul.bf16.gmra.mxu0 %v1043
    %v1096 = vpop.f32.mrf.mxu0
    %v1097 = vadd.f32 0.0, %v1096
    %v1098 = vpop.f32.mrf.mxu0
    %1099 = vdwg.mxu0
    %1100 = vmatpush.bf16.msra.mxu0 %v368
    %1101 = vmatpush.bf16.msra.mxu0 %v366
    %1102 = vmatpush.bf16.msra.mxu0 %v364
    %1103 = vmatpush.bf16.msra.mxu0 %v362
    %1104 = vmatpush.bf16.msra.mxu0 %v360
    %1105 = vmatpush.bf16.msra.mxu0 %v358
    %1106 = vmatpush.bf16.msra.mxu0 %v356
    %1107 = vmatpush.bf16.msra.mxu0 %v354
    %1108 = vmatmul.bf16.gmra.mxu0 %v1043
    %v1109 = vpop.f32.mrf.mxu0
    %v1110 = vadd.f32 0.0, %v1109
    %v1111 = vpop.f32.mrf.mxu0
    %1112 = vdwg.mxu0
    %v1113 = vadd.f32 %v1058, %v1097
    %v1114 = vadd.f32 %v1071, %v1110
    %v1115 = vxor.u32 %v1113, 2147483648
    %v1116 = vmul.f32 %v1115, 1.442695
    %v1117 = vpow.pop %v1116
    %v1118 = vadd.f32 %v1117, 1.0
    %v1119 = vrcp.pop %v1118
    %v1120 = vmul.f32 %v1118, %v1119
    %v1121 = vsub.f32 1.0, %v1120
    %v1122 = vmul.f32 %v1119, %v1121
    %v1123 = vadd.f32 %v1119, %v1122
    %vm1124 = vweird.f32 %v1118
    %vm1125 = vweird.f32 %v1119
    %vm1126 = vmor %vm1124, %vm1125
    %v1127 = vsel %vm1126, %v1119, %v1123
    %v1128 = vand.u32 2147483647, %v1118
    %vm1129 = vcmp.eq.f32.partialorder %v1128, 8.507059e+37
    %v1130 = vand.u32 %v1118, 2147483648
    %v1131 = vor.u32 1.1754944e-38, %v1130
    %v1132 = vsel %vm1129, %v1131, %v1127
    %v1133 = vmul.f32 1.0, %v1132
    %v1134 = vxor.u32 %v1114, 2147483648
    %v1135 = vmul.f32 %v1134, 1.442695
    %v1136 = vpow.pop %v1135
    %v1137 = vadd.f32 %v1136, 1.0
    %v1138 = vrcp.pop %v1137
    %v1139 = vmul.f32 %v1137, %v1138
    %v1140 = vsub.f32 1.0, %v1139
    %v1141 = vmul.f32 %v1138, %v1140
    %v1142 = vadd.f32 %v1138, %v1141
    %vm1143 = vweird.f32 %v1137
    %vm1144 = vweird.f32 %v1138
    %vm1145 = vmor %vm1143, %vm1144
    %v1146 = vsel %vm1145, %v1138, %v1142
    %v1147 = vand.u32 2147483647, %v1137
    %vm1148 = vcmp.eq.f32.partialorder %v1147, 8.507059e+37
    %v1149 = vand.u32 %v1137, 2147483648
    %v1150 = vor.u32 1.1754944e-38, %v1149
    %v1151 = vsel %vm1148, %v1150, %v1146
    %v1152 = vmul.f32 1.0, %v1151
    %v1153 = vmul.f32 %v1152, %v1042
    %v1154 = vpack.c.bf16 %v1153, %v1153
    %1155 = vmatpush.bf16.msra.mxu0 %v492
    %1156 = vmatpush.bf16.msra.mxu0 %v491
    %1157 = vmatpush.bf16.msra.mxu0 %v490
    %1158 = vmatpush.bf16.msra.mxu0 %v489
    %1159 = vmatpush.bf16.msra.mxu0 %v488
    %1160 = vmatpush.bf16.msra.mxu0 %v487
    %1161 = vmatpush.bf16.msra.mxu0 %v486
    %1162 = vmatpush.bf16.msra.mxu0 %v485
    %1163 = vmatmul.bf16.gmra.mxu0 %v1154
    %v1164 = vpop.f32.mrf.mxu0
    %v1165 = vadd.f32 0.0, %v1164
    %v1166 = vpop.f32.mrf.mxu0
    %1167 = vdwg.mxu0
    %v1168 = vadd.f32 %v1084, %v1165
    %v1169 = vtanh.pop %v1168
    %v1170 = vmul.f32 %v1133, %v1042
    %v1171 = vsub.f32 1.0, %v1133
    %v1172 = vmul.f32 %v1171, %v1169
    %v1173 = vadd.f32 %v1170, %v1172
    %v1174 = vpack.c.bf16 %v1173, %v1173
    %s1175 = scalar_lea.vmem %s6, 20
    %1176 = vst [vmem:[%s1175] sm:$0xf] %v1174
    %s1177 = scalar_lea.vmem %s0, 24
    %v1178 = vld [vmem:[%s1177] sm:$0xf]
    %1179 = vmatpush.bf16.msra.mxu0 %v238
    %1180 = vmatpush.bf16.msra.mxu0 %v235
    %1181 = vmatpush.bf16.msra.mxu0 %v232
    %1182 = vmatpush.bf16.msra.mxu0 %v229
    %1183 = vmatpush.bf16.msra.mxu0 %v226
    %1184 = vmatpush.bf16.msra.mxu0 %v223
    %1185 = vmatpush.bf16.msra.mxu0 %v220
    %1186 = vmatpush.bf16.msra.mxu0 %v217
    %1187 = vmatmul.bf16.gmra.mxu0 %v1178
    %v1188 = vpop.f32.mrf.mxu0
    %v1189 = vadd.f32 %v131, %v1188
    %v1190 = vpop.f32.mrf.mxu0
    %1191 = vdwg.mxu0
    %1192 = vmatpush.bf16.msra.mxu0 %v239
    %1193 = vmatpush.bf16.msra.mxu0 %v236
    %1194 = vmatpush.bf16.msra.mxu0 %v233
    %1195 = vmatpush.bf16.msra.mxu0 %v230
    %1196 = vmatpush.bf16.msra.mxu0 %v227
    %1197 = vmatpush.bf16.msra.mxu0 %v224
    %1198 = vmatpush.bf16.msra.mxu0 %v221
    %1199 = vmatpush.bf16.msra.mxu0 %v218
    %1200 = vmatmul.bf16.gmra.mxu0 %v1178
    %v1201 = vpop.f32.mrf.mxu0
    %v1202 = vadd.f32 %v132, %v1201
    %v1203 = vpop.f32.mrf.mxu0
    %1204 = vdwg.mxu0
    %1205 = vmatpush.bf16.msra.mxu0 %v240
    %1206 = vmatpush.bf16.msra.mxu0 %v237
    %1207 = vmatpush.bf16.msra.mxu0 %v234
    %1208 = vmatpush.bf16.msra.mxu0 %v231
    %1209 = vmatpush.bf16.msra.mxu0 %v228
    %1210 = vmatpush.bf16.msra.mxu0 %v225
    %1211 = vmatpush.bf16.msra.mxu0 %v222
    %1212 = vmatpush.bf16.msra.mxu0 %v219
    %1213 = vmatmul.bf16.gmra.mxu0 %v1178
    %v1214 = vpop.f32.mrf.mxu0
    %v1215 = vadd.f32 %v133, %v1214
    %v1216 = vpop.f32.mrf.mxu0
    %1217 = vdwg.mxu0
    %1218 = vmatpush.bf16.msra.mxu0 %v367
    %1219 = vmatpush.bf16.msra.mxu0 %v365
    %1220 = vmatpush.bf16.msra.mxu0 %v363
    %1221 = vmatpush.bf16.msra.mxu0 %v361
    %1222 = vmatpush.bf16.msra.mxu0 %v359
    %1223 = vmatpush.bf16.msra.mxu0 %v357
    %1224 = vmatpush.bf16.msra.mxu0 %v355
    %1225 = vmatpush.bf16.msra.mxu0 %v353
    %1226 = vmatmul.bf16.gmra.mxu0 %v1174
    %v1227 = vpop.f32.mrf.mxu0
    %v1228 = vadd.f32 0.0, %v1227
    %v1229 = vpop.f32.mrf.mxu0
    %1230 = vdwg.mxu0
    %1231 = vmatpush.bf16.msra.mxu0 %v368
    %1232 = vmatpush.bf16.msra.mxu0 %v366
    %1233 = vmatpush.bf16.msra.mxu0 %v364
    %1234 = vmatpush.bf16.msra.mxu0 %v362
    %1235 = vmatpush.bf16.msra.mxu0 %v360
    %1236 = vmatpush.bf16.msra.mxu0 %v358
    %1237 = vmatpush.bf16.msra.mxu0 %v356
    %1238 = vmatpush.bf16.msra.mxu0 %v354
    %1239 = vmatmul.bf16.gmra.mxu0 %v1174
    %v1240 = vpop.f32.mrf.mxu0
    %v1241 = vadd.f32 0.0, %v1240
    %v1242 = vpop.f32.mrf.mxu0
    %1243 = vdwg.mxu0
    %v1244 = vadd.f32 %v1189, %v1228
    %v1245 = vadd.f32 %v1202, %v1241
    %v1246 = vxor.u32 %v1244, 2147483648
    %v1247 = vmul.f32 %v1246, 1.442695
    %v1248 = vpow.pop %v1247
    %v1249 = vadd.f32 %v1248, 1.0
    %v1250 = vrcp.pop %v1249
    %v1251 = vmul.f32 %v1249, %v1250
    %v1252 = vsub.f32 1.0, %v1251
    %v1253 = vmul.f32 %v1250, %v1252
    %v1254 = vadd.f32 %v1250, %v1253
    %vm1255 = vweird.f32 %v1249
    %vm1256 = vweird.f32 %v1250
    %vm1257 = vmor %vm1255, %vm1256
    %v1258 = vsel %vm1257, %v1250, %v1254
    %v1259 = vand.u32 2147483647, %v1249
    %vm1260 = vcmp.eq.f32.partialorder %v1259, 8.507059e+37
    %v1261 = vand.u32 %v1249, 2147483648
    %v1262 = vor.u32 1.1754944e-38, %v1261
    %v1263 = vsel %vm1260, %v1262, %v1258
    %v1264 = vmul.f32 1.0, %v1263
    %v1265 = vxor.u32 %v1245, 2147483648
    %v1266 = vmul.f32 %v1265, 1.442695
    %v1267 = vpow.pop %v1266
    %v1268 = vadd.f32 %v1267, 1.0
    %v1269 = vrcp.pop %v1268
    %v1270 = vmul.f32 %v1268, %v1269
    %v1271 = vsub.f32 1.0, %v1270
    %v1272 = vmul.f32 %v1269, %v1271
    %v1273 = vadd.f32 %v1269, %v1272
    %vm1274 = vweird.f32 %v1268
    %vm1275 = vweird.f32 %v1269
    %vm1276 = vmor %vm1274, %vm1275
    %v1277 = vsel %vm1276, %v1269, %v1273
    %v1278 = vand.u32 2147483647, %v1268
    %vm1279 = vcmp.eq.f32.partialorder %v1278, 8.507059e+37
    %v1280 = vand.u32 %v1268, 2147483648
    %v1281 = vor.u32 1.1754944e-38, %v1280
    %v1282 = vsel %vm1279, %v1281, %v1277
    %v1283 = vmul.f32 1.0, %v1282
    %v1284 = vmul.f32 %v1283, %v1173
    %v1285 = vpack.c.bf16 %v1284, %v1284
    %1286 = vmatpush.bf16.msra.mxu0 %v492
    %1287 = vmatpush.bf16.msra.mxu0 %v491
    %1288 = vmatpush.bf16.msra.mxu0 %v490
    %1289 = vmatpush.bf16.msra.mxu0 %v489
    %1290 = vmatpush.bf16.msra.mxu0 %v488
    %1291 = vmatpush.bf16.msra.mxu0 %v487
    %1292 = vmatpush.bf16.msra.mxu0 %v486
    %1293 = vmatpush.bf16.msra.mxu0 %v485
    %1294 = vmatmul.bf16.gmra.mxu0 %v1285
    %v1295 = vpop.f32.mrf.mxu0
    %v1296 = vadd.f32 0.0, %v1295
    %v1297 = vpop.f32.mrf.mxu0
    %1298 = vdwg.mxu0
    %v1299 = vadd.f32 %v1215, %v1296
    %v1300 = vtanh.pop %v1299
    %v1301 = vmul.f32 %v1264, %v1173
    %v1302 = vsub.f32 1.0, %v1264
    %v1303 = vmul.f32 %v1302, %v1300
    %v1304 = vadd.f32 %v1301, %v1303
    %v1305 = vpack.c.bf16 %v1304, %v1304
    %s1306 = scalar_lea.vmem %s6, 24
    %1307 = vst [vmem:[%s1306] sm:$0xf] %v1305
    %s1308 = scalar_lea.vmem %s0, 28
    %v1309 = vld [vmem:[%s1308] sm:$0xf]
    %1310 = vmatpush.bf16.msra.mxu0 %v238
    %1311 = vmatpush.bf16.msra.mxu0 %v235
    %1312 = vmatpush.bf16.msra.mxu0 %v232
    %1313 = vmatpush.bf16.msra.mxu0 %v229
    %1314 = vmatpush.bf16.msra.mxu0 %v226
    %1315 = vmatpush.bf16.msra.mxu0 %v223
    %1316 = vmatpush.bf16.msra.mxu0 %v220
    %1317 = vmatpush.bf16.msra.mxu0 %v217
    %1318 = vmatmul.bf16.gmra.mxu0 %v1309
    %v1319 = vpop.f32.mrf.mxu0
    %v1320 = vadd.f32 %v131, %v1319
    %v1321 = vpop.f32.mrf.mxu0
    %1322 = vdwg.mxu0
    %1323 = vmatpush.bf16.msra.mxu0 %v239
    %1324 = vmatpush.bf16.msra.mxu0 %v236
    %1325 = vmatpush.bf16.msra.mxu0 %v233
    %1326 = vmatpush.bf16.msra.mxu0 %v230
    %1327 = vmatpush.bf16.msra.mxu0 %v227
    %1328 = vmatpush.bf16.msra.mxu0 %v224
    %1329 = vmatpush.bf16.msra.mxu0 %v221
    %1330 = vmatpush.bf16.msra.mxu0 %v218
    %1331 = vmatmul.bf16.gmra.mxu0 %v1309
    %v1332 = vpop.f32.mrf.mxu0
    %v1333 = vadd.f32 %v132, %v1332
    %v1334 = vpop.f32.mrf.mxu0
    %1335 = vdwg.mxu0
    %1336 = vmatpush.bf16.msra.mxu0 %v240
    %1337 = vmatpush.bf16.msra.mxu0 %v237
    %1338 = vmatpush.bf16.msra.mxu0 %v234
    %1339 = vmatpush.bf16.msra.mxu0 %v231
    %1340 = vmatpush.bf16.msra.mxu0 %v228
    %1341 = vmatpush.bf16.msra.mxu0 %v225
    %1342 = vmatpush.bf16.msra.mxu0 %v222
    %1343 = vmatpush.bf16.msra.mxu0 %v219
    %1344 = vmatmul.bf16.gmra.mxu0 %v1309
    %v1345 = vpop.f32.mrf.mxu0
    %v1346 = vadd.f32 %v133, %v1345
    %v1347 = vpop.f32.mrf.mxu0
    %1348 = vdwg.mxu0
    %1349 = vmatpush.bf16.msra.mxu0 %v367
    %1350 = vmatpush.bf16.msra.mxu0 %v365
    %1351 = vmatpush.bf16.msra.mxu0 %v363
    %1352 = vmatpush.bf16.msra.mxu0 %v361
    %1353 = vmatpush.bf16.msra.mxu0 %v359
    %1354 = vmatpush.bf16.msra.mxu0 %v357
    %1355 = vmatpush.bf16.msra.mxu0 %v355
    %1356 = vmatpush.bf16.msra.mxu0 %v353
    %1357 = vmatmul.bf16.gmra.mxu0 %v1305
    %v1358 = vpop.f32.mrf.mxu0
    %v1359 = vadd.f32 0.0, %v1358
    %v1360 = vpop.f32.mrf.mxu0
    %1361 = vdwg.mxu0
    %1362 = vmatpush.bf16.msra.mxu0 %v368
    %1363 = vmatpush.bf16.msra.mxu0 %v366
    %1364 = vmatpush.bf16.msra.mxu0 %v364
    %1365 = vmatpush.bf16.msra.mxu0 %v362
    %1366 = vmatpush.bf16.msra.mxu0 %v360
    %1367 = vmatpush.bf16.msra.mxu0 %v358
    %1368 = vmatpush.bf16.msra.mxu0 %v356
    %1369 = vmatpush.bf16.msra.mxu0 %v354
    %1370 = vmatmul.bf16.gmra.mxu0 %v1305
    %v1371 = vpop.f32.mrf.mxu0
    %v1372 = vadd.f32 0.0, %v1371
    %v1373 = vpop.f32.mrf.mxu0
    %1374 = vdwg.mxu0
    %v1375 = vadd.f32 %v1320, %v1359
    %v1376 = vadd.f32 %v1333, %v1372
    %v1377 = vxor.u32 %v1375, 2147483648
    %v1378 = vmul.f32 %v1377, 1.442695
    %v1379 = vpow.pop %v1378
    %v1380 = vadd.f32 %v1379, 1.0
    %v1381 = vrcp.pop %v1380
    %v1382 = vmul.f32 %v1380, %v1381
    %v1383 = vsub.f32 1.0, %v1382
    %v1384 = vmul.f32 %v1381, %v1383
    %v1385 = vadd.f32 %v1381, %v1384
    %vm1386 = vweird.f32 %v1380
    %vm1387 = vweird.f32 %v1381
    %vm1388 = vmor %vm1386, %vm1387
    %v1389 = vsel %vm1388, %v1381, %v1385
    %v1390 = vand.u32 2147483647, %v1380
    %vm1391 = vcmp.eq.f32.partialorder %v1390, 8.507059e+37
    %v1392 = vand.u32 %v1380, 2147483648
    %v1393 = vor.u32 1.1754944e-38, %v1392
    %v1394 = vsel %vm1391, %v1393, %v1389
    %v1395 = vmul.f32 1.0, %v1394
    %v1396 = vxor.u32 %v1376, 2147483648
    %v1397 = vmul.f32 %v1396, 1.442695
    %v1398 = vpow.pop %v1397
    %v1399 = vadd.f32 %v1398, 1.0
    %v1400 = vrcp.pop %v1399
    %v1401 = vmul.f32 %v1399, %v1400
    %v1402 = vsub.f32 1.0, %v1401
    %v1403 = vmul.f32 %v1400, %v1402
    %v1404 = vadd.f32 %v1400, %v1403
    %vm1405 = vweird.f32 %v1399
    %vm1406 = vweird.f32 %v1400
    %vm1407 = vmor %vm1405, %vm1406
    %v1408 = vsel %vm1407, %v1400, %v1404
    %v1409 = vand.u32 2147483647, %v1399
    %vm1410 = vcmp.eq.f32.partialorder %v1409, 8.507059e+37
    %v1411 = vand.u32 %v1399, 2147483648
    %v1412 = vor.u32 1.1754944e-38, %v1411
    %v1413 = vsel %vm1410, %v1412, %v1408
    %v1414 = vmul.f32 1.0, %v1413
    %v1415 = vmul.f32 %v1414, %v1304
    %v1416 = vpack.c.bf16 %v1415, %v1415
    %1417 = vmatpush.bf16.msra.mxu0 %v492
    %1418 = vmatpush.bf16.msra.mxu0 %v491
    %1419 = vmatpush.bf16.msra.mxu0 %v490
    %1420 = vmatpush.bf16.msra.mxu0 %v489
    %1421 = vmatpush.bf16.msra.mxu0 %v488
    %1422 = vmatpush.bf16.msra.mxu0 %v487
    %1423 = vmatpush.bf16.msra.mxu0 %v486
    %1424 = vmatpush.bf16.msra.mxu0 %v485
    %1425 = vmatmul.bf16.gmra.mxu0 %v1416
    %v1426 = vpop.f32.mrf.mxu0
    %v1427 = vadd.f32 0.0, %v1426
    %v1428 = vpop.f32.mrf.mxu0
    %1429 = vdwg.mxu0
    %v1430 = vadd.f32 %v1346, %v1427
    %v1431 = vtanh.pop %v1430
    %v1432 = vmul.f32 %v1395, %v1304
    %v1433 = vsub.f32 1.0, %v1395
    %v1434 = vmul.f32 %v1433, %v1431
    %v1435 = vadd.f32 %v1432, %v1434
    %v1436 = vpack.c.bf16 %v1435, %v1435
    %s1437 = scalar_lea.vmem %s6, 28
    %1438 = vst [vmem:[%s1437] sm:$0xf] %v1436
    %p1439 = scmp.lt.s32.totalorder 0, 0
    // Predicated region
    $region38: #{multilayer_gru_forward.2} parent=1 // pred_check
      %p1440 = pneg %p1439
    $region39: #{multilayer_gru_forward.2} parent=1 // pred_check_branch
      %1442 = sbr.rel (%p1440) target = $region41
    $region40: #{multilayer_gru_forward.2} parent=1 // pred_region
      %1443 = vst [vmem:[#allocation2] sm:$0xff] %v1435
    $region41: #{multilayer_gru_forward.2} parent=1 // pred_fallthru
      _
    // Predicated region
    $region42: #{multilayer_gru_forward.2} parent=1 // pred_check
      %p1444 = pneg %p57
    $region43: #{multilayer_gru_forward.2} parent=1 // pred_check_branch
      %1446 = sbr.rel (%p1444) target = $region45
    $region44: #{multilayer_gru_forward.2} parent=1 // pred_region
      %1447 = vst [vmem:[%s7] sm:$0xff] %v1435
    $region45: #{multilayer_gru_forward.2} parent=1 // pred_fallthru
      _
    // Predicated region
    $region46: #{multilayer_gru_forward.2} parent=1 // pred_check
      _
    $region47: #{multilayer_gru_forward.2} parent=1 // pred_check_branch
      %1449 = sbr.rel (0) target = $region49
    $region48: #{multilayer_gru_forward.2} parent=1 // pred_region
      _
    $region49: #{multilayer_gru_forward.2} parent=1 // pred_fallthru
      _
    // Predicated region
    $region50: #{multilayer_gru_forward.2} parent=1 // pred_check
      _
    $region51: #{multilayer_gru_forward.2} parent=1 // pred_check_branch
      %1451 = sbr.rel (0) target = $region53
    $region52: #{multilayer_gru_forward.2} parent=1 // pred_region
      _
    $region53: #{multilayer_gru_forward.2} parent=1 // pred_fallthru
      _
    // Predicated region
    $region54: #{multilayer_gru_forward.2} parent=1 // pred_check
      _
    $region55: #{multilayer_gru_forward.2} parent=1 // pred_check_branch
      %1453 = sbr.rel (0) target = $region57
    $region56: #{multilayer_gru_forward.2} parent=1 // pred_region
      _
    $region57: #{multilayer_gru_forward.2} parent=1 // pred_fallthru
      _
    // Predicated region
    $region58: #{multilayer_gru_forward.2} parent=1 // pred_check
      _
    $region59: #{multilayer_gru_forward.2} parent=1 // pred_check_branch
      %1455 = sbr.rel (0) target = $region61
    $region60: #{multilayer_gru_forward.2} parent=1 // pred_region
      _
    $region61: #{multilayer_gru_forward.2} parent=1 // pred_fallthru
      _
    %1456 = vsyncpa [#allocation4], 1
    %1457 = vsyncpa [#allocation6], 1

// kernel: multilayer_gru_forward.3
$region0: #{multilayer_gru_forward.3}
  #allocation0 [shape = 'u32[]', space=smem, size = 0x4, offset = 0x4, fixed_abs, tag = 'smem constant byte address 0x4 - core index']
  #allocation1 [shape = 'u32[72,128]{1,0:T(1,128)}', space=vmem, size = 0x9000, scoped, tag = 'internal scratch']
  #allocation2 [shape = 'f32[8,128]{1,0:T(8,128)}', space=vmem, size = 0x1000, scoped, tag = 'scratch operand']
  %s0 = inlined_call_operand.vmem [shape: bf16[8,8,128], index: 0, kind: input, shape index: {}]
  %s1 = inlined_call_operand.vmem [shape: f32[8,128], index: 1, kind: input, shape index: {}]
  %s2 = inlined_call_operand.hbm [shape: bf16[128,384], index: 2, kind: input, shape index: {}]
  %s3 = inlined_call_operand.vmem [shape: f32[1,384], index: 3, kind: input, shape index: {}]
  %s4 = inlined_call_operand.hbm [shape: bf16[128,256], index: 4, kind: input, shape index: {}]
  %s5 = inlined_call_operand.hbm [shape: bf16[128,128], index: 5, kind: input, shape index: {}]
  %s6 = inlined_call_operand.hbm [shape: bf16[128,128], index: 6, kind: input, shape index: {}]
  %s7 = inlined_call_operand.vmem [shape: f32[1,128], index: 7, kind: input, shape index: {}]
  %s8 = inlined_call_operand.vmem [shape: f32[8,8,128], index: 8, kind: output, shape index: {0}]
  %s9 = inlined_call_operand.vmem [shape: f32[8,128], index: 9, kind: output, shape index: {1}]
  %10 = xla_tuple %s8, %s9
  %s11 = sld [smem:[#allocation0]]
  $region78: #{multilayer_gru_forward.3} parent=0
    _
  %s13 = ssub.s32 1, %s11
  %s14 = scalar_select 0, %s13, %s11
  $region1: #{multilayer_gru_forward.3} parent=0
    #allocation3 [shape = 'u8[98304]{0}', space=vmem, size = 0x18000, scoped, tag = 'input window, operand 2, single buffered']
    #allocation4 [shape = 's32[1]{0}', space=sflag, size = 0x4, scoped, tag = 'scoped memory for multilayer_gru_forward.3']
    #allocation5 [shape = 'u8[65536]{0}', space=vmem, size = 0x10000, scoped, tag = 'input window, operand 4, single buffered']
    #allocation6 [shape = 's32[1]{0}', space=sflag, size = 0x4, scoped, tag = 'scoped memory for multilayer_gru_forward.3']
    #allocation7 [shape = 'u8[32768]{0}', space=vmem, size = 0x8000, scoped, tag = 'input window, operand 5, single buffered']
    #allocation8 [shape = 'u8[32768]{0}', space=vmem, size = 0x8000, scoped, tag = 'input window, operand 6, single buffered']
    #allocation9 [shape = 's32[1]{0}', space=sflag, size = 0x4, scoped, tag = 'scoped memory for multilayer_gru_forward.3']
    %15 = vsyncpa [#allocation4], 0
    %16 = vsyncpa [#allocation6], 0
    %17 = vsyncpa [#allocation9], 0
    // Predicated region
    $region2: #{multilayer_gru_forward.3} parent=1 // pred_check
      _
    $region3: #{multilayer_gru_forward.3} parent=1 // pred_check_branch
      %19 = sbr.rel (0) target = $region5
    $region4: #{multilayer_gru_forward.3} parent=1 // pred_region
      _
    $region5: #{multilayer_gru_forward.3} parent=1 // pred_fallthru
      _
    // Predicated region
    $region6: #{multilayer_gru_forward.3} parent=1 // pred_check
      _
    $region7: #{multilayer_gru_forward.3} parent=1 // pred_check_branch
      %21 = sbr.rel (0) target = $region9
    $region8: #{multilayer_gru_forward.3} parent=1 // pred_region
      _
    $region9: #{multilayer_gru_forward.3} parent=1 // pred_fallthru
      _
    // Predicated region
    $region10: #{multilayer_gru_forward.3} parent=1 // pred_check
      _
    $region11: #{multilayer_gru_forward.3} parent=1 // pred_check_branch
      %23 = sbr.rel (0) target = $region13
    $region12: #{multilayer_gru_forward.3} parent=1 // pred_region
      %25 = vsyncadd [#allocation4], 0
      %s26 = sshll.u32 %s2, 4
      %s27 = int_to_ptr.hbm [resolvable:$true] %s26
      %s28 = sshll.u32 [#allocation3], 4
      %s29 = int_to_ptr.vmem [resolvable:$true] %s28
      %34 = dma.hbm_to_vmem [thread:$0]  %s27, 3072, %s29, [#allocation4], 192, 192, 12
    $region13: #{multilayer_gru_forward.3} parent=1 // pred_fallthru
      _
    // Predicated region
    $region14: #{multilayer_gru_forward.3} parent=1 // pred_check
      _
    $region15: #{multilayer_gru_forward.3} parent=1 // pred_check_branch
      %36 = sbr.rel (0) target = $region17
    $region16: #{multilayer_gru_forward.3} parent=1 // pred_region
      _
    $region17: #{multilayer_gru_forward.3} parent=1 // pred_fallthru
      _
    // Predicated region
    $region18: #{multilayer_gru_forward.3} parent=1 // pred_check
      _
    $region19: #{multilayer_gru_forward.3} parent=1 // pred_check_branch
      %38 = sbr.rel (0) target = $region21
    $region20: #{multilayer_gru_forward.3} parent=1 // pred_region
      %40 = vsyncadd [#allocation6], 0
      %s41 = sshll.u32 %s4, 4
      %s42 = int_to_ptr.hbm [resolvable:$true] %s41
      %s43 = sshll.u32 [#allocation5], 4
      %s44 = int_to_ptr.vmem [resolvable:$true] %s43
      %49 = dma.hbm_to_vmem [thread:$0]  %s42, 2048, %s44, [#allocation6], 128, 128, 8
    $region21: #{multilayer_gru_forward.3} parent=1 // pred_fallthru
      _
    // Predicated region
    $region22: #{multilayer_gru_forward.3} parent=1 // pred_check
      _
    $region23: #{multilayer_gru_forward.3} parent=1 // pred_check_branch
      %51 = sbr.rel (0) target = $region25
    $region24: #{multilayer_gru_forward.3} parent=1 // pred_region
      %53 = vsyncadd [#allocation6], 0
      %s54 = sshll.u32 %s5, 4
      %s55 = int_to_ptr.hbm [resolvable:$true] %s54
      %s56 = sshll.u32 [#allocation7], 4
      %s57 = int_to_ptr.vmem [resolvable:$true] %s56
      %62 = dma.hbm_to_vmem [thread:$0]  %s55, 1024, %s57, [#allocation6], 64, 64, 4
    $region25: #{multilayer_gru_forward.3} parent=1 // pred_fallthru
      _
    // Predicated region
    $region26: #{multilayer_gru_forward.3} parent=1 // pred_check
      _
    $region27: #{multilayer_gru_forward.3} parent=1 // pred_check_branch
      %64 = sbr.rel (0) target = $region29
    $region28: #{multilayer_gru_forward.3} parent=1 // pred_region
      %66 = vsyncadd [#allocation9], 0
      %s67 = sshll.u32 %s6, 4
      %s68 = int_to_ptr.hbm [resolvable:$true] %s67
      %s69 = sshll.u32 [#allocation8], 4
      %s70 = int_to_ptr.vmem [resolvable:$true] %s69
      %75 = dma.hbm_to_vmem [thread:$0]  %s68, 1024, %s70, [#allocation9], 64, 64, 4
    $region29: #{multilayer_gru_forward.3} parent=1 // pred_fallthru
      _
    // Predicated region
    $region30: #{multilayer_gru_forward.3} parent=1 // pred_check
      _
    $region31: #{multilayer_gru_forward.3} parent=1 // pred_check_branch
      %77 = sbr.rel (0) target = $region33
    $region32: #{multilayer_gru_forward.3} parent=1 // pred_region
      _
    $region33: #{multilayer_gru_forward.3} parent=1 // pred_fallthru
      _
    // Predicated region
    $region34: #{multilayer_gru_forward.3} parent=1 // pred_check
      _
    $region35: #{multilayer_gru_forward.3} parent=1 // pred_check_branch
      %79 = sbr.rel (0) target = $region37
    $region36: #{multilayer_gru_forward.3} parent=1 // pred_region
      %81 = dma.done [#allocation4], 3072
    $region37: #{multilayer_gru_forward.3} parent=1 // pred_fallthru
      _
    // Predicated region
    $region38: #{multilayer_gru_forward.3} parent=1 // pred_check
      _
    $region39: #{multilayer_gru_forward.3} parent=1 // pred_check_branch
      %83 = sbr.rel (0) target = $region41
    $region40: #{multilayer_gru_forward.3} parent=1 // pred_region
      %85 = dma.done [#allocation6], 2048
    $region41: #{multilayer_gru_forward.3} parent=1 // pred_fallthru
      _
    // Predicated region
    $region42: #{multilayer_gru_forward.3} parent=1 // pred_check
      _
    $region43: #{multilayer_gru_forward.3} parent=1 // pred_check_branch
      %87 = sbr.rel (0) target = $region45
    $region44: #{multilayer_gru_forward.3} parent=1 // pred_region
      %89 = dma.done [#allocation6], 1024
    $region45: #{multilayer_gru_forward.3} parent=1 // pred_fallthru
      _
    // Predicated region
    $region46: #{multilayer_gru_forward.3} parent=1 // pred_check
      _
    $region47: #{multilayer_gru_forward.3} parent=1 // pred_check_branch
      %91 = sbr.rel (0) target = $region49
    $region48: #{multilayer_gru_forward.3} parent=1 // pred_region
      %93 = dma.done [#allocation9], 1024
    $region49: #{multilayer_gru_forward.3} parent=1 // pred_fallthru
      _
    %p94 = scmp.eq.s32.totalorder 0, 0
    // Predicated region
    $region50: #{multilayer_gru_forward.3} parent=1 // pred_check
      %p95 = pneg %p94
    $region51: #{multilayer_gru_forward.3} parent=1 // pred_check_branch
      %97 = sbr.rel (%p95) target = $region53
    $region52: #{multilayer_gru_forward.3} parent=1 // pred_region
      %v98 = vld [vmem:[%s1] sm:$0xff]
      %99 = vst [vmem:[#allocation2] sm:$0xff] %v98
    $region53: #{multilayer_gru_forward.3} parent=1 // pred_fallthru
      _
    %v100 = vld [vmem:[#allocation3] sm:$0xff]
    %v101 = vld [vmem:[#allocation3 + $0x8] sm:$0xf]
    %v102 = vld [vmem:[#allocation3 + $0xc] sm:$0xff]
    %v103 = vld [vmem:[#allocation3 + $0x14] sm:$0xf]
    %v104 = vld [vmem:[#allocation3 + $0x18] sm:$0xff]
    %v105 = vld [vmem:[#allocation3 + $0x20] sm:$0xf]
    %v106 = vld [vmem:[#allocation3 + $0x24] sm:$0xff]
    %v107 = vld [vmem:[#allocation3 + $0x2c] sm:$0xf]
    %v108 = vld [vmem:[#allocation3 + $0x30] sm:$0xff]
    %v109 = vld [vmem:[#allocation3 + $0x38] sm:$0xf]
    %v110 = vld [vmem:[#allocation3 + $0x3c] sm:$0xff]
    %v111 = vld [vmem:[#allocation3 + $0x44] sm:$0xf]
    %v112 = vld [vmem:[#allocation3 + $0x48] sm:$0xff]
    %v113 = vld [vmem:[#allocation3 + $0x50] sm:$0xf]
    %v114 = vld [vmem:[#allocation3 + $0x54] sm:$0xff]
    %v115 = vld [vmem:[#allocation3 + $0x5c] sm:$0xf]
    %v116 = vld [vmem:[#allocation3 + $0x60] sm:$0xff]
    %v117 = vld [vmem:[#allocation3 + $0x68] sm:$0xf]
    %v118 = vld [vmem:[#allocation3 + $0x6c] sm:$0xff]
    %v119 = vld [vmem:[#allocation3 + $0x74] sm:$0xf]
    %v120 = vld [vmem:[#allocation3 + $0x78] sm:$0xff]
    %v121 = vld [vmem:[#allocation3 + $0x80] sm:$0xf]
    %v122 = vld [vmem:[#allocation3 + $0x84] sm:$0xff]
    %v123 = vld [vmem:[#allocation3 + $0x8c] sm:$0xf]
    %v124 = vld [vmem:[#allocation3 + $0x90] sm:$0xff]
    %v125 = vld [vmem:[#allocation3 + $0x98] sm:$0xf]
    %v126 = vld [vmem:[#allocation3 + $0x9c] sm:$0xff]
    %v127 = vld [vmem:[#allocation3 + $0xa4] sm:$0xf]
    %v128 = vld [vmem:[#allocation3 + $0xa8] sm:$0xff]
    %v129 = vld [vmem:[#allocation3 + $0xb0] sm:$0xf]
    %v130 = vld [vmem:[#allocation3 + $0xb4] sm:$0xff]
    %v131 = vld [vmem:[#allocation3 + $0xbc] sm:$0xf]
    %v132 = vld [vmem:[%s3] sm:$0x7]
    %v133 = vld [vmem:[#allocation5] sm:$0xff]
    %v134 = vld [vmem:[#allocation5 + $0x8] sm:$0xff]
    %v135 = vld [vmem:[#allocation5 + $0x10] sm:$0xff]
    %v136 = vld [vmem:[#allocation5 + $0x18] sm:$0xff]
    %v137 = vld [vmem:[#allocation5 + $0x20] sm:$0xff]
    %v138 = vld [vmem:[#allocation5 + $0x28] sm:$0xff]
    %v139 = vld [vmem:[#allocation5 + $0x30] sm:$0xff]
    %v140 = vld [vmem:[#allocation5 + $0x38] sm:$0xff]
    %v141 = vld [vmem:[#allocation5 + $0x40] sm:$0xff]
    %v142 = vld [vmem:[#allocation5 + $0x48] sm:$0xff]
    %v143 = vld [vmem:[#allocation5 + $0x50] sm:$0xff]
    %v144 = vld [vmem:[#allocation5 + $0x58] sm:$0xff]
    %v145 = vld [vmem:[#allocation5 + $0x60] sm:$0xff]
    %v146 = vld [vmem:[#allocation5 + $0x68] sm:$0xff]
    %v147 = vld [vmem:[#allocation5 + $0x70] sm:$0xff]
    %v148 = vld [vmem:[#allocation5 + $0x78] sm:$0xff]
    %v149 = vld [vmem:[#allocation7] sm:$0xf]
    %v150 = vld [vmem:[#allocation7 + $0x4] sm:$0xf]
    %v151 = vld [vmem:[#allocation7 + $0x8] sm:$0xf]
    %v152 = vld [vmem:[#allocation7 + $0xc] sm:$0xf]
    %v153 = vld [vmem:[#allocation7 + $0x10] sm:$0xf]
    %v154 = vld [vmem:[#allocation7 + $0x14] sm:$0xf]
    %v155 = vld [vmem:[#allocation7 + $0x18] sm:$0xf]
    %v156 = vld [vmem:[#allocation7 + $0x1c] sm:$0xf]
    %v157 = vld [vmem:[#allocation7 + $0x20] sm:$0xf]
    %v158 = vld [vmem:[#allocation7 + $0x24] sm:$0xf]
    %v159 = vld [vmem:[#allocation7 + $0x28] sm:$0xf]
    %v160 = vld [vmem:[#allocation7 + $0x2c] sm:$0xf]
    %v161 = vld [vmem:[#allocation7 + $0x30] sm:$0xf]
    %v162 = vld [vmem:[#allocation7 + $0x34] sm:$0xf]
    %v163 = vld [vmem:[#allocation7 + $0x38] sm:$0xf]
    %v164 = vld [vmem:[#allocation7 + $0x3c] sm:$0xf]
    %v165 = vld [vmem:[#allocation8] sm:$0xf]
    %v166 = vld [vmem:[#allocation8 + $0x4] sm:$0xf]
    %v167 = vld [vmem:[#allocation8 + $0x8] sm:$0xf]
    %v168 = vld [vmem:[#allocation8 + $0xc] sm:$0xf]
    %v169 = vld [vmem:[#allocation8 + $0x10] sm:$0xf]
    %v170 = vld [vmem:[#allocation8 + $0x14] sm:$0xf]
    %v171 = vld [vmem:[#allocation8 + $0x18] sm:$0xf]
    %v172 = vld [vmem:[#allocation8 + $0x1c] sm:$0xf]
    %v173 = vld [vmem:[#allocation8 + $0x20] sm:$0xf]
    %v174 = vld [vmem:[#allocation8 + $0x24] sm:$0xf]
    %v175 = vld [vmem:[#allocation8 + $0x28] sm:$0xf]
    %v176 = vld [vmem:[#allocation8 + $0x2c] sm:$0xf]
    %v177 = vld [vmem:[#allocation8 + $0x30] sm:$0xf]
    %v178 = vld [vmem:[#allocation8 + $0x34] sm:$0xf]
    %v179 = vld [vmem:[#allocation8 + $0x38] sm:$0xf]
    %v180 = vld [vmem:[#allocation8 + $0x3c] sm:$0xf]
    %v181 = vld [vmem:[%s7] sm:$0x1]
    %v183 = vperm.slane %v181, 0
    %v185 = vld [vmem:[#allocation2] sm:$0xff]
    %v186 = vld [vmem:[%s0] sm:$0xf]
    %v188 = vperm.slane %v132, 0
    %v189 = vperm.slane %v132, 1
    %v190 = vperm.slane %v132, 2
    %v226 = vunpack.c.l.b16 %v100
    %v227 = vunpack.c.h.b16 %v100
    %v228 = vunpack.c.l.b16 %v101
    %v229 = vunpack.c.l.b16 %v102
    %v230 = vunpack.c.h.b16 %v102
    %v231 = vunpack.c.l.b16 %v103
    %v232 = vunpack.c.l.b16 %v104
    %v233 = vunpack.c.h.b16 %v104
    %v234 = vunpack.c.l.b16 %v105
    %v235 = vunpack.c.l.b16 %v106
    %v236 = vunpack.c.h.b16 %v106
    %v237 = vunpack.c.l.b16 %v107
    %v238 = vunpack.c.l.b16 %v108
    %v239 = vunpack.c.h.b16 %v108
    %v240 = vunpack.c.l.b16 %v109
    %v241 = vunpack.c.l.b16 %v110
    %v242 = vunpack.c.h.b16 %v110
    %v243 = vunpack.c.l.b16 %v111
    %v244 = vunpack.c.l.b16 %v112
    %v245 = vunpack.c.h.b16 %v112
    %v246 = vunpack.c.l.b16 %v113
    %v247 = vunpack.c.l.b16 %v114
    %v248 = vunpack.c.h.b16 %v114
    %v249 = vunpack.c.l.b16 %v115
    %v250 = vunpack.c.l.b16 %v116
    %v251 = vunpack.c.h.b16 %v116
    %v252 = vunpack.c.l.b16 %v117
    %v253 = vunpack.c.l.b16 %v118
    %v254 = vunpack.c.h.b16 %v118
    %v255 = vunpack.c.l.b16 %v119
    %v256 = vunpack.c.l.b16 %v120
    %v257 = vunpack.c.h.b16 %v120
    %v258 = vunpack.c.l.b16 %v121
    %v259 = vunpack.c.l.b16 %v122
    %v260 = vunpack.c.h.b16 %v122
    %v261 = vunpack.c.l.b16 %v123
    %v262 = vunpack.c.l.b16 %v124
    %v263 = vunpack.c.h.b16 %v124
    %v264 = vunpack.c.l.b16 %v125
    %v265 = vunpack.c.l.b16 %v126
    %v266 = vunpack.c.h.b16 %v126
    %v267 = vunpack.c.l.b16 %v127
    %v268 = vunpack.c.l.b16 %v128
    %v269 = vunpack.c.h.b16 %v128
    %v270 = vunpack.c.l.b16 %v129
    %v271 = vunpack.c.l.b16 %v130
    %v272 = vunpack.c.h.b16 %v130
    %v273 = vunpack.c.l.b16 %v131
    %v274 = vpack.c.b16 %v229, %v226
    %v275 = vpack.c.b16 %v230, %v227
    %v276 = vpack.c.b16 %v231, %v228
    %v277 = vpack.c.b16 %v235, %v232
    %v278 = vpack.c.b16 %v236, %v233
    %v279 = vpack.c.b16 %v237, %v234
    %v280 = vpack.c.b16 %v241, %v238
    %v281 = vpack.c.b16 %v242, %v239
    %v282 = vpack.c.b16 %v243, %v240
    %v283 = vpack.c.b16 %v247, %v244
    %v284 = vpack.c.b16 %v248, %v245
    %v285 = vpack.c.b16 %v249, %v246
    %v286 = vpack.c.b16 %v253, %v250
    %v287 = vpack.c.b16 %v254, %v251
    %v288 = vpack.c.b16 %v255, %v252
    %v289 = vpack.c.b16 %v259, %v256
    %v290 = vpack.c.b16 %v260, %v257
    %v291 = vpack.c.b16 %v261, %v258
    %v292 = vpack.c.b16 %v265, %v262
    %v293 = vpack.c.b16 %v266, %v263
    %v294 = vpack.c.b16 %v267, %v264
    %v295 = vpack.c.b16 %v271, %v268
    %v296 = vpack.c.b16 %v272, %v269
    %v297 = vpack.c.b16 %v273, %v270
    %322 = vmatpush.bf16.msra.mxu0 %v295
    %323 = vmatpush.bf16.msra.mxu0 %v292
    %324 = vmatpush.bf16.msra.mxu0 %v289
    %325 = vmatpush.bf16.msra.mxu0 %v286
    %326 = vmatpush.bf16.msra.mxu0 %v283
    %327 = vmatpush.bf16.msra.mxu0 %v280
    %328 = vmatpush.bf16.msra.mxu0 %v277
    %329 = vmatpush.bf16.msra.mxu0 %v274
    %330 = vmatmul.bf16.gmra.mxu0 %v186
    %v331 = vpop.f32.mrf.mxu0
    %v332 = vadd.f32 %v188, %v331
    %v333 = vpop.f32.mrf.mxu0
    %334 = vdwg.mxu0
    %335 = vmatpush.bf16.msra.mxu0 %v296
    %336 = vmatpush.bf16.msra.mxu0 %v293
    %337 = vmatpush.bf16.msra.mxu0 %v290
    %338 = vmatpush.bf16.msra.mxu0 %v287
    %339 = vmatpush.bf16.msra.mxu0 %v284
    %340 = vmatpush.bf16.msra.mxu0 %v281
    %341 = vmatpush.bf16.msra.mxu0 %v278
    %342 = vmatpush.bf16.msra.mxu0 %v275
    %343 = vmatmul.bf16.gmra.mxu0 %v186
    %v344 = vpop.f32.mrf.mxu0
    %v345 = vadd.f32 %v189, %v344
    %v346 = vpop.f32.mrf.mxu0
    %347 = vdwg.mxu0
    %348 = vmatpush.bf16.msra.mxu0 %v297
    %349 = vmatpush.bf16.msra.mxu0 %v294
    %350 = vmatpush.bf16.msra.mxu0 %v291
    %351 = vmatpush.bf16.msra.mxu0 %v288
    %352 = vmatpush.bf16.msra.mxu0 %v285
    %353 = vmatpush.bf16.msra.mxu0 %v282
    %354 = vmatpush.bf16.msra.mxu0 %v279
    %355 = vmatpush.bf16.msra.mxu0 %v276
    %356 = vmatmul.bf16.gmra.mxu0 %v186
    %v357 = vpop.f32.mrf.mxu0
    %v358 = vadd.f32 %v190, %v357
    %v359 = vpop.f32.mrf.mxu0
    %360 = vdwg.mxu0
    %v361 = vpack.c.bf16 %v185, %v185
    %v378 = vunpack.c.l.b16 %v133
    %v379 = vunpack.c.h.b16 %v133
    %v380 = vunpack.c.l.b16 %v134
    %v381 = vunpack.c.h.b16 %v134
    %v382 = vunpack.c.l.b16 %v135
    %v383 = vunpack.c.h.b16 %v135
    %v384 = vunpack.c.l.b16 %v136
    %v385 = vunpack.c.h.b16 %v136
    %v386 = vunpack.c.l.b16 %v137
    %v387 = vunpack.c.h.b16 %v137
    %v388 = vunpack.c.l.b16 %v138
    %v389 = vunpack.c.h.b16 %v138
    %v390 = vunpack.c.l.b16 %v139
    %v391 = vunpack.c.h.b16 %v139
    %v392 = vunpack.c.l.b16 %v140
    %v393 = vunpack.c.h.b16 %v140
    %v394 = vunpack.c.l.b16 %v141
    %v395 = vunpack.c.h.b16 %v141
    %v396 = vunpack.c.l.b16 %v142
    %v397 = vunpack.c.h.b16 %v142
    %v398 = vunpack.c.l.b16 %v143
    %v399 = vunpack.c.h.b16 %v143
    %v400 = vunpack.c.l.b16 %v144
    %v401 = vunpack.c.h.b16 %v144
    %v402 = vunpack.c.l.b16 %v145
    %v403 = vunpack.c.h.b16 %v145
    %v404 = vunpack.c.l.b16 %v146
    %v405 = vunpack.c.h.b16 %v146
    %v406 = vunpack.c.l.b16 %v147
    %v407 = vunpack.c.h.b16 %v147
    %v408 = vunpack.c.l.b16 %v148
    %v409 = vunpack.c.h.b16 %v148
    %v410 = vpack.c.b16 %v380, %v378
    %v411 = vpack.c.b16 %v381, %v379
    %v412 = vpack.c.b16 %v384, %v382
    %v413 = vpack.c.b16 %v385, %v383
    %v414 = vpack.c.b16 %v388, %v386
    %v415 = vpack.c.b16 %v389, %v387
    %v416 = vpack.c.b16 %v392, %v390
    %v417 = vpack.c.b16 %v393, %v391
    %v418 = vpack.c.b16 %v396, %v394
    %v419 = vpack.c.b16 %v397, %v395
    %v420 = vpack.c.b16 %v400, %v398
    %v421 = vpack.c.b16 %v401, %v399
    %v422 = vpack.c.b16 %v404, %v402
    %v423 = vpack.c.b16 %v405, %v403
    %v424 = vpack.c.b16 %v408, %v406
    %v425 = vpack.c.b16 %v409, %v407
    %442 = vmatpush.bf16.msra.mxu0 %v424
    %443 = vmatpush.bf16.msra.mxu0 %v422
    %444 = vmatpush.bf16.msra.mxu0 %v420
    %445 = vmatpush.bf16.msra.mxu0 %v418
    %446 = vmatpush.bf16.msra.mxu0 %v416
    %447 = vmatpush.bf16.msra.mxu0 %v414
    %448 = vmatpush.bf16.msra.mxu0 %v412
    %449 = vmatpush.bf16.msra.mxu0 %v410
    %450 = vmatmul.bf16.gmra.mxu0 %v361
    %v451 = vpop.f32.mrf.mxu0
    %v452 = vadd.f32 0.0, %v451
    %v453 = vpop.f32.mrf.mxu0
    %454 = vdwg.mxu0
    %455 = vmatpush.bf16.msra.mxu0 %v425
    %456 = vmatpush.bf16.msra.mxu0 %v423
    %457 = vmatpush.bf16.msra.mxu0 %v421
    %458 = vmatpush.bf16.msra.mxu0 %v419
    %459 = vmatpush.bf16.msra.mxu0 %v417
    %460 = vmatpush.bf16.msra.mxu0 %v415
    %461 = vmatpush.bf16.msra.mxu0 %v413
    %462 = vmatpush.bf16.msra.mxu0 %v411
    %463 = vmatmul.bf16.gmra.mxu0 %v361
    %v464 = vpop.f32.mrf.mxu0
    %v465 = vadd.f32 0.0, %v464
    %v466 = vpop.f32.mrf.mxu0
    %467 = vdwg.mxu0
    %v468 = vadd.f32 %v332, %v452
    %v469 = vadd.f32 %v345, %v465
    %v470 = vxor.u32 %v468, 2147483648
    %v471 = vmul.f32 %v470, 1.442695
    %v472 = vpow.pop %v471
    %v473 = vadd.f32 %v472, 1.0
    %v474 = vrcp.pop %v473
    %v475 = vmul.f32 %v473, %v474
    %v476 = vsub.f32 1.0, %v475
    %v477 = vmul.f32 %v474, %v476
    %v478 = vadd.f32 %v474, %v477
    %vm479 = vweird.f32 %v473
    %vm480 = vweird.f32 %v474
    %vm481 = vmor %vm479, %vm480
    %v482 = vsel %vm481, %v474, %v478
    %v483 = vand.u32 2147483647, %v473
    %vm484 = vcmp.eq.f32.partialorder %v483, 8.507059e+37
    %v485 = vand.u32 %v473, 2147483648
    %v486 = vor.u32 1.1754944e-38, %v485
    %v487 = vsel %vm484, %v486, %v482
    %v488 = vmul.f32 1.0, %v487
    %v489 = vxor.u32 %v469, 2147483648
    %v490 = vmul.f32 %v489, 1.442695
    %v491 = vpow.pop %v490
    %v492 = vadd.f32 %v491, 1.0
    %v493 = vrcp.pop %v492
    %v494 = vmul.f32 %v492, %v493
    %v495 = vsub.f32 1.0, %v494
    %v496 = vmul.f32 %v493, %v495
    %v497 = vadd.f32 %v493, %v496
    %vm498 = vweird.f32 %v492
    %vm499 = vweird.f32 %v493
    %vm500 = vmor %vm498, %vm499
    %v501 = vsel %vm500, %v493, %v497
    %v502 = vand.u32 2147483647, %v492
    %vm503 = vcmp.eq.f32.partialorder %v502, 8.507059e+37
    %v504 = vand.u32 %v492, 2147483648
    %v505 = vor.u32 1.1754944e-38, %v504
    %v506 = vsel %vm503, %v505, %v501
    %v507 = vmul.f32 1.0, %v506
    %v508 = vmul.f32 %v507, %v185
    %v509 = vpack.c.bf16 %v508, %v508
    %v526 = vunpack.c.l.b16 %v149
    %v527 = vunpack.c.l.b16 %v150
    %v528 = vunpack.c.l.b16 %v151
    %v529 = vunpack.c.l.b16 %v152
    %v530 = vunpack.c.l.b16 %v153
    %v531 = vunpack.c.l.b16 %v154
    %v532 = vunpack.c.l.b16 %v155
    %v533 = vunpack.c.l.b16 %v156
    %v534 = vunpack.c.l.b16 %v157
    %v535 = vunpack.c.l.b16 %v158
    %v536 = vunpack.c.l.b16 %v159
    %v537 = vunpack.c.l.b16 %v160
    %v538 = vunpack.c.l.b16 %v161
    %v539 = vunpack.c.l.b16 %v162
    %v540 = vunpack.c.l.b16 %v163
    %v541 = vunpack.c.l.b16 %v164
    %v542 = vpack.c.b16 %v527, %v526
    %v543 = vpack.c.b16 %v529, %v528
    %v544 = vpack.c.b16 %v531, %v530
    %v545 = vpack.c.b16 %v533, %v532
    %v546 = vpack.c.b16 %v535, %v534
    %v547 = vpack.c.b16 %v537, %v536
    %v548 = vpack.c.b16 %v539, %v538
    %v549 = vpack.c.b16 %v541, %v540
    %558 = vmatpush.bf16.msra.mxu0 %v549
    %559 = vmatpush.bf16.msra.mxu0 %v548
    %560 = vmatpush.bf16.msra.mxu0 %v547
    %561 = vmatpush.bf16.msra.mxu0 %v546
    %562 = vmatpush.bf16.msra.mxu0 %v545
    %563 = vmatpush.bf16.msra.mxu0 %v544
    %564 = vmatpush.bf16.msra.mxu0 %v543
    %565 = vmatpush.bf16.msra.mxu0 %v542
    %566 = vmatmul.bf16.gmra.mxu0 %v509
    %v567 = vpop.f32.mrf.mxu0
    %v568 = vadd.f32 0.0, %v567
    %v569 = vpop.f32.mrf.mxu0
    %570 = vdwg.mxu0
    %v571 = vadd.f32 %v358, %v568
    %v572 = vtanh.pop %v571
    %v573 = vmul.f32 %v488, %v185
    %v574 = vsub.f32 1.0, %v488
    %v575 = vmul.f32 %v574, %v572
    %v576 = vadd.f32 %v573, %v575
    %v577 = vpack.c.bf16 %v576, %v576
    %v594 = vunpack.c.l.b16 %v165
    %v595 = vunpack.c.l.b16 %v166
    %v596 = vunpack.c.l.b16 %v167
    %v597 = vunpack.c.l.b16 %v168
    %v598 = vunpack.c.l.b16 %v169
    %v599 = vunpack.c.l.b16 %v170
    %v600 = vunpack.c.l.b16 %v171
    %v601 = vunpack.c.l.b16 %v172
    %v602 = vunpack.c.l.b16 %v173
    %v603 = vunpack.c.l.b16 %v174
    %v604 = vunpack.c.l.b16 %v175
    %v605 = vunpack.c.l.b16 %v176
    %v606 = vunpack.c.l.b16 %v177
    %v607 = vunpack.c.l.b16 %v178
    %v608 = vunpack.c.l.b16 %v179
    %v609 = vunpack.c.l.b16 %v180
    %v610 = vpack.c.b16 %v595, %v594
    %v611 = vpack.c.b16 %v597, %v596
    %v612 = vpack.c.b16 %v599, %v598
    %v613 = vpack.c.b16 %v601, %v600
    %v614 = vpack.c.b16 %v603, %v602
    %v615 = vpack.c.b16 %v605, %v604
    %v616 = vpack.c.b16 %v607, %v606
    %v617 = vpack.c.b16 %v609, %v608
    %626 = vmatpush.bf16.msra.mxu0 %v617
    %627 = vmatpush.bf16.msra.mxu0 %v616
    %628 = vmatpush.bf16.msra.mxu0 %v615
    %629 = vmatpush.bf16.msra.mxu0 %v614
    %630 = vmatpush.bf16.msra.mxu0 %v613
    %631 = vmatpush.bf16.msra.mxu0 %v612
    %632 = vmatpush.bf16.msra.mxu0 %v611
    %633 = vmatpush.bf16.msra.mxu0 %v610
    %634 = vmatmul.bf16.gmra.mxu0 %v577
    %v635 = vpop.f32.mrf.mxu0
    %v636 = vadd.f32 %v183, %v635
    %v637 = vpop.f32.mrf.mxu0
    %638 = vdwg.mxu0
    %639 = vst [vmem:[%s8] sm:$0xff] %v636
    %s640 = scalar_lea.vmem %s0, 4
    %v641 = vld [vmem:[%s640] sm:$0xf]
    %642 = vmatpush.bf16.msra.mxu0 %v295
    %643 = vmatpush.bf16.msra.mxu0 %v292
    %644 = vmatpush.bf16.msra.mxu0 %v289
    %645 = vmatpush.bf16.msra.mxu0 %v286
    %646 = vmatpush.bf16.msra.mxu0 %v283
    %647 = vmatpush.bf16.msra.mxu0 %v280
    %648 = vmatpush.bf16.msra.mxu0 %v277
    %649 = vmatpush.bf16.msra.mxu0 %v274
    %650 = vmatmul.bf16.gmra.mxu0 %v641
    %v651 = vpop.f32.mrf.mxu0
    %v652 = vadd.f32 %v188, %v651
    %v653 = vpop.f32.mrf.mxu0
    %654 = vdwg.mxu0
    %655 = vmatpush.bf16.msra.mxu0 %v296
    %656 = vmatpush.bf16.msra.mxu0 %v293
    %657 = vmatpush.bf16.msra.mxu0 %v290
    %658 = vmatpush.bf16.msra.mxu0 %v287
    %659 = vmatpush.bf16.msra.mxu0 %v284
    %660 = vmatpush.bf16.msra.mxu0 %v281
    %661 = vmatpush.bf16.msra.mxu0 %v278
    %662 = vmatpush.bf16.msra.mxu0 %v275
    %663 = vmatmul.bf16.gmra.mxu0 %v641
    %v664 = vpop.f32.mrf.mxu0
    %v665 = vadd.f32 %v189, %v664
    %v666 = vpop.f32.mrf.mxu0
    %667 = vdwg.mxu0
    %668 = vmatpush.bf16.msra.mxu0 %v297
    %669 = vmatpush.bf16.msra.mxu0 %v294
    %670 = vmatpush.bf16.msra.mxu0 %v291
    %671 = vmatpush.bf16.msra.mxu0 %v288
    %672 = vmatpush.bf16.msra.mxu0 %v285
    %673 = vmatpush.bf16.msra.mxu0 %v282
    %674 = vmatpush.bf16.msra.mxu0 %v279
    %675 = vmatpush.bf16.msra.mxu0 %v276
    %676 = vmatmul.bf16.gmra.mxu0 %v641
    %v677 = vpop.f32.mrf.mxu0
    %v678 = vadd.f32 %v190, %v677
    %v679 = vpop.f32.mrf.mxu0
    %680 = vdwg.mxu0
    %681 = vmatpush.bf16.msra.mxu0 %v424
    %682 = vmatpush.bf16.msra.mxu0 %v422
    %683 = vmatpush.bf16.msra.mxu0 %v420
    %684 = vmatpush.bf16.msra.mxu0 %v418
    %685 = vmatpush.bf16.msra.mxu0 %v416
    %686 = vmatpush.bf16.msra.mxu0 %v414
    %687 = vmatpush.bf16.msra.mxu0 %v412
    %688 = vmatpush.bf16.msra.mxu0 %v410
    %689 = vmatmul.bf16.gmra.mxu0 %v577
    %v690 = vpop.f32.mrf.mxu0
    %v691 = vadd.f32 0.0, %v690
    %v692 = vpop.f32.mrf.mxu0
    %693 = vdwg.mxu0
    %694 = vmatpush.bf16.msra.mxu0 %v425
    %695 = vmatpush.bf16.msra.mxu0 %v423
    %696 = vmatpush.bf16.msra.mxu0 %v421
    %697 = vmatpush.bf16.msra.mxu0 %v419
    %698 = vmatpush.bf16.msra.mxu0 %v417
    %699 = vmatpush.bf16.msra.mxu0 %v415
    %700 = vmatpush.bf16.msra.mxu0 %v413
    %701 = vmatpush.bf16.msra.mxu0 %v411
    %702 = vmatmul.bf16.gmra.mxu0 %v577
    %v703 = vpop.f32.mrf.mxu0
    %v704 = vadd.f32 0.0, %v703
    %v705 = vpop.f32.mrf.mxu0
    %706 = vdwg.mxu0
    %v707 = vadd.f32 %v652, %v691
    %v708 = vadd.f32 %v665, %v704
    %v709 = vxor.u32 %v707, 2147483648
    %v710 = vmul.f32 %v709, 1.442695
    %v711 = vpow.pop %v710
    %v712 = vadd.f32 %v711, 1.0
    %v713 = vrcp.pop %v712
    %v714 = vmul.f32 %v712, %v713
    %v715 = vsub.f32 1.0, %v714
    %v716 = vmul.f32 %v713, %v715
    %v717 = vadd.f32 %v713, %v716
    %vm718 = vweird.f32 %v712
    %vm719 = vweird.f32 %v713
    %vm720 = vmor %vm718, %vm719
    %v721 = vsel %vm720, %v713, %v717
    %v722 = vand.u32 2147483647, %v712
    %vm723 = vcmp.eq.f32.partialorder %v722, 8.507059e+37
    %v724 = vand.u32 %v712, 2147483648
    %v725 = vor.u32 1.1754944e-38, %v724
    %v726 = vsel %vm723, %v725, %v721
    %v727 = vmul.f32 1.0, %v726
    %v728 = vxor.u32 %v708, 2147483648
    %v729 = vmul.f32 %v728, 1.442695
    %v730 = vpow.pop %v729
    %v731 = vadd.f32 %v730, 1.0
    %v732 = vrcp.pop %v731
    %v733 = vmul.f32 %v731, %v732
    %v734 = vsub.f32 1.0, %v733
    %v735 = vmul.f32 %v732, %v734
    %v736 = vadd.f32 %v732, %v735
    %vm737 = vweird.f32 %v731
    %vm738 = vweird.f32 %v732
    %vm739 = vmor %vm737, %vm738
    %v740 = vsel %vm739, %v732, %v736
    %v741 = vand.u32 2147483647, %v731
    %vm742 = vcmp.eq.f32.partialorder %v741, 8.507059e+37
    %v743 = vand.u32 %v731, 2147483648
    %v744 = vor.u32 1.1754944e-38, %v743
    %v745 = vsel %vm742, %v744, %v740
    %v746 = vmul.f32 1.0, %v745
    %v747 = vmul.f32 %v746, %v576
    %v748 = vpack.c.bf16 %v747, %v747
    %749 = vmatpush.bf16.msra.mxu0 %v549
    %750 = vmatpush.bf16.msra.mxu0 %v548
    %751 = vmatpush.bf16.msra.mxu0 %v547
    %752 = vmatpush.bf16.msra.mxu0 %v546
    %753 = vmatpush.bf16.msra.mxu0 %v545
    %754 = vmatpush.bf16.msra.mxu0 %v544
    %755 = vmatpush.bf16.msra.mxu0 %v543
    %756 = vmatpush.bf16.msra.mxu0 %v542
    %757 = vmatmul.bf16.gmra.mxu0 %v748
    %v758 = vpop.f32.mrf.mxu0
    %v759 = vadd.f32 0.0, %v758
    %v760 = vpop.f32.mrf.mxu0
    %761 = vdwg.mxu0
    %v762 = vadd.f32 %v678, %v759
    %v763 = vtanh.pop %v762
    %v764 = vmul.f32 %v727, %v576
    %v765 = vsub.f32 1.0, %v727
    %v766 = vmul.f32 %v765, %v763
    %v767 = vadd.f32 %v764, %v766
    %v768 = vpack.c.bf16 %v767, %v767
    %769 = vmatpush.bf16.msra.mxu0 %v617
    %770 = vmatpush.bf16.msra.mxu0 %v616
    %771 = vmatpush.bf16.msra.mxu0 %v615
    %772 = vmatpush.bf16.msra.mxu0 %v614
    %773 = vmatpush.bf16.msra.mxu0 %v613
    %774 = vmatpush.bf16.msra.mxu0 %v612
    %775 = vmatpush.bf16.msra.mxu0 %v611
    %776 = vmatpush.bf16.msra.mxu0 %v610
    %777 = vmatmul.bf16.gmra.mxu0 %v768
    %v778 = vpop.f32.mrf.mxu0
    %v779 = vadd.f32 %v183, %v778
    %v780 = vpop.f32.mrf.mxu0
    %781 = vdwg.mxu0
    %s782 = scalar_lea.vmem %s8, 8
    %783 = vst [vmem:[%s782] sm:$0xff] %v779
    %s784 = scalar_lea.vmem %s0, 8
    %v785 = vld [vmem:[%s784] sm:$0xf]
    %786 = vmatpush.bf16.msra.mxu0 %v295
    %787 = vmatpush.bf16.msra.mxu0 %v292
    %788 = vmatpush.bf16.msra.mxu0 %v289
    %789 = vmatpush.bf16.msra.mxu0 %v286
    %790 = vmatpush.bf16.msra.mxu0 %v283
    %791 = vmatpush.bf16.msra.mxu0 %v280
    %792 = vmatpush.bf16.msra.mxu0 %v277
    %793 = vmatpush.bf16.msra.mxu0 %v274
    %794 = vmatmul.bf16.gmra.mxu0 %v785
    %v795 = vpop.f32.mrf.mxu0
    %v796 = vadd.f32 %v188, %v795
    %v797 = vpop.f32.mrf.mxu0
    %798 = vdwg.mxu0
    %799 = vmatpush.bf16.msra.mxu0 %v296
    %800 = vmatpush.bf16.msra.mxu0 %v293
    %801 = vmatpush.bf16.msra.mxu0 %v290
    %802 = vmatpush.bf16.msra.mxu0 %v287
    %803 = vmatpush.bf16.msra.mxu0 %v284
    %804 = vmatpush.bf16.msra.mxu0 %v281
    %805 = vmatpush.bf16.msra.mxu0 %v278
    %806 = vmatpush.bf16.msra.mxu0 %v275
    %807 = vmatmul.bf16.gmra.mxu0 %v785
    %v808 = vpop.f32.mrf.mxu0
    %v809 = vadd.f32 %v189, %v808
    %v810 = vpop.f32.mrf.mxu0
    %811 = vdwg.mxu0
    %812 = vmatpush.bf16.msra.mxu0 %v297
    %813 = vmatpush.bf16.msra.mxu0 %v294
    %814 = vmatpush.bf16.msra.mxu0 %v291
    %815 = vmatpush.bf16.msra.mxu0 %v288
    %816 = vmatpush.bf16.msra.mxu0 %v285
    %817 = vmatpush.bf16.msra.mxu0 %v282
    %818 = vmatpush.bf16.msra.mxu0 %v279
    %819 = vmatpush.bf16.msra.mxu0 %v276
    %820 = vmatmul.bf16.gmra.mxu0 %v785
    %v821 = vpop.f32.mrf.mxu0
    %v822 = vadd.f32 %v190, %v821
    %v823 = vpop.f32.mrf.mxu0
    %824 = vdwg.mxu0
    %825 = vmatpush.bf16.msra.mxu0 %v424
    %826 = vmatpush.bf16.msra.mxu0 %v422
    %827 = vmatpush.bf16.msra.mxu0 %v420
    %828 = vmatpush.bf16.msra.mxu0 %v418
    %829 = vmatpush.bf16.msra.mxu0 %v416
    %830 = vmatpush.bf16.msra.mxu0 %v414
    %831 = vmatpush.bf16.msra.mxu0 %v412
    %832 = vmatpush.bf16.msra.mxu0 %v410
    %833 = vmatmul.bf16.gmra.mxu0 %v768
    %v834 = vpop.f32.mrf.mxu0
    %v835 = vadd.f32 0.0, %v834
    %v836 = vpop.f32.mrf.mxu0
    %837 = vdwg.mxu0
    %838 = vmatpush.bf16.msra.mxu0 %v425
    %839 = vmatpush.bf16.msra.mxu0 %v423
    %840 = vmatpush.bf16.msra.mxu0 %v421
    %841 = vmatpush.bf16.msra.mxu0 %v419
    %842 = vmatpush.bf16.msra.mxu0 %v417
    %843 = vmatpush.bf16.msra.mxu0 %v415
    %844 = vmatpush.bf16.msra.mxu0 %v413
    %845 = vmatpush.bf16.msra.mxu0 %v411
    %846 = vmatmul.bf16.gmra.mxu0 %v768
    %v847 = vpop.f32.mrf.mxu0
    %v848 = vadd.f32 0.0, %v847
    %v849 = vpop.f32.mrf.mxu0
    %850 = vdwg.mxu0
    %v851 = vadd.f32 %v796, %v835
    %v852 = vadd.f32 %v809, %v848
    %v853 = vxor.u32 %v851, 2147483648
    %v854 = vmul.f32 %v853, 1.442695
    %v855 = vpow.pop %v854
    %v856 = vadd.f32 %v855, 1.0
    %v857 = vrcp.pop %v856
    %v858 = vmul.f32 %v856, %v857
    %v859 = vsub.f32 1.0, %v858
    %v860 = vmul.f32 %v857, %v859
    %v861 = vadd.f32 %v857, %v860
    %vm862 = vweird.f32 %v856
    %vm863 = vweird.f32 %v857
    %vm864 = vmor %vm862, %vm863
    %v865 = vsel %vm864, %v857, %v861
    %v866 = vand.u32 2147483647, %v856
    %vm867 = vcmp.eq.f32.partialorder %v866, 8.507059e+37
    %v868 = vand.u32 %v856, 2147483648
    %v869 = vor.u32 1.1754944e-38, %v868
    %v870 = vsel %vm867, %v869, %v865
    %v871 = vmul.f32 1.0, %v870
    %v872 = vxor.u32 %v852, 2147483648
    %v873 = vmul.f32 %v872, 1.442695
    %v874 = vpow.pop %v873
    %v875 = vadd.f32 %v874, 1.0
    %v876 = vrcp.pop %v875
    %v877 = vmul.f32 %v875, %v876
    %v878 = vsub.f32 1.0, %v877
    %v879 = vmul.f32 %v876, %v878
    %v880 = vadd.f32 %v876, %v879
    %vm881 = vweird.f32 %v875
    %vm882 = vweird.f32 %v876
    %vm883 = vmor %vm881, %vm882
    %v884 = vsel %vm883, %v876, %v880
    %v885 = vand.u32 2147483647, %v875
    %vm886 = vcmp.eq.f32.partialorder %v885, 8.507059e+37
    %v887 = vand.u32 %v875, 2147483648
    %v888 = vor.u32 1.1754944e-38, %v887
    %v889 = vsel %vm886, %v888, %v884
    %v890 = vmul.f32 1.0, %v889
    %v891 = vmul.f32 %v890, %v767
    %v892 = vpack.c.bf16 %v891, %v891
    %893 = vmatpush.bf16.msra.mxu0 %v549
    %894 = vmatpush.bf16.msra.mxu0 %v548
    %895 = vmatpush.bf16.msra.mxu0 %v547
    %896 = vmatpush.bf16.msra.mxu0 %v546
    %897 = vmatpush.bf16.msra.mxu0 %v545
    %898 = vmatpush.bf16.msra.mxu0 %v544
    %899 = vmatpush.bf16.msra.mxu0 %v543
    %900 = vmatpush.bf16.msra.mxu0 %v542
    %901 = vmatmul.bf16.gmra.mxu0 %v892
    %v902 = vpop.f32.mrf.mxu0
    %v903 = vadd.f32 0.0, %v902
    %v904 = vpop.f32.mrf.mxu0
    %905 = vdwg.mxu0
    %v906 = vadd.f32 %v822, %v903
    %v907 = vtanh.pop %v906
    %v908 = vmul.f32 %v871, %v767
    %v909 = vsub.f32 1.0, %v871
    %v910 = vmul.f32 %v909, %v907
    %v911 = vadd.f32 %v908, %v910
    %v912 = vpack.c.bf16 %v911, %v911
    %913 = vmatpush.bf16.msra.mxu0 %v617
    %914 = vmatpush.bf16.msra.mxu0 %v616
    %915 = vmatpush.bf16.msra.mxu0 %v615
    %916 = vmatpush.bf16.msra.mxu0 %v614
    %917 = vmatpush.bf16.msra.mxu0 %v613
    %918 = vmatpush.bf16.msra.mxu0 %v612
    %919 = vmatpush.bf16.msra.mxu0 %v611
    %920 = vmatpush.bf16.msra.mxu0 %v610
    %921 = vmatmul.bf16.gmra.mxu0 %v912
    %v922 = vpop.f32.mrf.mxu0
    %v923 = vadd.f32 %v183, %v922
    %v924 = vpop.f32.mrf.mxu0
    %925 = vdwg.mxu0
    %s926 = scalar_lea.vmem %s8, 16
    %927 = vst [vmem:[%s926] sm:$0xff] %v923
    %s928 = scalar_lea.vmem %s0, 12
    %v929 = vld [vmem:[%s928] sm:$0xf]
    %930 = vmatpush.bf16.msra.mxu0 %v295
    %931 = vmatpush.bf16.msra.mxu0 %v292
    %932 = vmatpush.bf16.msra.mxu0 %v289
    %933 = vmatpush.bf16.msra.mxu0 %v286
    %934 = vmatpush.bf16.msra.mxu0 %v283
    %935 = vmatpush.bf16.msra.mxu0 %v280
    %936 = vmatpush.bf16.msra.mxu0 %v277
    %937 = vmatpush.bf16.msra.mxu0 %v274
    %938 = vmatmul.bf16.gmra.mxu0 %v929
    %v939 = vpop.f32.mrf.mxu0
    %v940 = vadd.f32 %v188, %v939
    %v941 = vpop.f32.mrf.mxu0
    %942 = vdwg.mxu0
    %943 = vmatpush.bf16.msra.mxu0 %v296
    %944 = vmatpush.bf16.msra.mxu0 %v293
    %945 = vmatpush.bf16.msra.mxu0 %v290
    %946 = vmatpush.bf16.msra.mxu0 %v287
    %947 = vmatpush.bf16.msra.mxu0 %v284
    %948 = vmatpush.bf16.msra.mxu0 %v281
    %949 = vmatpush.bf16.msra.mxu0 %v278
    %950 = vmatpush.bf16.msra.mxu0 %v275
    %951 = vmatmul.bf16.gmra.mxu0 %v929
    %v952 = vpop.f32.mrf.mxu0
    %v953 = vadd.f32 %v189, %v952
    %v954 = vpop.f32.mrf.mxu0
    %955 = vdwg.mxu0
    %956 = vmatpush.bf16.msra.mxu0 %v297
    %957 = vmatpush.bf16.msra.mxu0 %v294
    %958 = vmatpush.bf16.msra.mxu0 %v291
    %959 = vmatpush.bf16.msra.mxu0 %v288
    %960 = vmatpush.bf16.msra.mxu0 %v285
    %961 = vmatpush.bf16.msra.mxu0 %v282
    %962 = vmatpush.bf16.msra.mxu0 %v279
    %963 = vmatpush.bf16.msra.mxu0 %v276
    %964 = vmatmul.bf16.gmra.mxu0 %v929
    %v965 = vpop.f32.mrf.mxu0
    %v966 = vadd.f32 %v190, %v965
    %v967 = vpop.f32.mrf.mxu0
    %968 = vdwg.mxu0
    %969 = vmatpush.bf16.msra.mxu0 %v424
    %970 = vmatpush.bf16.msra.mxu0 %v422
    %971 = vmatpush.bf16.msra.mxu0 %v420
    %972 = vmatpush.bf16.msra.mxu0 %v418
    %973 = vmatpush.bf16.msra.mxu0 %v416
    %974 = vmatpush.bf16.msra.mxu0 %v414
    %975 = vmatpush.bf16.msra.mxu0 %v412
    %976 = vmatpush.bf16.msra.mxu0 %v410
    %977 = vmatmul.bf16.gmra.mxu0 %v912
    %v978 = vpop.f32.mrf.mxu0
    %v979 = vadd.f32 0.0, %v978
    %v980 = vpop.f32.mrf.mxu0
    %981 = vdwg.mxu0
    %982 = vmatpush.bf16.msra.mxu0 %v425
    %983 = vmatpush.bf16.msra.mxu0 %v423
    %984 = vmatpush.bf16.msra.mxu0 %v421
    %985 = vmatpush.bf16.msra.mxu0 %v419
    %986 = vmatpush.bf16.msra.mxu0 %v417
    %987 = vmatpush.bf16.msra.mxu0 %v415
    %988 = vmatpush.bf16.msra.mxu0 %v413
    %989 = vmatpush.bf16.msra.mxu0 %v411
    %990 = vmatmul.bf16.gmra.mxu0 %v912
    %v991 = vpop.f32.mrf.mxu0
    %v992 = vadd.f32 0.0, %v991
    %v993 = vpop.f32.mrf.mxu0
    %994 = vdwg.mxu0
    %v995 = vadd.f32 %v940, %v979
    %v996 = vadd.f32 %v953, %v992
    %v997 = vxor.u32 %v995, 2147483648
    %v998 = vmul.f32 %v997, 1.442695
    %v999 = vpow.pop %v998
    %v1000 = vadd.f32 %v999, 1.0
    %v1001 = vrcp.pop %v1000
    %v1002 = vmul.f32 %v1000, %v1001
    %v1003 = vsub.f32 1.0, %v1002
    %v1004 = vmul.f32 %v1001, %v1003
    %v1005 = vadd.f32 %v1001, %v1004
    %vm1006 = vweird.f32 %v1000
    %vm1007 = vweird.f32 %v1001
    %vm1008 = vmor %vm1006, %vm1007
    %v1009 = vsel %vm1008, %v1001, %v1005
    %v1010 = vand.u32 2147483647, %v1000
    %vm1011 = vcmp.eq.f32.partialorder %v1010, 8.507059e+37
    %v1012 = vand.u32 %v1000, 2147483648
    %v1013 = vor.u32 1.1754944e-38, %v1012
    %v1014 = vsel %vm1011, %v1013, %v1009
    %v1015 = vmul.f32 1.0, %v1014
    %v1016 = vxor.u32 %v996, 2147483648
    %v1017 = vmul.f32 %v1016, 1.442695
    %v1018 = vpow.pop %v1017
    %v1019 = vadd.f32 %v1018, 1.0
    %v1020 = vrcp.pop %v1019
    %v1021 = vmul.f32 %v1019, %v1020
    %v1022 = vsub.f32 1.0, %v1021
    %v1023 = vmul.f32 %v1020, %v1022
    %v1024 = vadd.f32 %v1020, %v1023
    %vm1025 = vweird.f32 %v1019
    %vm1026 = vweird.f32 %v1020
    %vm1027 = vmor %vm1025, %vm1026
    %v1028 = vsel %vm1027, %v1020, %v1024
    %v1029 = vand.u32 2147483647, %v1019
    %vm1030 = vcmp.eq.f32.partialorder %v1029, 8.507059e+37
    %v1031 = vand.u32 %v1019, 2147483648
    %v1032 = vor.u32 1.1754944e-38, %v1031
    %v1033 = vsel %vm1030, %v1032, %v1028
    %v1034 = vmul.f32 1.0, %v1033
    %v1035 = vmul.f32 %v1034, %v911
    %v1036 = vpack.c.bf16 %v1035, %v1035
    %1037 = vmatpush.bf16.msra.mxu0 %v549
    %1038 = vmatpush.bf16.msra.mxu0 %v548
    %1039 = vmatpush.bf16.msra.mxu0 %v547
    %1040 = vmatpush.bf16.msra.mxu0 %v546
    %1041 = vmatpush.bf16.msra.mxu0 %v545
    %1042 = vmatpush.bf16.msra.mxu0 %v544
    %1043 = vmatpush.bf16.msra.mxu0 %v543
    %1044 = vmatpush.bf16.msra.mxu0 %v542
    %1045 = vmatmul.bf16.gmra.mxu0 %v1036
    %v1046 = vpop.f32.mrf.mxu0
    %v1047 = vadd.f32 0.0, %v1046
    %v1048 = vpop.f32.mrf.mxu0
    %1049 = vdwg.mxu0
    %v1050 = vadd.f32 %v966, %v1047
    %v1051 = vtanh.pop %v1050
    %v1052 = vmul.f32 %v1015, %v911
    %v1053 = vsub.f32 1.0, %v1015
    %v1054 = vmul.f32 %v1053, %v1051
    %v1055 = vadd.f32 %v1052, %v1054
    %v1056 = vpack.c.bf16 %v1055, %v1055
    %1057 = vmatpush.bf16.msra.mxu0 %v617
    %1058 = vmatpush.bf16.msra.mxu0 %v616
    %1059 = vmatpush.bf16.msra.mxu0 %v615
    %1060 = vmatpush.bf16.msra.mxu0 %v614
    %1061 = vmatpush.bf16.msra.mxu0 %v613
    %1062 = vmatpush.bf16.msra.mxu0 %v612
    %1063 = vmatpush.bf16.msra.mxu0 %v611
    %1064 = vmatpush.bf16.msra.mxu0 %v610
    %1065 = vmatmul.bf16.gmra.mxu0 %v1056
    %v1066 = vpop.f32.mrf.mxu0
    %v1067 = vadd.f32 %v183, %v1066
    %v1068 = vpop.f32.mrf.mxu0
    %1069 = vdwg.mxu0
    %s1070 = scalar_lea.vmem %s8, 24
    %1071 = vst [vmem:[%s1070] sm:$0xff] %v1067
    %s1072 = scalar_lea.vmem %s0, 16
    %v1073 = vld [vmem:[%s1072] sm:$0xf]
    %1074 = vmatpush.bf16.msra.mxu0 %v295
    %1075 = vmatpush.bf16.msra.mxu0 %v292
    %1076 = vmatpush.bf16.msra.mxu0 %v289
    %1077 = vmatpush.bf16.msra.mxu0 %v286
    %1078 = vmatpush.bf16.msra.mxu0 %v283
    %1079 = vmatpush.bf16.msra.mxu0 %v280
    %1080 = vmatpush.bf16.msra.mxu0 %v277
    %1081 = vmatpush.bf16.msra.mxu0 %v274
    %1082 = vmatmul.bf16.gmra.mxu0 %v1073
    %v1083 = vpop.f32.mrf.mxu0
    %v1084 = vadd.f32 %v188, %v1083
    %v1085 = vpop.f32.mrf.mxu0
    %1086 = vdwg.mxu0
    %1087 = vmatpush.bf16.msra.mxu0 %v296
    %1088 = vmatpush.bf16.msra.mxu0 %v293
    %1089 = vmatpush.bf16.msra.mxu0 %v290
    %1090 = vmatpush.bf16.msra.mxu0 %v287
    %1091 = vmatpush.bf16.msra.mxu0 %v284
    %1092 = vmatpush.bf16.msra.mxu0 %v281
    %1093 = vmatpush.bf16.msra.mxu0 %v278
    %1094 = vmatpush.bf16.msra.mxu0 %v275
    %1095 = vmatmul.bf16.gmra.mxu0 %v1073
    %v1096 = vpop.f32.mrf.mxu0
    %v1097 = vadd.f32 %v189, %v1096
    %v1098 = vpop.f32.mrf.mxu0
    %1099 = vdwg.mxu0
    %1100 = vmatpush.bf16.msra.mxu0 %v297
    %1101 = vmatpush.bf16.msra.mxu0 %v294
    %1102 = vmatpush.bf16.msra.mxu0 %v291
    %1103 = vmatpush.bf16.msra.mxu0 %v288
    %1104 = vmatpush.bf16.msra.mxu0 %v285
    %1105 = vmatpush.bf16.msra.mxu0 %v282
    %1106 = vmatpush.bf16.msra.mxu0 %v279
    %1107 = vmatpush.bf16.msra.mxu0 %v276
    %1108 = vmatmul.bf16.gmra.mxu0 %v1073
    %v1109 = vpop.f32.mrf.mxu0
    %v1110 = vadd.f32 %v190, %v1109
    %v1111 = vpop.f32.mrf.mxu0
    %1112 = vdwg.mxu0
    %1113 = vmatpush.bf16.msra.mxu0 %v424
    %1114 = vmatpush.bf16.msra.mxu0 %v422
    %1115 = vmatpush.bf16.msra.mxu0 %v420
    %1116 = vmatpush.bf16.msra.mxu0 %v418
    %1117 = vmatpush.bf16.msra.mxu0 %v416
    %1118 = vmatpush.bf16.msra.mxu0 %v414
    %1119 = vmatpush.bf16.msra.mxu0 %v412
    %1120 = vmatpush.bf16.msra.mxu0 %v410
    %1121 = vmatmul.bf16.gmra.mxu0 %v1056
    %v1122 = vpop.f32.mrf.mxu0
    %v1123 = vadd.f32 0.0, %v1122
    %v1124 = vpop.f32.mrf.mxu0
    %1125 = vdwg.mxu0
    %1126 = vmatpush.bf16.msra.mxu0 %v425
    %1127 = vmatpush.bf16.msra.mxu0 %v423
    %1128 = vmatpush.bf16.msra.mxu0 %v421
    %1129 = vmatpush.bf16.msra.mxu0 %v419
    %1130 = vmatpush.bf16.msra.mxu0 %v417
    %1131 = vmatpush.bf16.msra.mxu0 %v415
    %1132 = vmatpush.bf16.msra.mxu0 %v413
    %1133 = vmatpush.bf16.msra.mxu0 %v411
    %1134 = vmatmul.bf16.gmra.mxu0 %v1056
    %v1135 = vpop.f32.mrf.mxu0
    %v1136 = vadd.f32 0.0, %v1135
    %v1137 = vpop.f32.mrf.mxu0
    %1138 = vdwg.mxu0
    %v1139 = vadd.f32 %v1084, %v1123
    %v1140 = vadd.f32 %v1097, %v1136
    %v1141 = vxor.u32 %v1139, 2147483648
    %v1142 = vmul.f32 %v1141, 1.442695
    %v1143 = vpow.pop %v1142
    %v1144 = vadd.f32 %v1143, 1.0
    %v1145 = vrcp.pop %v1144
    %v1146 = vmul.f32 %v1144, %v1145
    %v1147 = vsub.f32 1.0, %v1146
    %v1148 = vmul.f32 %v1145, %v1147
    %v1149 = vadd.f32 %v1145, %v1148
    %vm1150 = vweird.f32 %v1144
    %vm1151 = vweird.f32 %v1145
    %vm1152 = vmor %vm1150, %vm1151
    %v1153 = vsel %vm1152, %v1145, %v1149
    %v1154 = vand.u32 2147483647, %v1144
    %vm1155 = vcmp.eq.f32.partialorder %v1154, 8.507059e+37
    %v1156 = vand.u32 %v1144, 2147483648
    %v1157 = vor.u32 1.1754944e-38, %v1156
    %v1158 = vsel %vm1155, %v1157, %v1153
    %v1159 = vmul.f32 1.0, %v1158
    %v1160 = vxor.u32 %v1140, 2147483648
    %v1161 = vmul.f32 %v1160, 1.442695
    %v1162 = vpow.pop %v1161
    %v1163 = vadd.f32 %v1162, 1.0
    %v1164 = vrcp.pop %v1163
    %v1165 = vmul.f32 %v1163, %v1164
    %v1166 = vsub.f32 1.0, %v1165
    %v1167 = vmul.f32 %v1164, %v1166
    %v1168 = vadd.f32 %v1164, %v1167
    %vm1169 = vweird.f32 %v1163
    %vm1170 = vweird.f32 %v1164
    %vm1171 = vmor %vm1169, %vm1170
    %v1172 = vsel %vm1171, %v1164, %v1168
    %v1173 = vand.u32 2147483647, %v1163
    %vm1174 = vcmp.eq.f32.partialorder %v1173, 8.507059e+37
    %v1175 = vand.u32 %v1163, 2147483648
    %v1176 = vor.u32 1.1754944e-38, %v1175
    %v1177 = vsel %vm1174, %v1176, %v1172
    %v1178 = vmul.f32 1.0, %v1177
    %v1179 = vmul.f32 %v1178, %v1055
    %v1180 = vpack.c.bf16 %v1179, %v1179
    %1181 = vmatpush.bf16.msra.mxu0 %v549
    %1182 = vmatpush.bf16.msra.mxu0 %v548
    %1183 = vmatpush.bf16.msra.mxu0 %v547
    %1184 = vmatpush.bf16.msra.mxu0 %v546
    %1185 = vmatpush.bf16.msra.mxu0 %v545
    %1186 = vmatpush.bf16.msra.mxu0 %v544
    %1187 = vmatpush.bf16.msra.mxu0 %v543
    %1188 = vmatpush.bf16.msra.mxu0 %v542
    %1189 = vmatmul.bf16.gmra.mxu0 %v1180
    %v1190 = vpop.f32.mrf.mxu0
    %v1191 = vadd.f32 0.0, %v1190
    %v1192 = vpop.f32.mrf.mxu0
    %1193 = vdwg.mxu0
    %v1194 = vadd.f32 %v1110, %v1191
    %v1195 = vtanh.pop %v1194
    %v1196 = vmul.f32 %v1159, %v1055
    %v1197 = vsub.f32 1.0, %v1159
    %v1198 = vmul.f32 %v1197, %v1195
    %v1199 = vadd.f32 %v1196, %v1198
    %v1200 = vpack.c.bf16 %v1199, %v1199
    %1201 = vmatpush.bf16.msra.mxu0 %v617
    %1202 = vmatpush.bf16.msra.mxu0 %v616
    %1203 = vmatpush.bf16.msra.mxu0 %v615
    %1204 = vmatpush.bf16.msra.mxu0 %v614
    %1205 = vmatpush.bf16.msra.mxu0 %v613
    %1206 = vmatpush.bf16.msra.mxu0 %v612
    %1207 = vmatpush.bf16.msra.mxu0 %v611
    %1208 = vmatpush.bf16.msra.mxu0 %v610
    %1209 = vmatmul.bf16.gmra.mxu0 %v1200
    %v1210 = vpop.f32.mrf.mxu0
    %v1211 = vadd.f32 %v183, %v1210
    %v1212 = vpop.f32.mrf.mxu0
    %1213 = vdwg.mxu0
    %s1214 = scalar_lea.vmem %s8, 32
    %1215 = vst [vmem:[%s1214] sm:$0xff] %v1211
    %s1216 = scalar_lea.vmem %s0, 20
    %v1217 = vld [vmem:[%s1216] sm:$0xf]
    %1218 = vmatpush.bf16.msra.mxu0 %v295
    %1219 = vmatpush.bf16.msra.mxu0 %v292
    %1220 = vmatpush.bf16.msra.mxu0 %v289
    %1221 = vmatpush.bf16.msra.mxu0 %v286
    %1222 = vmatpush.bf16.msra.mxu0 %v283
    %1223 = vmatpush.bf16.msra.mxu0 %v280
    %1224 = vmatpush.bf16.msra.mxu0 %v277
    %1225 = vmatpush.bf16.msra.mxu0 %v274
    %1226 = vmatmul.bf16.gmra.mxu0 %v1217
    %v1227 = vpop.f32.mrf.mxu0
    %v1228 = vadd.f32 %v188, %v1227
    %v1229 = vpop.f32.mrf.mxu0
    %1230 = vdwg.mxu0
    %1231 = vmatpush.bf16.msra.mxu0 %v296
    %1232 = vmatpush.bf16.msra.mxu0 %v293
    %1233 = vmatpush.bf16.msra.mxu0 %v290
    %1234 = vmatpush.bf16.msra.mxu0 %v287
    %1235 = vmatpush.bf16.msra.mxu0 %v284
    %1236 = vmatpush.bf16.msra.mxu0 %v281
    %1237 = vmatpush.bf16.msra.mxu0 %v278
    %1238 = vmatpush.bf16.msra.mxu0 %v275
    %1239 = vmatmul.bf16.gmra.mxu0 %v1217
    %v1240 = vpop.f32.mrf.mxu0
    %v1241 = vadd.f32 %v189, %v1240
    %v1242 = vpop.f32.mrf.mxu0
    %1243 = vdwg.mxu0
    %1244 = vmatpush.bf16.msra.mxu0 %v297
    %1245 = vmatpush.bf16.msra.mxu0 %v294
    %1246 = vmatpush.bf16.msra.mxu0 %v291
    %1247 = vmatpush.bf16.msra.mxu0 %v288
    %1248 = vmatpush.bf16.msra.mxu0 %v285
    %1249 = vmatpush.bf16.msra.mxu0 %v282
    %1250 = vmatpush.bf16.msra.mxu0 %v279
    %1251 = vmatpush.bf16.msra.mxu0 %v276
    %1252 = vmatmul.bf16.gmra.mxu0 %v1217
    %v1253 = vpop.f32.mrf.mxu0
    %v1254 = vadd.f32 %v190, %v1253
    %v1255 = vpop.f32.mrf.mxu0
    %1256 = vdwg.mxu0
    %1257 = vmatpush.bf16.msra.mxu0 %v424
    %1258 = vmatpush.bf16.msra.mxu0 %v422
    %1259 = vmatpush.bf16.msra.mxu0 %v420
    %1260 = vmatpush.bf16.msra.mxu0 %v418
    %1261 = vmatpush.bf16.msra.mxu0 %v416
    %1262 = vmatpush.bf16.msra.mxu0 %v414
    %1263 = vmatpush.bf16.msra.mxu0 %v412
    %1264 = vmatpush.bf16.msra.mxu0 %v410
    %1265 = vmatmul.bf16.gmra.mxu0 %v1200
    %v1266 = vpop.f32.mrf.mxu0
    %v1267 = vadd.f32 0.0, %v1266
    %v1268 = vpop.f32.mrf.mxu0
    %1269 = vdwg.mxu0
    %1270 = vmatpush.bf16.msra.mxu0 %v425
    %1271 = vmatpush.bf16.msra.mxu0 %v423
    %1272 = vmatpush.bf16.msra.mxu0 %v421
    %1273 = vmatpush.bf16.msra.mxu0 %v419
    %1274 = vmatpush.bf16.msra.mxu0 %v417
    %1275 = vmatpush.bf16.msra.mxu0 %v415
    %1276 = vmatpush.bf16.msra.mxu0 %v413
    %1277 = vmatpush.bf16.msra.mxu0 %v411
    %1278 = vmatmul.bf16.gmra.mxu0 %v1200
    %v1279 = vpop.f32.mrf.mxu0
    %v1280 = vadd.f32 0.0, %v1279
    %v1281 = vpop.f32.mrf.mxu0
    %1282 = vdwg.mxu0
    %v1283 = vadd.f32 %v1228, %v1267
    %v1284 = vadd.f32 %v1241, %v1280
    %v1285 = vxor.u32 %v1283, 2147483648
    %v1286 = vmul.f32 %v1285, 1.442695
    %v1287 = vpow.pop %v1286
    %v1288 = vadd.f32 %v1287, 1.0
    %v1289 = vrcp.pop %v1288
    %v1290 = vmul.f32 %v1288, %v1289
    %v1291 = vsub.f32 1.0, %v1290
    %v1292 = vmul.f32 %v1289, %v1291
    %v1293 = vadd.f32 %v1289, %v1292
    %vm1294 = vweird.f32 %v1288
    %vm1295 = vweird.f32 %v1289
    %vm1296 = vmor %vm1294, %vm1295
    %v1297 = vsel %vm1296, %v1289, %v1293
    %v1298 = vand.u32 2147483647, %v1288
    %vm1299 = vcmp.eq.f32.partialorder %v1298, 8.507059e+37
    %v1300 = vand.u32 %v1288, 2147483648
    %v1301 = vor.u32 1.1754944e-38, %v1300
    %v1302 = vsel %vm1299, %v1301, %v1297
    %v1303 = vmul.f32 1.0, %v1302
    %v1304 = vxor.u32 %v1284, 2147483648
    %v1305 = vmul.f32 %v1304, 1.442695
    %v1306 = vpow.pop %v1305
    %v1307 = vadd.f32 %v1306, 1.0
    %v1308 = vrcp.pop %v1307
    %v1309 = vmul.f32 %v1307, %v1308
    %v1310 = vsub.f32 1.0, %v1309
    %v1311 = vmul.f32 %v1308, %v1310
    %v1312 = vadd.f32 %v1308, %v1311
    %vm1313 = vweird.f32 %v1307
    %vm1314 = vweird.f32 %v1308
    %vm1315 = vmor %vm1313, %vm1314
    %v1316 = vsel %vm1315, %v1308, %v1312
    %v1317 = vand.u32 2147483647, %v1307
    %vm1318 = vcmp.eq.f32.partialorder %v1317, 8.507059e+37
    %v1319 = vand.u32 %v1307, 2147483648
    %v1320 = vor.u32 1.1754944e-38, %v1319
    %v1321 = vsel %vm1318, %v1320, %v1316
    %v1322 = vmul.f32 1.0, %v1321
    %v1323 = vmul.f32 %v1322, %v1199
    %v1324 = vpack.c.bf16 %v1323, %v1323
    %1325 = vmatpush.bf16.msra.mxu0 %v549
    %1326 = vmatpush.bf16.msra.mxu0 %v548
    %1327 = vmatpush.bf16.msra.mxu0 %v547
    %1328 = vmatpush.bf16.msra.mxu0 %v546
    %1329 = vmatpush.bf16.msra.mxu0 %v545
    %1330 = vmatpush.bf16.msra.mxu0 %v544
    %1331 = vmatpush.bf16.msra.mxu0 %v543
    %1332 = vmatpush.bf16.msra.mxu0 %v542
    %1333 = vmatmul.bf16.gmra.mxu0 %v1324
    %v1334 = vpop.f32.mrf.mxu0
    %v1335 = vadd.f32 0.0, %v1334
    %v1336 = vpop.f32.mrf.mxu0
    %1337 = vdwg.mxu0
    %v1338 = vadd.f32 %v1254, %v1335
    %v1339 = vtanh.pop %v1338
    %v1340 = vmul.f32 %v1303, %v1199
    %v1341 = vsub.f32 1.0, %v1303
    %v1342 = vmul.f32 %v1341, %v1339
    %v1343 = vadd.f32 %v1340, %v1342
    %v1344 = vpack.c.bf16 %v1343, %v1343
    %1345 = vmatpush.bf16.msra.mxu0 %v617
    %1346 = vmatpush.bf16.msra.mxu0 %v616
    %1347 = vmatpush.bf16.msra.mxu0 %v615
    %1348 = vmatpush.bf16.msra.mxu0 %v614
    %1349 = vmatpush.bf16.msra.mxu0 %v613
    %1350 = vmatpush.bf16.msra.mxu0 %v612
    %1351 = vmatpush.bf16.msra.mxu0 %v611
    %1352 = vmatpush.bf16.msra.mxu0 %v610
    %1353 = vmatmul.bf16.gmra.mxu0 %v1344
    %v1354 = vpop.f32.mrf.mxu0
    %v1355 = vadd.f32 %v183, %v1354
    %v1356 = vpop.f32.mrf.mxu0
    %1357 = vdwg.mxu0
    %s1358 = scalar_lea.vmem %s8, 40
    %1359 = vst [vmem:[%s1358] sm:$0xff] %v1355
    %s1360 = scalar_lea.vmem %s0, 24
    %v1361 = vld [vmem:[%s1360] sm:$0xf]
    %1362 = vmatpush.bf16.msra.mxu0 %v295
    %1363 = vmatpush.bf16.msra.mxu0 %v292
    %1364 = vmatpush.bf16.msra.mxu0 %v289
    %1365 = vmatpush.bf16.msra.mxu0 %v286
    %1366 = vmatpush.bf16.msra.mxu0 %v283
    %1367 = vmatpush.bf16.msra.mxu0 %v280
    %1368 = vmatpush.bf16.msra.mxu0 %v277
    %1369 = vmatpush.bf16.msra.mxu0 %v274
    %1370 = vmatmul.bf16.gmra.mxu0 %v1361
    %v1371 = vpop.f32.mrf.mxu0
    %v1372 = vadd.f32 %v188, %v1371
    %v1373 = vpop.f32.mrf.mxu0
    %1374 = vdwg.mxu0
    %1375 = vmatpush.bf16.msra.mxu0 %v296
    %1376 = vmatpush.bf16.msra.mxu0 %v293
    %1377 = vmatpush.bf16.msra.mxu0 %v290
    %1378 = vmatpush.bf16.msra.mxu0 %v287
    %1379 = vmatpush.bf16.msra.mxu0 %v284
    %1380 = vmatpush.bf16.msra.mxu0 %v281
    %1381 = vmatpush.bf16.msra.mxu0 %v278
    %1382 = vmatpush.bf16.msra.mxu0 %v275
    %1383 = vmatmul.bf16.gmra.mxu0 %v1361
    %v1384 = vpop.f32.mrf.mxu0
    %v1385 = vadd.f32 %v189, %v1384
    %v1386 = vpop.f32.mrf.mxu0
    %1387 = vdwg.mxu0
    %1388 = vmatpush.bf16.msra.mxu0 %v297
    %1389 = vmatpush.bf16.msra.mxu0 %v294
    %1390 = vmatpush.bf16.msra.mxu0 %v291
    %1391 = vmatpush.bf16.msra.mxu0 %v288
    %1392 = vmatpush.bf16.msra.mxu0 %v285
    %1393 = vmatpush.bf16.msra.mxu0 %v282
    %1394 = vmatpush.bf16.msra.mxu0 %v279
    %1395 = vmatpush.bf16.msra.mxu0 %v276
    %1396 = vmatmul.bf16.gmra.mxu0 %v1361
    %v1397 = vpop.f32.mrf.mxu0
    %v1398 = vadd.f32 %v190, %v1397
    %v1399 = vpop.f32.mrf.mxu0
    %1400 = vdwg.mxu0
    %1401 = vmatpush.bf16.msra.mxu0 %v424
    %1402 = vmatpush.bf16.msra.mxu0 %v422
    %1403 = vmatpush.bf16.msra.mxu0 %v420
    %1404 = vmatpush.bf16.msra.mxu0 %v418
    %1405 = vmatpush.bf16.msra.mxu0 %v416
    %1406 = vmatpush.bf16.msra.mxu0 %v414
    %1407 = vmatpush.bf16.msra.mxu0 %v412
    %1408 = vmatpush.bf16.msra.mxu0 %v410
    %1409 = vmatmul.bf16.gmra.mxu0 %v1344
    %v1410 = vpop.f32.mrf.mxu0
    %v1411 = vadd.f32 0.0, %v1410
    %v1412 = vpop.f32.mrf.mxu0
    %1413 = vdwg.mxu0
    %1414 = vmatpush.bf16.msra.mxu0 %v425
    %1415 = vmatpush.bf16.msra.mxu0 %v423
    %1416 = vmatpush.bf16.msra.mxu0 %v421
    %1417 = vmatpush.bf16.msra.mxu0 %v419
    %1418 = vmatpush.bf16.msra.mxu0 %v417
    %1419 = vmatpush.bf16.msra.mxu0 %v415
    %1420 = vmatpush.bf16.msra.mxu0 %v413
    %1421 = vmatpush.bf16.msra.mxu0 %v411
    %1422 = vmatmul.bf16.gmra.mxu0 %v1344
    %v1423 = vpop.f32.mrf.mxu0
    %v1424 = vadd.f32 0.0, %v1423
    %v1425 = vpop.f32.mrf.mxu0
    %1426 = vdwg.mxu0
    %v1427 = vadd.f32 %v1372, %v1411
    %v1428 = vadd.f32 %v1385, %v1424
    %v1429 = vxor.u32 %v1427, 2147483648
    %v1430 = vmul.f32 %v1429, 1.442695
    %v1431 = vpow.pop %v1430
    %v1432 = vadd.f32 %v1431, 1.0
    %v1433 = vrcp.pop %v1432
    %v1434 = vmul.f32 %v1432, %v1433
    %v1435 = vsub.f32 1.0, %v1434
    %v1436 = vmul.f32 %v1433, %v1435
    %v1437 = vadd.f32 %v1433, %v1436
    %vm1438 = vweird.f32 %v1432
    %vm1439 = vweird.f32 %v1433
    %vm1440 = vmor %vm1438, %vm1439
    %v1441 = vsel %vm1440, %v1433, %v1437
    %v1442 = vand.u32 2147483647, %v1432
    %vm1443 = vcmp.eq.f32.partialorder %v1442, 8.507059e+37
    %v1444 = vand.u32 %v1432, 2147483648
    %v1445 = vor.u32 1.1754944e-38, %v1444
    %v1446 = vsel %vm1443, %v1445, %v1441
    %v1447 = vmul.f32 1.0, %v1446
    %v1448 = vxor.u32 %v1428, 2147483648
    %v1449 = vmul.f32 %v1448, 1.442695
    %v1450 = vpow.pop %v1449
    %v1451 = vadd.f32 %v1450, 1.0
    %v1452 = vrcp.pop %v1451
    %v1453 = vmul.f32 %v1451, %v1452
    %v1454 = vsub.f32 1.0, %v1453
    %v1455 = vmul.f32 %v1452, %v1454
    %v1456 = vadd.f32 %v1452, %v1455
    %vm1457 = vweird.f32 %v1451
    %vm1458 = vweird.f32 %v1452
    %vm1459 = vmor %vm1457, %vm1458
    %v1460 = vsel %vm1459, %v1452, %v1456
    %v1461 = vand.u32 2147483647, %v1451
    %vm1462 = vcmp.eq.f32.partialorder %v1461, 8.507059e+37
    %v1463 = vand.u32 %v1451, 2147483648
    %v1464 = vor.u32 1.1754944e-38, %v1463
    %v1465 = vsel %vm1462, %v1464, %v1460
    %v1466 = vmul.f32 1.0, %v1465
    %v1467 = vmul.f32 %v1466, %v1343
    %v1468 = vpack.c.bf16 %v1467, %v1467
    %1469 = vmatpush.bf16.msra.mxu0 %v549
    %1470 = vmatpush.bf16.msra.mxu0 %v548
    %1471 = vmatpush.bf16.msra.mxu0 %v547
    %1472 = vmatpush.bf16.msra.mxu0 %v546
    %1473 = vmatpush.bf16.msra.mxu0 %v545
    %1474 = vmatpush.bf16.msra.mxu0 %v544
    %1475 = vmatpush.bf16.msra.mxu0 %v543
    %1476 = vmatpush.bf16.msra.mxu0 %v542
    %1477 = vmatmul.bf16.gmra.mxu0 %v1468
    %v1478 = vpop.f32.mrf.mxu0
    %v1479 = vadd.f32 0.0, %v1478
    %v1480 = vpop.f32.mrf.mxu0
    %1481 = vdwg.mxu0
    %v1482 = vadd.f32 %v1398, %v1479
    %v1483 = vtanh.pop %v1482
    %v1484 = vmul.f32 %v1447, %v1343
    %v1485 = vsub.f32 1.0, %v1447
    %v1486 = vmul.f32 %v1485, %v1483
    %v1487 = vadd.f32 %v1484, %v1486
    %v1488 = vpack.c.bf16 %v1487, %v1487
    %1489 = vmatpush.bf16.msra.mxu0 %v617
    %1490 = vmatpush.bf16.msra.mxu0 %v616
    %1491 = vmatpush.bf16.msra.mxu0 %v615
    %1492 = vmatpush.bf16.msra.mxu0 %v614
    %1493 = vmatpush.bf16.msra.mxu0 %v613
    %1494 = vmatpush.bf16.msra.mxu0 %v612
    %1495 = vmatpush.bf16.msra.mxu0 %v611
    %1496 = vmatpush.bf16.msra.mxu0 %v610
    %1497 = vmatmul.bf16.gmra.mxu0 %v1488
    %v1498 = vpop.f32.mrf.mxu0
    %v1499 = vadd.f32 %v183, %v1498
    %v1500 = vpop.f32.mrf.mxu0
    %1501 = vdwg.mxu0
    %s1502 = scalar_lea.vmem %s8, 48
    %1503 = vst [vmem:[%s1502] sm:$0xff] %v1499
    %s1504 = scalar_lea.vmem %s0, 28
    %v1505 = vld [vmem:[%s1504] sm:$0xf]
    %1506 = vmatpush.bf16.msra.mxu0 %v295
    %1507 = vmatpush.bf16.msra.mxu0 %v292
    %1508 = vmatpush.bf16.msra.mxu0 %v289
    %1509 = vmatpush.bf16.msra.mxu0 %v286
    %1510 = vmatpush.bf16.msra.mxu0 %v283
    %1511 = vmatpush.bf16.msra.mxu0 %v280
    %1512 = vmatpush.bf16.msra.mxu0 %v277
    %1513 = vmatpush.bf16.msra.mxu0 %v274
    %1514 = vmatmul.bf16.gmra.mxu0 %v1505
    %v1515 = vpop.f32.mrf.mxu0
    %v1516 = vadd.f32 %v188, %v1515
    %v1517 = vpop.f32.mrf.mxu0
    %1518 = vdwg.mxu0
    %1519 = vmatpush.bf16.msra.mxu0 %v296
    %1520 = vmatpush.bf16.msra.mxu0 %v293
    %1521 = vmatpush.bf16.msra.mxu0 %v290
    %1522 = vmatpush.bf16.msra.mxu0 %v287
    %1523 = vmatpush.bf16.msra.mxu0 %v284
    %1524 = vmatpush.bf16.msra.mxu0 %v281
    %1525 = vmatpush.bf16.msra.mxu0 %v278
    %1526 = vmatpush.bf16.msra.mxu0 %v275
    %1527 = vmatmul.bf16.gmra.mxu0 %v1505
    %v1528 = vpop.f32.mrf.mxu0
    %v1529 = vadd.f32 %v189, %v1528
    %v1530 = vpop.f32.mrf.mxu0
    %1531 = vdwg.mxu0
    %1532 = vmatpush.bf16.msra.mxu0 %v297
    %1533 = vmatpush.bf16.msra.mxu0 %v294
    %1534 = vmatpush.bf16.msra.mxu0 %v291
    %1535 = vmatpush.bf16.msra.mxu0 %v288
    %1536 = vmatpush.bf16.msra.mxu0 %v285
    %1537 = vmatpush.bf16.msra.mxu0 %v282
    %1538 = vmatpush.bf16.msra.mxu0 %v279
    %1539 = vmatpush.bf16.msra.mxu0 %v276
    %1540 = vmatmul.bf16.gmra.mxu0 %v1505
    %v1541 = vpop.f32.mrf.mxu0
    %v1542 = vadd.f32 %v190, %v1541
    %v1543 = vpop.f32.mrf.mxu0
    %1544 = vdwg.mxu0
    %1545 = vmatpush.bf16.msra.mxu0 %v424
    %1546 = vmatpush.bf16.msra.mxu0 %v422
    %1547 = vmatpush.bf16.msra.mxu0 %v420
    %1548 = vmatpush.bf16.msra.mxu0 %v418
    %1549 = vmatpush.bf16.msra.mxu0 %v416
    %1550 = vmatpush.bf16.msra.mxu0 %v414
    %1551 = vmatpush.bf16.msra.mxu0 %v412
    %1552 = vmatpush.bf16.msra.mxu0 %v410
    %1553 = vmatmul.bf16.gmra.mxu0 %v1488
    %v1554 = vpop.f32.mrf.mxu0
    %v1555 = vadd.f32 0.0, %v1554
    %v1556 = vpop.f32.mrf.mxu0
    %1557 = vdwg.mxu0
    %1558 = vmatpush.bf16.msra.mxu0 %v425
    %1559 = vmatpush.bf16.msra.mxu0 %v423
    %1560 = vmatpush.bf16.msra.mxu0 %v421
    %1561 = vmatpush.bf16.msra.mxu0 %v419
    %1562 = vmatpush.bf16.msra.mxu0 %v417
    %1563 = vmatpush.bf16.msra.mxu0 %v415
    %1564 = vmatpush.bf16.msra.mxu0 %v413
    %1565 = vmatpush.bf16.msra.mxu0 %v411
    %1566 = vmatmul.bf16.gmra.mxu0 %v1488
    %v1567 = vpop.f32.mrf.mxu0
    %v1568 = vadd.f32 0.0, %v1567
    %v1569 = vpop.f32.mrf.mxu0
    %1570 = vdwg.mxu0
    %v1571 = vadd.f32 %v1516, %v1555
    %v1572 = vadd.f32 %v1529, %v1568
    %v1573 = vxor.u32 %v1571, 2147483648
    %v1574 = vmul.f32 %v1573, 1.442695
    %v1575 = vpow.pop %v1574
    %v1576 = vadd.f32 %v1575, 1.0
    %v1577 = vrcp.pop %v1576
    %v1578 = vmul.f32 %v1576, %v1577
    %v1579 = vsub.f32 1.0, %v1578
    %v1580 = vmul.f32 %v1577, %v1579
    %v1581 = vadd.f32 %v1577, %v1580
    %vm1582 = vweird.f32 %v1576
    %vm1583 = vweird.f32 %v1577
    %vm1584 = vmor %vm1582, %vm1583
    %v1585 = vsel %vm1584, %v1577, %v1581
    %v1586 = vand.u32 2147483647, %v1576
    %vm1587 = vcmp.eq.f32.partialorder %v1586, 8.507059e+37
    %v1588 = vand.u32 %v1576, 2147483648
    %v1589 = vor.u32 1.1754944e-38, %v1588
    %v1590 = vsel %vm1587, %v1589, %v1585
    %v1591 = vmul.f32 1.0, %v1590
    %v1592 = vxor.u32 %v1572, 2147483648
    %v1593 = vmul.f32 %v1592, 1.442695
    %v1594 = vpow.pop %v1593
    %v1595 = vadd.f32 %v1594, 1.0
    %v1596 = vrcp.pop %v1595
    %v1597 = vmul.f32 %v1595, %v1596
    %v1598 = vsub.f32 1.0, %v1597
    %v1599 = vmul.f32 %v1596, %v1598
    %v1600 = vadd.f32 %v1596, %v1599
    %vm1601 = vweird.f32 %v1595
    %vm1602 = vweird.f32 %v1596
    %vm1603 = vmor %vm1601, %vm1602
    %v1604 = vsel %vm1603, %v1596, %v1600
    %v1605 = vand.u32 2147483647, %v1595
    %vm1606 = vcmp.eq.f32.partialorder %v1605, 8.507059e+37
    %v1607 = vand.u32 %v1595, 2147483648
    %v1608 = vor.u32 1.1754944e-38, %v1607
    %v1609 = vsel %vm1606, %v1608, %v1604
    %v1610 = vmul.f32 1.0, %v1609
    %v1611 = vmul.f32 %v1610, %v1487
    %v1612 = vpack.c.bf16 %v1611, %v1611
    %1613 = vmatpush.bf16.msra.mxu0 %v549
    %1614 = vmatpush.bf16.msra.mxu0 %v548
    %1615 = vmatpush.bf16.msra.mxu0 %v547
    %1616 = vmatpush.bf16.msra.mxu0 %v546
    %1617 = vmatpush.bf16.msra.mxu0 %v545
    %1618 = vmatpush.bf16.msra.mxu0 %v544
    %1619 = vmatpush.bf16.msra.mxu0 %v543
    %1620 = vmatpush.bf16.msra.mxu0 %v542
    %1621 = vmatmul.bf16.gmra.mxu0 %v1612
    %v1622 = vpop.f32.mrf.mxu0
    %v1623 = vadd.f32 0.0, %v1622
    %v1624 = vpop.f32.mrf.mxu0
    %1625 = vdwg.mxu0
    %v1626 = vadd.f32 %v1542, %v1623
    %v1627 = vtanh.pop %v1626
    %v1628 = vmul.f32 %v1591, %v1487
    %v1629 = vsub.f32 1.0, %v1591
    %v1630 = vmul.f32 %v1629, %v1627
    %v1631 = vadd.f32 %v1628, %v1630
    %v1632 = vpack.c.bf16 %v1631, %v1631
    %1633 = vmatpush.bf16.msra.mxu0 %v617
    %1634 = vmatpush.bf16.msra.mxu0 %v616
    %1635 = vmatpush.bf16.msra.mxu0 %v615
    %1636 = vmatpush.bf16.msra.mxu0 %v614
    %1637 = vmatpush.bf16.msra.mxu0 %v613
    %1638 = vmatpush.bf16.msra.mxu0 %v612
    %1639 = vmatpush.bf16.msra.mxu0 %v611
    %1640 = vmatpush.bf16.msra.mxu0 %v610
    %1641 = vmatmul.bf16.gmra.mxu0 %v1632
    %v1642 = vpop.f32.mrf.mxu0
    %v1643 = vadd.f32 %v183, %v1642
    %v1644 = vpop.f32.mrf.mxu0
    %1645 = vdwg.mxu0
    %s1646 = scalar_lea.vmem %s8, 56
    %1647 = vst [vmem:[%s1646] sm:$0xff] %v1643
    %p1648 = scmp.lt.s32.totalorder 0, 0
    // Predicated region
    $region54: #{multilayer_gru_forward.3} parent=1 // pred_check
      %p1649 = pneg %p1648
    $region55: #{multilayer_gru_forward.3} parent=1 // pred_check_branch
      %1651 = sbr.rel (%p1649) target = $region57
    $region56: #{multilayer_gru_forward.3} parent=1 // pred_region
      %1652 = vst [vmem:[#allocation2] sm:$0xff] %v1631
    $region57: #{multilayer_gru_forward.3} parent=1 // pred_fallthru
      _
    // Predicated region
    $region58: #{multilayer_gru_forward.3} parent=1 // pred_check
      %p1653 = pneg %p94
    $region59: #{multilayer_gru_forward.3} parent=1 // pred_check_branch
      %1655 = sbr.rel (%p1653) target = $region61
    $region60: #{multilayer_gru_forward.3} parent=1 // pred_region
      %1656 = vst [vmem:[%s9] sm:$0xff] %v1631
    $region61: #{multilayer_gru_forward.3} parent=1 // pred_fallthru
      _
    // Predicated region
    $region62: #{multilayer_gru_forward.3} parent=1 // pred_check
      _
    $region63: #{multilayer_gru_forward.3} parent=1 // pred_check_branch
      %1658 = sbr.rel (0) target = $region65
    $region64: #{multilayer_gru_forward.3} parent=1 // pred_region
      _
    $region65: #{multilayer_gru_forward.3} parent=1 // pred_fallthru
      _
    // Predicated region
    $region66: #{multilayer_gru_forward.3} parent=1 // pred_check
      _
    $region67: #{multilayer_gru_forward.3} parent=1 // pred_check_branch
      %1660 = sbr.rel (0) target = $region69
    $region68: #{multilayer_gru_forward.3} parent=1 // pred_region
      _
    $region69: #{multilayer_gru_forward.3} parent=1 // pred_fallthru
      _
    // Predicated region
    $region70: #{multilayer_gru_forward.3} parent=1 // pred_check
      _
    $region71: #{multilayer_gru_forward.3} parent=1 // pred_check_branch
      %1662 = sbr.rel (0) target = $region73
    $region72: #{multilayer_gru_forward.3} parent=1 // pred_region
      _
    $region73: #{multilayer_gru_forward.3} parent=1 // pred_fallthru
      _
    // Predicated region
    $region74: #{multilayer_gru_forward.3} parent=1 // pred_check
      _
    $region75: #{multilayer_gru_forward.3} parent=1 // pred_check_branch
      %1664 = sbr.rel (0) target = $region77
    $region76: #{multilayer_gru_forward.3} parent=1 // pred_region
      _
    $region77: #{multilayer_gru_forward.3} parent=1 // pred_fallthru
      _
    %1665 = vsyncpa [#allocation4], 1
    %1666 = vsyncpa [#allocation6], 1
    %1667 = vsyncpa [#allocation9], 1

</llo_original>
